<compile_context>
chip_gen: v7x
topology: tpu7x:2x2x1
jax: 0.10.0
libtpu: 0.0.40
codegen_flags: <defaults>
</compile_context>

<pallas_src>
import functools
import math

import numpy as np
import jax
import jax.numpy as jnp
from jax import lax
from jax.experimental import pallas as pl
from jax.experimental.pallas import tpu as pltpu


# Halo rows above/below each output row tile.  The pipeline's vertical
# receptive radius is filter_size//2 + 3 (= 5 for the default 5-tap gaussian).
_HALO = 8

# Neighbor offset (dy, dx) of directional filter c:  dir_c = x - x[.+dy, .+dx]
_DIR_OFFS = ((0, 1), (1, 1), (1, 0), (1, -1), (0, -1), (-1, -1), (-1, 0), (-1, 1))


def _gaussian_window(filter_size, std):
    # scipy.signal.gaussian(M, std) -- un-normalized, exactly as get_filter().
    n = np.arange(filter_size, dtype=np.float64) - (filter_size - 1) / 2.0
    return np.exp(-0.5 * (n / std) ** 2).astype(np.float32)


def _round_up(a, m):
    return -(-a // m) * m


def canny_kernel(cur_ref, tail_ref, out_ref, *, row_tile, H, W, gwin,
                 low, high, scale_on, scale_off):
    B = cur_ref.shape[0]
    T = row_tile
    R = T + 2 * _HALO                      # rows in the working window
    Wp = cur_ref.shape[3]                  # lane-padded width (multiple of 128)
    j = pl.program_id(0)
    f32 = jnp.float32

    # Absolute image row / column of every element of an (R, Wp) slab.
    ri = lax.broadcasted_iota(jnp.int32, (R, Wp), 0) + (j * T - _HALO)
    ci = lax.broadcasted_iota(jnp.int32, (R, Wp), 1)
    # True image footprint; re-applied after stages with spatial extent, which
    # reproduces PyTorch's per-conv zero padding at the H / W borders.
    valid = (ri >= 0) & (ri < H) & (ci < W)
    interior = (ri >= 1) & (ri <= H - 2) & (ci >= 1) & (ci <= W - 2)

    def shift(x, dy, dx):
        # y[r, c] = x[r + dy, c + dx]   (jnp.roll convention: out[i] = in[i-s]).
        # Wrapped rows land outside the rows any output depends on (8-row halo)
        # and wrapped columns land on / read from the zeroed W padding.
        y = x
        if dy:
            y = pltpu.roll(y, shift=(-dy) % R, axis=0)
        if dx:
            y = pltpu.roll(y, shift=(-dx) % Wp, axis=1)
        return y

    g = [float(v) for v in gwin]
    p = len(g) // 2

    # ---- gaussian blur + sobel, per (batch, color) slab --------------------
    gmag, sgx, sgy = [], [], []
    for b in range(B):
        gm = sx = sy = None
        for ch in range(3):
            # Assemble the working window (main rows + tail rows) once.
            x = jnp.concatenate(
                [cur_ref[b, ch].astype(f32), tail_ref[b, ch].astype(f32)],
                axis=0)
            # 1 x filter_size horizontal gaussian (zero 'same' pad comes from
            # the zeroed W-padding columns of the input).
            bh = x * g[p]
            for d in range(1, p + 1):
                bh = bh + shift(x, 0, -d) * g[p - d] + shift(x, 0, d) * g[p + d]
            # filter_size x 1 vertical gaussian, then re-apply the true-image
            # zero border (what the next conv's zero padding sees).
            bv = bh * g[p]
            for d in range(1, p + 1):
                bv = bv + shift(bh, -d, 0) * g[p - d] + shift(bh, d, 0) * g[p + d]
            bv = jnp.where(valid, bv, 0.0)
            # 3x3 sobel pair (row-shift once, column-shift the shifted slabs).
            up = shift(bv, -1, 0)
            dn = shift(bv, 1, 0)
            um1 = shift(up, 0, -1); up1 = shift(up, 0, 1)
            cm1 = shift(bv, 0, -1); cp1 = shift(bv, 0, 1)
            dm1 = shift(dn, 0, -1); dp1 = shift(dn, 0, 1)
            gx = um1 - up1 + 2.0 * cm1 - 2.0 * cp1 + dm1 - dp1
            gy = um1 + 2.0 * up + up1 - dm1 - 2.0 * dn - dp1
            m = jnp.sqrt(gx * gx + gy * gy)
            gm = m if gm is None else gm + m
            sx = gx if sx is None else sx + gx
            sy = gy if sy is None else sy + gy
        gmag.append(jnp.where(valid, gm, 0.0))
        sgx.append(sx)
        sgy.append(sy)

    # ---- per-batch NMS + hysteresis + border zeroing + affine head ---------
    t1 = math.tan(math.pi / 8.0)
    t2 = math.tan(3.0 * math.pi / 8.0)
    one = jnp.float32(1.0)
    zero = jnp.float32(0.0)
    for b in range(B):
        # Orientation octant: round((atan2*180/pi + 180)/45) % 8, computed via
        # exact sector comparisons (no in-kernel atan2 lowering).
        # TODO(synk): differs from the torch reference only at measure-zero
        # 22.5-degree sector boundaries / round-half-to-even ties.
        ax = jnp.abs(sgx[b]); ay = jnp.abs(sgy[b])
        px = sgx[b] >= 0.0;   py = sgy[b] >= 0.0
        k_axis = jnp.where(px, 0, 4)
        k_vert = jnp.where(py, 2, -2)
        k_diag = jnp.where(px, jnp.where(py, 1, -1), jnp.where(py, 3, -3))
        k = jnp.where(ay <= t1 * ax, k_axis,
                      jnp.where(ay >= t2 * ax, k_vert, k_diag))
        ip = jnp.mod(k + 4, 8).astype(jnp.int32)

        # Directional responses on demand, with the reference's flat-gather
        # batch mixing: the value gathered for orientation c of batch b is
        # all_filtered[(c*B+b)//8, (c*B+b)%8] (same pixel, possibly another
        # batch); the negative direction for c is the positive one of (c+4)%8.
        dv = []
        for c in range(8):
            fp = c * B + b
            dy, dx = _DIR_OFFS[fp % 8]
            src = gmag[fp // 8]
            dv.append(src - shift(src, dy, dx))

        sp = jnp.zeros((R, Wp), f32)
        sn = jnp.zeros((R, Wp), f32)
        for c in range(8):
            msk = ip == c
            sp = jnp.where(msk, dv[c], sp)
            sn = jnp.where(msk, dv[(c + 4) % 8], sn)

        is_max = jnp.minimum(sp, sn) > 0.0
        thin = jnp.where(is_max, gmag[b], 0.0)

        higher = thin > high
        middle = (thin >= low) & (thin <= high)
        hf = jnp.where(higher, one, zero)
        hu = shift(hf, -1, 0)
        hd = shift(hf, 1, 0)
        connect = (shift(hu, 0, -1) + hu + shift(hu, 0, 1)
                   + shift(hf, 0, -1) + shift(hf, 0, 1)
                   + shift(hd, 0, -1) + hd + shift(hd, 0, 1))
        edge = higher | (middle & (connect > 0.0))

        # thresholded is exactly {0,1}; border zeroing and (w*x + b)/255 fold
        # into a single select.
        res = jnp.where(edge & interior, jnp.float32(scale_on),
                        jnp.float32(scale_off))
        out_ref[b, 0, :, :] = res[_HALO:_HALO + T, :].astype(out_ref.dtype)


def canny_detector(img, threshold1=10.0, threshold2=100.0, *,
                   filter_size=5, std=1.0, row_tile=None,
                   w_param=1.0, b_param=0.0):
    """JAX/Pallas port of CannyDetector.forward (w=1, b=0, detach=False)."""
    B, C, H, W = img.shape
    assert C >= 3, "CannyDetector expects at least 3 (RGB) channels"
    assert filter_size % 2 == 1, "filter_size must be odd"
    p = filter_size // 2
    assert p + 3 <= _HALO, "halo too small for this filter_size"

    # Lane-dense width with >= 2 zero columns (for lane-roll wrap safety).
    Wp = _round_up(W + max(p, 2), 128)

    # Per-generation VMEM budget (v7x: 64 MiB/core, v5e/v6e: 128 MiB/core).
    try:
        vmem_cap = int(pltpu.get_tpu_info().vmem_capacity_bytes)
    except Exception:                         # no TPU visible at trace time
        vmem_cap = 64 * 1024 * 1024
    vmem_limit = int(min(100 * 1024 * 1024, vmem_cap * 3 // 4))

    # Row tile: large enough to amortize the fixed 16-row halo and per-step
    # overhead, small enough to fit the VMEM budget, and >= 2 tiles when the
    # image allows it so the "parallel" grid axis load-balances across
    # TensorCores (v7x megacore).
    if row_tile is None:
        Hr = _round_up(H, 2 * _HALO)
        if Hr <= 2 * _HALO:
            T = Hr
        else:
            T = min(128, _round_up(-(-Hr // 2), 2 * _HALO))

        def _tile_bytes(t):
            # double-buffered I/O blocks + ~(3B+16) live (R, Wp) f32 slabs
            blocks = 2 * 4 * (B * 3 * (t + 2 * _HALO) + B * t) * Wp
            slabs = (3 * B + 16) * (t + 2 * _HALO) * Wp * 4
            return blocks + slabs

        while T > 2 * _HALO and _tile_bytes(T) > int(0.7 * vmem_limit):
            T -= 2 * _HALO
    else:
        T = int(row_tile)
    assert T >= 2 * _HALO and T % (2 * _HALO) == 0, \
        "row_tile must be a positive multiple of 16"

    n_tiles = -(-H // T)                      # ceil(H / T)
    Ht = n_tiles * T

    # Zero-pad: _HALO rows on top, _HALO + alignment rows at the bottom,
    # (Wp - W) zero columns on the right; cast to f32 once in the wrapper.
    x = img[:, 0:3].astype(jnp.float32)
    xp = jnp.pad(x, ((0, 0), (0, 0), (_HALO, _HALO + (Ht - H)), (0, Wp - W)))

    gwin = tuple(float(v) for v in _gaussian_window(filter_size, std))
    low = float(min(threshold1, threshold2))
    high = float(max(threshold1, threshold2))
    # learnable affine head from __init__: w.fill_(1), b.fill_(0), folded.
    scale_on = (float(w_param) + float(b_param)) / 255.0
    scale_off = float(b_param) / 255.0

    kernel = functools.partial(
        canny_kernel, row_tile=T, H=H, W=W, gwin=gwin, low=low, high=high,
        scale_on=scale_on, scale_off=scale_off)

    hh = T // (2 * _HALO)
    out = pl.pallas_call(
        kernel,
        out_shape=jax.ShapeDtypeStruct((B, 1, Ht, Wp), jnp.float32),
        grid=(n_tiles,),
        in_specs=[
            # Main block: image rows [j*T - HALO, (j+1)*T - HALO).
            pl.BlockSpec((B, 3, T, Wp), lambda j: (0, 0, j, 0)),
            # Tail block: the remaining 2*HALO rows below it.
            pl.BlockSpec((B, 3, 2 * _HALO, Wp),
                         lambda j: (0, 0, (j + 1) * hh, 0)),
        ],
        out_specs=pl.BlockSpec((B, 1, T, Wp), lambda j: (0, 0, j, 0)),
        compiler_params=pltpu.CompilerParams(
            dimension_semantics=("parallel",),     # row tiles are independent
            vmem_limit_bytes=vmem_limit),
    )(xp, xp)
    return out[:, :, :H, :W]


if __name__ == "__main__":
    key = jax.random.PRNGKey(0)
    # Small, deterministic NCHW input (values in [0, 255] like an image).
    img = jax.random.uniform(key, (2, 3, 16, 16), dtype=jnp.float32) * 255.0
    out = jax.jit(canny_detector)(img)     # H=16 -> T=16, 1 grid step
    out = jax.block_until_ready(out)
    assert out.shape == (2, 1, 16, 16) and out.dtype == jnp.float32
    print("KERNEL_OK")
</pallas_src>

<mosaic_0001>
module attributes {stable_mosaic.version = 11 : i64} {
  func.func @canny_kernel(%arg0: i32, %arg1: memref<2x3x16x128xf32, #tpu.memory_space<vmem>>, %arg2: memref<2x3x16x128xf32, #tpu.memory_space<vmem>>, %arg3: memref<2x1x16x128xf32, #tpu.memory_space<vmem>>) attributes {dimension_semantics = [#tpu.dimension_semantics<parallel>], iteration_bounds = array<i64: 1>, scalar_prefetch = 0 : i64, scratch_operands = 0 : i64, tpu.core_type = #tpu.core_type<tc>, window_params = [{transform_indices = @transform_0, window_bounds = array<i64: 2, 3, 16, 128>}, {transform_indices = @transform_1, window_bounds = array<i64: 2, 3, 16, 128>}, {transform_indices = @transform_2, window_bounds = array<i64: 2, 1, 16, 128>}]} {
    %0 = tpu.iota {dimensions = array<i32: 0>} : vector<32x128xi32>
    %c16_i32 = arith.constant 16 : i32
    %1 = arith.muli %arg0, %c16_i32 : i32
    %c8_i32 = arith.constant 8 : i32
    %2 = arith.subi %1, %c8_i32 : i32
    %3 = vector.broadcast %2 : i32 to vector<32x128xi32>
    %4 = arith.addi %0, %3 : vector<32x128xi32>
    %5 = tpu.iota {dimensions = array<i32: 1>} : vector<32x128xi32>
    %c0_i32 = arith.constant 0 : i32
    %6 = vector.broadcast %c0_i32 : i32 to vector<32x128xi32>
    %7 = arith.cmpi sge, %4, %6 : vector<32x128xi32>
    %c16_i32_0 = arith.constant 16 : i32
    %8 = vector.broadcast %c16_i32_0 : i32 to vector<32x128xi32>
    %9 = arith.cmpi slt, %4, %8 : vector<32x128xi32>
    %10 = arith.andi %7, %9 : vector<32x128xi1>
    %c16_i32_1 = arith.constant 16 : i32
    %11 = vector.broadcast %c16_i32_1 : i32 to vector<32x128xi32>
    %12 = arith.cmpi slt, %5, %11 : vector<32x128xi32>
    %13 = arith.andi %10, %12 : vector<32x128xi1>
    %c1_i32 = arith.constant 1 : i32
    %14 = vector.broadcast %c1_i32 : i32 to vector<32x128xi32>
    %15 = arith.cmpi sge, %4, %14 : vector<32x128xi32>
    %c14_i32 = arith.constant 14 : i32
    %16 = vector.broadcast %c14_i32 : i32 to vector<32x128xi32>
    %17 = arith.cmpi sle, %4, %16 : vector<32x128xi32>
    %18 = arith.andi %15, %17 : vector<32x128xi1>
    %c1_i32_2 = arith.constant 1 : i32
    %19 = vector.broadcast %c1_i32_2 : i32 to vector<32x128xi32>
    %20 = arith.cmpi sge, %5, %19 : vector<32x128xi32>
    %21 = arith.andi %18, %20 : vector<32x128xi1>
    %c14_i32_3 = arith.constant 14 : i32
    %22 = vector.broadcast %c14_i32_3 : i32 to vector<32x128xi32>
    %23 = arith.cmpi sle, %5, %22 : vector<32x128xi32>
    %24 = arith.andi %21, %23 : vector<32x128xi1>
    %c0 = arith.constant 0 : index
    %c0_4 = arith.constant 0 : index
    %c0_5 = arith.constant 0 : index
    %c0_6 = arith.constant 0 : index
    %25 = vector.load %arg1[%c0, %c0_4, %c0_5, %c0_6] : memref<2x3x16x128xf32, #tpu.memory_space<vmem>>, vector<1x1x16x128xf32>
    %26 = vector.shape_cast %25 : vector<1x1x16x128xf32> to vector<16x128xf32>
    %c0_7 = arith.constant 0 : index
    %c0_8 = arith.constant 0 : index
    %c0_9 = arith.constant 0 : index
    %c0_10 = arith.constant 0 : index
    %27 = vector.load %arg2[%c0_7, %c0_8, %c0_9, %c0_10] : memref<2x3x16x128xf32, #tpu.memory_space<vmem>>, vector<1x1x16x128xf32>
    %28 = vector.shape_cast %27 : vector<1x1x16x128xf32> to vector<16x128xf32>
    %29 = tpu.concatenate %26, %28 in 0 : vector<16x128xf32>, vector<16x128xf32> -> vector<32x128xf32>
    %cst = arith.constant 1.000000e+00 : f32
    %30 = vector.broadcast %cst : f32 to vector<32x128xf32>
    %31 = arith.mulf %29, %30 : vector<32x128xf32>
    %c1_i32_11 = arith.constant 1 : i32
    %32 = tpu.dynamic_rotate %29 by %c1_i32_11 dim 1 : vector<32x128xf32>, i32 -> vector<32x128xf32>
    %cst_12 = arith.constant 0.606530666 : f32
    %33 = vector.broadcast %cst_12 : f32 to vector<32x128xf32>
    %34 = arith.mulf %32, %33 : vector<32x128xf32>
    %35 = arith.addf %31, %34 : vector<32x128xf32>
    %c127_i32 = arith.constant 127 : i32
    %36 = tpu.dynamic_rotate %29 by %c127_i32 dim 1 : vector<32x128xf32>, i32 -> vector<32x128xf32>
    %cst_13 = arith.constant 0.606530666 : f32
    %37 = vector.broadcast %cst_13 : f32 to vector<32x128xf32>
    %38 = arith.mulf %36, %37 : vector<32x128xf32>
    %39 = arith.addf %35, %38 : vector<32x128xf32>
    %c2_i32 = arith.constant 2 : i32
    %40 = tpu.dynamic_rotate %29 by %c2_i32 dim 1 : vector<32x128xf32>, i32 -> vector<32x128xf32>
    %cst_14 = arith.constant 0.135335281 : f32
    %41 = vector.broadcast %cst_14 : f32 to vector<32x128xf32>
    %42 = arith.mulf %40, %41 : vector<32x128xf32>
    %43 = arith.addf %39, %42 : vector<32x128xf32>
    %c126_i32 = arith.constant 126 : i32
    %44 = tpu.dynamic_rotate %29 by %c126_i32 dim 1 : vector<32x128xf32>, i32 -> vector<32x128xf32>
    %cst_15 = arith.constant 0.135335281 : f32
    %45 = vector.broadcast %cst_15 : f32 to vector<32x128xf32>
    %46 = arith.mulf %44, %45 : vector<32x128xf32>
    %47 = arith.addf %43, %46 : vector<32x128xf32>
    %cst_16 = arith.constant 1.000000e+00 : f32
    %48 = vector.broadcast %cst_16 : f32 to vector<32x128xf32>
    %49 = arith.mulf %47, %48 : vector<32x128xf32>
    %c1_i32_17 = arith.constant 1 : i32
    %50 = tpu.dynamic_rotate %47 by %c1_i32_17 dim 0 : vector<32x128xf32>, i32 -> vector<32x128xf32>
    %cst_18 = arith.constant 0.606530666 : f32
    %51 = vector.broadcast %cst_18 : f32 to vector<32x128xf32>
    %52 = arith.mulf %50, %51 : vector<32x128xf32>
    %53 = arith.addf %49, %52 : vector<32x128xf32>
    %c31_i32 = arith.constant 31 : i32
    %54 = tpu.dynamic_rotate %47 by %c31_i32 dim 0 : vector<32x128xf32>, i32 -> vector<32x128xf32>
    %cst_19 = arith.constant 0.606530666 : f32
    %55 = vector.broadcast %cst_19 : f32 to vector<32x128xf32>
    %56 = arith.mulf %54, %55 : vector<32x128xf32>
    %57 = arith.addf %53, %56 : vector<32x128xf32>
    %c2_i32_20 = arith.constant 2 : i32
    %58 = tpu.dynamic_rotate %47 by %c2_i32_20 dim 0 : vector<32x128xf32>, i32 -> vector<32x128xf32>
    %cst_21 = arith.constant 0.135335281 : f32
    %59 = vector.broadcast %cst_21 : f32 to vector<32x128xf32>
    %60 = arith.mulf %58, %59 : vector<32x128xf32>
    %61 = arith.addf %57, %60 : vector<32x128xf32>
    %c30_i32 = arith.constant 30 : i32
    %62 = tpu.dynamic_rotate %47 by %c30_i32 dim 0 : vector<32x128xf32>, i32 -> vector<32x128xf32>
    %cst_22 = arith.constant 0.135335281 : f32
    %63 = vector.broadcast %cst_22 : f32 to vector<32x128xf32>
    %64 = arith.mulf %62, %63 : vector<32x128xf32>
    %65 = arith.addf %61, %64 : vector<32x128xf32>
    %cst_23 = arith.constant 0.000000e+00 : f32
    %66 = vector.broadcast %cst_23 : f32 to vector<32x128xf32>
    %67 = arith.select %13, %65, %66 : vector<32x128xi1>, vector<32x128xf32>
    %c1_i32_24 = arith.constant 1 : i32
    %68 = tpu.dynamic_rotate %67 by %c1_i32_24 dim 0 : vector<32x128xf32>, i32 -> vector<32x128xf32>
    %c31_i32_25 = arith.constant 31 : i32
    %69 = tpu.dynamic_rotate %67 by %c31_i32_25 dim 0 : vector<32x128xf32>, i32 -> vector<32x128xf32>
    %c1_i32_26 = arith.constant 1 : i32
    %70 = tpu.dynamic_rotate %68 by %c1_i32_26 dim 1 : vector<32x128xf32>, i32 -> vector<32x128xf32>
    %c127_i32_27 = arith.constant 127 : i32
    %71 = tpu.dynamic_rotate %68 by %c127_i32_27 dim 1 : vector<32x128xf32>, i32 -> vector<32x128xf32>
    %c1_i32_28 = arith.constant 1 : i32
    %72 = tpu.dynamic_rotate %67 by %c1_i32_28 dim 1 : vector<32x128xf32>, i32 -> vector<32x128xf32>
    %c127_i32_29 = arith.constant 127 : i32
    %73 = tpu.dynamic_rotate %67 by %c127_i32_29 dim 1 : vector<32x128xf32>, i32 -> vector<32x128xf32>
    %c1_i32_30 = arith.constant 1 : i32
    %74 = tpu.dynamic_rotate %69 by %c1_i32_30 dim 1 : vector<32x128xf32>, i32 -> vector<32x128xf32>
    %c127_i32_31 = arith.constant 127 : i32
    %75 = tpu.dynamic_rotate %69 by %c127_i32_31 dim 1 : vector<32x128xf32>, i32 -> vector<32x128xf32>
    %76 = arith.subf %70, %71 : vector<32x128xf32>
    %cst_32 = arith.constant 2.000000e+00 : f32
    %77 = vector.broadcast %cst_32 : f32 to vector<32x128xf32>
    %78 = arith.mulf %77, %72 : vector<32x128xf32>
    %79 = arith.addf %76, %78 : vector<32x128xf32>
    %cst_33 = arith.constant 2.000000e+00 : f32
    %80 = vector.broadcast %cst_33 : f32 to vector<32x128xf32>
    %81 = arith.mulf %80, %73 : vector<32x128xf32>
    %82 = arith.subf %79, %81 : vector<32x128xf32>
    %83 = arith.addf %82, %74 : vector<32x128xf32>
    %84 = arith.subf %83, %75 : vector<32x128xf32>
    %cst_34 = arith.constant 2.000000e+00 : f32
    %85 = vector.broadcast %cst_34 : f32 to vector<32x128xf32>
    %86 = arith.mulf %85, %68 : vector<32x128xf32>
    %87 = arith.addf %70, %86 : vector<32x128xf32>
    %88 = arith.addf %87, %71 : vector<32x128xf32>
    %89 = arith.subf %88, %74 : vector<32x128xf32>
    %cst_35 = arith.constant 2.000000e+00 : f32
    %90 = vector.broadcast %cst_35 : f32 to vector<32x128xf32>
    %91 = arith.mulf %90, %69 : vector<32x128xf32>
    %92 = arith.subf %89, %91 : vector<32x128xf32>
    %93 = arith.subf %92, %75 : vector<32x128xf32>
    %94 = arith.mulf %84, %84 : vector<32x128xf32>
    %95 = arith.mulf %93, %93 : vector<32x128xf32>
    %96 = arith.addf %94, %95 : vector<32x128xf32>
    %97 = math.sqrt %96 : vector<32x128xf32>
    %c0_36 = arith.constant 0 : index
    %c1 = arith.constant 1 : index
    %c0_37 = arith.constant 0 : index
    %c0_38 = arith.constant 0 : index
    %98 = vector.load %arg1[%c0_36, %c1, %c0_37, %c0_38] : memref<2x3x16x128xf32, #tpu.memory_space<vmem>>, vector<1x1x16x128xf32>
    %99 = vector.shape_cast %98 : vector<1x1x16x128xf32> to vector<16x128xf32>
    %c0_39 = arith.constant 0 : index
    %c1_40 = arith.constant 1 : index
    %c0_41 = arith.constant 0 : index
    %c0_42 = arith.constant 0 : index
    %100 = vector.load %arg2[%c0_39, %c1_40, %c0_41, %c0_42] : memref<2x3x16x128xf32, #tpu.memory_space<vmem>>, vector<1x1x16x128xf32>
    %101 = vector.shape_cast %100 : vector<1x1x16x128xf32> to vector<16x128xf32>
    %102 = tpu.concatenate %99, %101 in 0 : vector<16x128xf32>, vector<16x128xf32> -> vector<32x128xf32>
    %cst_43 = arith.constant 1.000000e+00 : f32
    %103 = vector.broadcast %cst_43 : f32 to vector<32x128xf32>
    %104 = arith.mulf %102, %103 : vector<32x128xf32>
    %c1_i32_44 = arith.constant 1 : i32
    %105 = tpu.dynamic_rotate %102 by %c1_i32_44 dim 1 : vector<32x128xf32>, i32 -> vector<32x128xf32>
    %cst_45 = arith.constant 0.606530666 : f32
    %106 = vector.broadcast %cst_45 : f32 to vector<32x128xf32>
    %107 = arith.mulf %105, %106 : vector<32x128xf32>
    %108 = arith.addf %104, %107 : vector<32x128xf32>
    %c127_i32_46 = arith.constant 127 : i32
    %109 = tpu.dynamic_rotate %102 by %c127_i32_46 dim 1 : vector<32x128xf32>, i32 -> vector<32x128xf32>
    %cst_47 = arith.constant 0.606530666 : f32
    %110 = vector.broadcast %cst_47 : f32 to vector<32x128xf32>
    %111 = arith.mulf %109, %110 : vector<32x128xf32>
    %112 = arith.addf %108, %111 : vector<32x128xf32>
    %c2_i32_48 = arith.constant 2 : i32
    %113 = tpu.dynamic_rotate %102 by %c2_i32_48 dim 1 : vector<32x128xf32>, i32 -> vector<32x128xf32>
    %cst_49 = arith.constant 0.135335281 : f32
    %114 = vector.broadcast %cst_49 : f32 to vector<32x128xf32>
    %115 = arith.mulf %113, %114 : vector<32x128xf32>
    %116 = arith.addf %112, %115 : vector<32x128xf32>
    %c126_i32_50 = arith.constant 126 : i32
    %117 = tpu.dynamic_rotate %102 by %c126_i32_50 dim 1 : vector<32x128xf32>, i32 -> vector<32x128xf32>
    %cst_51 = arith.constant 0.135335281 : f32
    %118 = vector.broadcast %cst_51 : f32 to vector<32x128xf32>
    %119 = arith.mulf %117, %118 : vector<32x128xf32>
    %120 = arith.addf %116, %119 : vector<32x128xf32>
    %cst_52 = arith.constant 1.000000e+00 : f32
    %121 = vector.broadcast %cst_52 : f32 to vector<32x128xf32>
    %122 = arith.mulf %120, %121 : vector<32x128xf32>
    %c1_i32_53 = arith.constant 1 : i32
    %123 = tpu.dynamic_rotate %120 by %c1_i32_53 dim 0 : vector<32x128xf32>, i32 -> vector<32x128xf32>
    %cst_54 = arith.constant 0.606530666 : f32
    %124 = vector.broadcast %cst_54 : f32 to vector<32x128xf32>
    %125 = arith.mulf %123, %124 : vector<32x128xf32>
    %126 = arith.addf %122, %125 : vector<32x128xf32>
    %c31_i32_55 = arith.constant 31 : i32
    %127 = tpu.dynamic_rotate %120 by %c31_i32_55 dim 0 : vector<32x128xf32>, i32 -> vector<32x128xf32>
    %cst_56 = arith.constant 0.606530666 : f32
    %128 = vector.broadcast %cst_56 : f32 to vector<32x128xf32>
    %129 = arith.mulf %127, %128 : vector<32x128xf32>
    %130 = arith.addf %126, %129 : vector<32x128xf32>
    %c2_i32_57 = arith.constant 2 : i32
    %131 = tpu.dynamic_rotate %120 by %c2_i32_57 dim 0 : vector<32x128xf32>, i32 -> vector<32x128xf32>
    %cst_58 = arith.constant 0.135335281 : f32
    %132 = vector.broadcast %cst_58 : f32 to vector<32x128xf32>
    %133 = arith.mulf %131, %132 : vector<32x128xf32>
    %134 = arith.addf %130, %133 : vector<32x128xf32>
    %c30_i32_59 = arith.constant 30 : i32
    %135 = tpu.dynamic_rotate %120 by %c30_i32_59 dim 0 : vector<32x128xf32>, i32 -> vector<32x128xf32>
    %cst_60 = arith.constant 0.135335281 : f32
    %136 = vector.broadcast %cst_60 : f32 to vector<32x128xf32>
    %137 = arith.mulf %135, %136 : vector<32x128xf32>
    %138 = arith.addf %134, %137 : vector<32x128xf32>
    %cst_61 = arith.constant 0.000000e+00 : f32
    %139 = vector.broadcast %cst_61 : f32 to vector<32x128xf32>
    %140 = arith.select %13, %138, %139 : vector<32x128xi1>, vector<32x128xf32>
    %c1_i32_62 = arith.constant 1 : i32
    %141 = tpu.dynamic_rotate %140 by %c1_i32_62 dim 0 : vector<32x128xf32>, i32 -> vector<32x128xf32>
    %c31_i32_63 = arith.constant 31 : i32
    %142 = tpu.dynamic_rotate %140 by %c31_i32_63 dim 0 : vector<32x128xf32>, i32 -> vector<32x128xf32>
    %c1_i32_64 = arith.constant 1 : i32
    %143 = tpu.dynamic_rotate %141 by %c1_i32_64 dim 1 : vector<32x128xf32>, i32 -> vector<32x128xf32>
    %c127_i32_65 = arith.constant 127 : i32
    %144 = tpu.dynamic_rotate %141 by %c127_i32_65 dim 1 : vector<32x128xf32>, i32 -> vector<32x128xf32>
    %c1_i32_66 = arith.constant 1 : i32
    %145 = tpu.dynamic_rotate %140 by %c1_i32_66 dim 1 : vector<32x128xf32>, i32 -> vector<32x128xf32>
    %c127_i32_67 = arith.constant 127 : i32
    %146 = tpu.dynamic_rotate %140 by %c127_i32_67 dim 1 : vector<32x128xf32>, i32 -> vector<32x128xf32>
    %c1_i32_68 = arith.constant 1 : i32
    %147 = tpu.dynamic_rotate %142 by %c1_i32_68 dim 1 : vector<32x128xf32>, i32 -> vector<32x128xf32>
    %c127_i32_69 = arith.constant 127 : i32
    %148 = tpu.dynamic_rotate %142 by %c127_i32_69 dim 1 : vector<32x128xf32>, i32 -> vector<32x128xf32>
    %149 = arith.subf %143, %144 : vector<32x128xf32>
    %cst_70 = arith.constant 2.000000e+00 : f32
    %150 = vector.broadcast %cst_70 : f32 to vector<32x128xf32>
    %151 = arith.mulf %150, %145 : vector<32x128xf32>
    %152 = arith.addf %149, %151 : vector<32x128xf32>
    %cst_71 = arith.constant 2.000000e+00 : f32
    %153 = vector.broadcast %cst_71 : f32 to vector<32x128xf32>
    %154 = arith.mulf %153, %146 : vector<32x128xf32>
    %155 = arith.subf %152, %154 : vector<32x128xf32>
    %156 = arith.addf %155, %147 : vector<32x128xf32>
    %157 = arith.subf %156, %148 : vector<32x128xf32>
    %cst_72 = arith.constant 2.000000e+00 : f32
    %158 = vector.broadcast %cst_72 : f32 to vector<32x128xf32>
    %159 = arith.mulf %158, %141 : vector<32x128xf32>
    %160 = arith.addf %143, %159 : vector<32x128xf32>
    %161 = arith.addf %160, %144 : vector<32x128xf32>
    %162 = arith.subf %161, %147 : vector<32x128xf32>
    %cst_73 = arith.constant 2.000000e+00 : f32
    %163 = vector.broadcast %cst_73 : f32 to vector<32x128xf32>
    %164 = arith.mulf %163, %142 : vector<32x128xf32>
    %165 = arith.subf %162, %164 : vector<32x128xf32>
    %166 = arith.subf %165, %148 : vector<32x128xf32>
    %167 = arith.mulf %157, %157 : vector<32x128xf32>
    %168 = arith.mulf %166, %166 : vector<32x128xf32>
    %169 = arith.addf %167, %168 : vector<32x128xf32>
    %170 = math.sqrt %169 : vector<32x128xf32>
    %171 = arith.addf %97, %170 : vector<32x128xf32>
    %172 = arith.addf %84, %157 : vector<32x128xf32>
    %173 = arith.addf %93, %166 : vector<32x128xf32>
    %c0_74 = arith.constant 0 : index
    %c2 = arith.constant 2 : index
    %c0_75 = arith.constant 0 : index
    %c0_76 = arith.constant 0 : index
    %174 = vector.load %arg1[%c0_74, %c2, %c0_75, %c0_76] : memref<2x3x16x128xf32, #tpu.memory_space<vmem>>, vector<1x1x16x128xf32>
    %175 = vector.shape_cast %174 : vector<1x1x16x128xf32> to vector<16x128xf32>
    %c0_77 = arith.constant 0 : index
    %c2_78 = arith.constant 2 : index
    %c0_79 = arith.constant 0 : index
    %c0_80 = arith.constant 0 : index
    %176 = vector.load %arg2[%c0_77, %c2_78, %c0_79, %c0_80] : memref<2x3x16x128xf32, #tpu.memory_space<vmem>>, vector<1x1x16x128xf32>
    %177 = vector.shape_cast %176 : vector<1x1x16x128xf32> to vector<16x128xf32>
    %178 = tpu.concatenate %175, %177 in 0 : vector<16x128xf32>, vector<16x128xf32> -> vector<32x128xf32>
    %cst_81 = arith.constant 1.000000e+00 : f32
    %179 = vector.broadcast %cst_81 : f32 to vector<32x128xf32>
    %180 = arith.mulf %178, %179 : vector<32x128xf32>
    %c1_i32_82 = arith.constant 1 : i32
    %181 = tpu.dynamic_rotate %178 by %c1_i32_82 dim 1 : vector<32x128xf32>, i32 -> vector<32x128xf32>
    %cst_83 = arith.constant 0.606530666 : f32
    %182 = vector.broadcast %cst_83 : f32 to vector<32x128xf32>
    %183 = arith.mulf %181, %182 : vector<32x128xf32>
    %184 = arith.addf %180, %183 : vector<32x128xf32>
    %c127_i32_84 = arith.constant 127 : i32
    %185 = tpu.dynamic_rotate %178 by %c127_i32_84 dim 1 : vector<32x128xf32>, i32 -> vector<32x128xf32>
    %cst_85 = arith.constant 0.606530666 : f32
    %186 = vector.broadcast %cst_85 : f32 to vector<32x128xf32>
    %187 = arith.mulf %185, %186 : vector<32x128xf32>
    %188 = arith.addf %184, %187 : vector<32x128xf32>
    %c2_i32_86 = arith.constant 2 : i32
    %189 = tpu.dynamic_rotate %178 by %c2_i32_86 dim 1 : vector<32x128xf32>, i32 -> vector<32x128xf32>
    %cst_87 = arith.constant 0.135335281 : f32
    %190 = vector.broadcast %cst_87 : f32 to vector<32x128xf32>
    %191 = arith.mulf %189, %190 : vector<32x128xf32>
    %192 = arith.addf %188, %191 : vector<32x128xf32>
    %c126_i32_88 = arith.constant 126 : i32
    %193 = tpu.dynamic_rotate %178 by %c126_i32_88 dim 1 : vector<32x128xf32>, i32 -> vector<32x128xf32>
    %cst_89 = arith.constant 0.135335281 : f32
    %194 = vector.broadcast %cst_89 : f32 to vector<32x128xf32>
    %195 = arith.mulf %193, %194 : vector<32x128xf32>
    %196 = arith.addf %192, %195 : vector<32x128xf32>
    %cst_90 = arith.constant 1.000000e+00 : f32
    %197 = vector.broadcast %cst_90 : f32 to vector<32x128xf32>
    %198 = arith.mulf %196, %197 : vector<32x128xf32>
    %c1_i32_91 = arith.constant 1 : i32
    %199 = tpu.dynamic_rotate %196 by %c1_i32_91 dim 0 : vector<32x128xf32>, i32 -> vector<32x128xf32>
    %cst_92 = arith.constant 0.606530666 : f32
    %200 = vector.broadcast %cst_92 : f32 to vector<32x128xf32>
    %201 = arith.mulf %199, %200 : vector<32x128xf32>
    %202 = arith.addf %198, %201 : vector<32x128xf32>
    %c31_i32_93 = arith.constant 31 : i32
    %203 = tpu.dynamic_rotate %196 by %c31_i32_93 dim 0 : vector<32x128xf32>, i32 -> vector<32x128xf32>
    %cst_94 = arith.constant 0.606530666 : f32
    %204 = vector.broadcast %cst_94 : f32 to vector<32x128xf32>
    %205 = arith.mulf %203, %204 : vector<32x128xf32>
    %206 = arith.addf %202, %205 : vector<32x128xf32>
    %c2_i32_95 = arith.constant 2 : i32
    %207 = tpu.dynamic_rotate %196 by %c2_i32_95 dim 0 : vector<32x128xf32>, i32 -> vector<32x128xf32>
    %cst_96 = arith.constant 0.135335281 : f32
    %208 = vector.broadcast %cst_96 : f32 to vector<32x128xf32>
    %209 = arith.mulf %207, %208 : vector<32x128xf32>
    %210 = arith.addf %206, %209 : vector<32x128xf32>
    %c30_i32_97 = arith.constant 30 : i32
    %211 = tpu.dynamic_rotate %196 by %c30_i32_97 dim 0 : vector<32x128xf32>, i32 -> vector<32x128xf32>
    %cst_98 = arith.constant 0.135335281 : f32
    %212 = vector.broadcast %cst_98 : f32 to vector<32x128xf32>
    %213 = arith.mulf %211, %212 : vector<32x128xf32>
    %214 = arith.addf %210, %213 : vector<32x128xf32>
    %cst_99 = arith.constant 0.000000e+00 : f32
    %215 = vector.broadcast %cst_99 : f32 to vector<32x128xf32>
    %216 = arith.select %13, %214, %215 : vector<32x128xi1>, vector<32x128xf32>
    %c1_i32_100 = arith.constant 1 : i32
    %217 = tpu.dynamic_rotate %216 by %c1_i32_100 dim 0 : vector<32x128xf32>, i32 -> vector<32x128xf32>
    %c31_i32_101 = arith.constant 31 : i32
    %218 = tpu.dynamic_rotate %216 by %c31_i32_101 dim 0 : vector<32x128xf32>, i32 -> vector<32x128xf32>
    %c1_i32_102 = arith.constant 1 : i32
    %219 = tpu.dynamic_rotate %217 by %c1_i32_102 dim 1 : vector<32x128xf32>, i32 -> vector<32x128xf32>
    %c127_i32_103 = arith.constant 127 : i32
    %220 = tpu.dynamic_rotate %217 by %c127_i32_103 dim 1 : vector<32x128xf32>, i32 -> vector<32x128xf32>
    %c1_i32_104 = arith.constant 1 : i32
    %221 = tpu.dynamic_rotate %216 by %c1_i32_104 dim 1 : vector<32x128xf32>, i32 -> vector<32x128xf32>
    %c127_i32_105 = arith.constant 127 : i32
    %222 = tpu.dynamic_rotate %216 by %c127_i32_105 dim 1 : vector<32x128xf32>, i32 -> vector<32x128xf32>
    %c1_i32_106 = arith.constant 1 : i32
    %223 = tpu.dynamic_rotate %218 by %c1_i32_106 dim 1 : vector<32x128xf32>, i32 -> vector<32x128xf32>
    %c127_i32_107 = arith.constant 127 : i32
    %224 = tpu.dynamic_rotate %218 by %c127_i32_107 dim 1 : vector<32x128xf32>, i32 -> vector<32x128xf32>
    %225 = arith.subf %219, %220 : vector<32x128xf32>
    %cst_108 = arith.constant 2.000000e+00 : f32
    %226 = vector.broadcast %cst_108 : f32 to vector<32x128xf32>
    %227 = arith.mulf %226, %221 : vector<32x128xf32>
    %228 = arith.addf %225, %227 : vector<32x128xf32>
    %cst_109 = arith.constant 2.000000e+00 : f32
    %229 = vector.broadcast %cst_109 : f32 to vector<32x128xf32>
    %230 = arith.mulf %229, %222 : vector<32x128xf32>
    %231 = arith.subf %228, %230 : vector<32x128xf32>
    %232 = arith.addf %231, %223 : vector<32x128xf32>
    %233 = arith.subf %232, %224 : vector<32x128xf32>
    %cst_110 = arith.constant 2.000000e+00 : f32
    %234 = vector.broadcast %cst_110 : f32 to vector<32x128xf32>
    %235 = arith.mulf %234, %217 : vector<32x128xf32>
    %236 = arith.addf %219, %235 : vector<32x128xf32>
    %237 = arith.addf %236, %220 : vector<32x128xf32>
    %238 = arith.subf %237, %223 : vector<32x128xf32>
    %cst_111 = arith.constant 2.000000e+00 : f32
    %239 = vector.broadcast %cst_111 : f32 to vector<32x128xf32>
    %240 = arith.mulf %239, %218 : vector<32x128xf32>
    %241 = arith.subf %238, %240 : vector<32x128xf32>
    %242 = arith.subf %241, %224 : vector<32x128xf32>
    %243 = arith.mulf %233, %233 : vector<32x128xf32>
    %244 = arith.mulf %242, %242 : vector<32x128xf32>
    %245 = arith.addf %243, %244 : vector<32x128xf32>
    %246 = math.sqrt %245 : vector<32x128xf32>
    %247 = arith.addf %171, %246 : vector<32x128xf32>
    %248 = arith.addf %172, %233 : vector<32x128xf32>
    %249 = arith.addf %173, %242 : vector<32x128xf32>
    %cst_112 = arith.constant 0.000000e+00 : f32
    %250 = vector.broadcast %cst_112 : f32 to vector<32x128xf32>
    %251 = arith.select %13, %247, %250 : vector<32x128xi1>, vector<32x128xf32>
    %c1_113 = arith.constant 1 : index
    %c0_114 = arith.constant 0 : index
    %c0_115 = arith.constant 0 : index
    %c0_116 = arith.constant 0 : index
    %252 = vector.load %arg1[%c1_113, %c0_114, %c0_115, %c0_116] : memref<2x3x16x128xf32, #tpu.memory_space<vmem>>, vector<1x1x16x128xf32>
    %253 = vector.shape_cast %252 : vector<1x1x16x128xf32> to vector<16x128xf32>
    %c1_117 = arith.constant 1 : index
    %c0_118 = arith.constant 0 : index
    %c0_119 = arith.constant 0 : index
    %c0_120 = arith.constant 0 : index
    %254 = vector.load %arg2[%c1_117, %c0_118, %c0_119, %c0_120] : memref<2x3x16x128xf32, #tpu.memory_space<vmem>>, vector<1x1x16x128xf32>
    %255 = vector.shape_cast %254 : vector<1x1x16x128xf32> to vector<16x128xf32>
    %256 = tpu.concatenate %253, %255 in 0 : vector<16x128xf32>, vector<16x128xf32> -> vector<32x128xf32>
    %cst_121 = arith.constant 1.000000e+00 : f32
    %257 = vector.broadcast %cst_121 : f32 to vector<32x128xf32>
    %258 = arith.mulf %256, %257 : vector<32x128xf32>
    %c1_i32_122 = arith.constant 1 : i32
    %259 = tpu.dynamic_rotate %256 by %c1_i32_122 dim 1 : vector<32x128xf32>, i32 -> vector<32x128xf32>
    %cst_123 = arith.constant 0.606530666 : f32
    %260 = vector.broadcast %cst_123 : f32 to vector<32x128xf32>
    %261 = arith.mulf %259, %260 : vector<32x128xf32>
    %262 = arith.addf %258, %261 : vector<32x128xf32>
    %c127_i32_124 = arith.constant 127 : i32
    %263 = tpu.dynamic_rotate %256 by %c127_i32_124 dim 1 : vector<32x128xf32>, i32 -> vector<32x128xf32>
    %cst_125 = arith.constant 0.606530666 : f32
    %264 = vector.broadcast %cst_125 : f32 to vector<32x128xf32>
    %265 = arith.mulf %263, %264 : vector<32x128xf32>
    %266 = arith.addf %262, %265 : vector<32x128xf32>
    %c2_i32_126 = arith.constant 2 : i32
    %267 = tpu.dynamic_rotate %256 by %c2_i32_126 dim 1 : vector<32x128xf32>, i32 -> vector<32x128xf32>
    %cst_127 = arith.constant 0.135335281 : f32
    %268 = vector.broadcast %cst_127 : f32 to vector<32x128xf32>
    %269 = arith.mulf %267, %268 : vector<32x128xf32>
    %270 = arith.addf %266, %269 : vector<32x128xf32>
    %c126_i32_128 = arith.constant 126 : i32
    %271 = tpu.dynamic_rotate %256 by %c126_i32_128 dim 1 : vector<32x128xf32>, i32 -> vector<32x128xf32>
    %cst_129 = arith.constant 0.135335281 : f32
    %272 = vector.broadcast %cst_129 : f32 to vector<32x128xf32>
    %273 = arith.mulf %271, %272 : vector<32x128xf32>
    %274 = arith.addf %270, %273 : vector<32x128xf32>
    %cst_130 = arith.constant 1.000000e+00 : f32
    %275 = vector.broadcast %cst_130 : f32 to vector<32x128xf32>
    %276 = arith.mulf %274, %275 : vector<32x128xf32>
    %c1_i32_131 = arith.constant 1 : i32
    %277 = tpu.dynamic_rotate %274 by %c1_i32_131 dim 0 : vector<32x128xf32>, i32 -> vector<32x128xf32>
    %cst_132 = arith.constant 0.606530666 : f32
    %278 = vector.broadcast %cst_132 : f32 to vector<32x128xf32>
    %279 = arith.mulf %277, %278 : vector<32x128xf32>
    %280 = arith.addf %276, %279 : vector<32x128xf32>
    %c31_i32_133 = arith.constant 31 : i32
    %281 = tpu.dynamic_rotate %274 by %c31_i32_133 dim 0 : vector<32x128xf32>, i32 -> vector<32x128xf32>
    %cst_134 = arith.constant 0.606530666 : f32
    %282 = vector.broadcast %cst_134 : f32 to vector<32x128xf32>
    %283 = arith.mulf %281, %282 : vector<32x128xf32>
    %284 = arith.addf %280, %283 : vector<32x128xf32>
    %c2_i32_135 = arith.constant 2 : i32
    %285 = tpu.dynamic_rotate %274 by %c2_i32_135 dim 0 : vector<32x128xf32>, i32 -> vector<32x128xf32>
    %cst_136 = arith.constant 0.135335281 : f32
    %286 = vector.broadcast %cst_136 : f32 to vector<32x128xf32>
    %287 = arith.mulf %285, %286 : vector<32x128xf32>
    %288 = arith.addf %284, %287 : vector<32x128xf32>
    %c30_i32_137 = arith.constant 30 : i32
    %289 = tpu.dynamic_rotate %274 by %c30_i32_137 dim 0 : vector<32x128xf32>, i32 -> vector<32x128xf32>
    %cst_138 = arith.constant 0.135335281 : f32
    %290 = vector.broadcast %cst_138 : f32 to vector<32x128xf32>
    %291 = arith.mulf %289, %290 : vector<32x128xf32>
    %292 = arith.addf %288, %291 : vector<32x128xf32>
    %cst_139 = arith.constant 0.000000e+00 : f32
    %293 = vector.broadcast %cst_139 : f32 to vector<32x128xf32>
    %294 = arith.select %13, %292, %293 : vector<32x128xi1>, vector<32x128xf32>
    %c1_i32_140 = arith.constant 1 : i32
    %295 = tpu.dynamic_rotate %294 by %c1_i32_140 dim 0 : vector<32x128xf32>, i32 -> vector<32x128xf32>
    %c31_i32_141 = arith.constant 31 : i32
    %296 = tpu.dynamic_rotate %294 by %c31_i32_141 dim 0 : vector<32x128xf32>, i32 -> vector<32x128xf32>
    %c1_i32_142 = arith.constant 1 : i32
    %297 = tpu.dynamic_rotate %295 by %c1_i32_142 dim 1 : vector<32x128xf32>, i32 -> vector<32x128xf32>
    %c127_i32_143 = arith.constant 127 : i32
    %298 = tpu.dynamic_rotate %295 by %c127_i32_143 dim 1 : vector<32x128xf32>, i32 -> vector<32x128xf32>
    %c1_i32_144 = arith.constant 1 : i32
    %299 = tpu.dynamic_rotate %294 by %c1_i32_144 dim 1 : vector<32x128xf32>, i32 -> vector<32x128xf32>
    %c127_i32_145 = arith.constant 127 : i32
    %300 = tpu.dynamic_rotate %294 by %c127_i32_145 dim 1 : vector<32x128xf32>, i32 -> vector<32x128xf32>
    %c1_i32_146 = arith.constant 1 : i32
    %301 = tpu.dynamic_rotate %296 by %c1_i32_146 dim 1 : vector<32x128xf32>, i32 -> vector<32x128xf32>
    %c127_i32_147 = arith.constant 127 : i32
    %302 = tpu.dynamic_rotate %296 by %c127_i32_147 dim 1 : vector<32x128xf32>, i32 -> vector<32x128xf32>
    %303 = arith.subf %297, %298 : vector<32x128xf32>
    %cst_148 = arith.constant 2.000000e+00 : f32
    %304 = vector.broadcast %cst_148 : f32 to vector<32x128xf32>
    %305 = arith.mulf %304, %299 : vector<32x128xf32>
    %306 = arith.addf %303, %305 : vector<32x128xf32>
    %cst_149 = arith.constant 2.000000e+00 : f32
    %307 = vector.broadcast %cst_149 : f32 to vector<32x128xf32>
    %308 = arith.mulf %307, %300 : vector<32x128xf32>
    %309 = arith.subf %306, %308 : vector<32x128xf32>
    %310 = arith.addf %309, %301 : vector<32x128xf32>
    %311 = arith.subf %310, %302 : vector<32x128xf32>
    %cst_150 = arith.constant 2.000000e+00 : f32
    %312 = vector.broadcast %cst_150 : f32 to vector<32x128xf32>
    %313 = arith.mulf %312, %295 : vector<32x128xf32>
    %314 = arith.addf %297, %313 : vector<32x128xf32>
    %315 = arith.addf %314, %298 : vector<32x128xf32>
    %316 = arith.subf %315, %301 : vector<32x128xf32>
    %cst_151 = arith.constant 2.000000e+00 : f32
    %317 = vector.broadcast %cst_151 : f32 to vector<32x128xf32>
    %318 = arith.mulf %317, %296 : vector<32x128xf32>
    %319 = arith.subf %316, %318 : vector<32x128xf32>
    %320 = arith.subf %319, %302 : vector<32x128xf32>
    %321 = arith.mulf %311, %311 : vector<32x128xf32>
    %322 = arith.mulf %320, %320 : vector<32x128xf32>
    %323 = arith.addf %321, %322 : vector<32x128xf32>
    %324 = math.sqrt %323 : vector<32x128xf32>
    %c1_152 = arith.constant 1 : index
    %c1_153 = arith.constant 1 : index
    %c0_154 = arith.constant 0 : index
    %c0_155 = arith.constant 0 : index
    %325 = vector.load %arg1[%c1_152, %c1_153, %c0_154, %c0_155] : memref<2x3x16x128xf32, #tpu.memory_space<vmem>>, vector<1x1x16x128xf32>
    %326 = vector.shape_cast %325 : vector<1x1x16x128xf32> to vector<16x128xf32>
    %c1_156 = arith.constant 1 : index
    %c1_157 = arith.constant 1 : index
    %c0_158 = arith.constant 0 : index
    %c0_159 = arith.constant 0 : index
    %327 = vector.load %arg2[%c1_156, %c1_157, %c0_158, %c0_159] : memref<2x3x16x128xf32, #tpu.memory_space<vmem>>, vector<1x1x16x128xf32>
    %328 = vector.shape_cast %327 : vector<1x1x16x128xf32> to vector<16x128xf32>
    %329 = tpu.concatenate %326, %328 in 0 : vector<16x128xf32>, vector<16x128xf32> -> vector<32x128xf32>
    %cst_160 = arith.constant 1.000000e+00 : f32
    %330 = vector.broadcast %cst_160 : f32 to vector<32x128xf32>
    %331 = arith.mulf %329, %330 : vector<32x128xf32>
    %c1_i32_161 = arith.constant 1 : i32
    %332 = tpu.dynamic_rotate %329 by %c1_i32_161 dim 1 : vector<32x128xf32>, i32 -> vector<32x128xf32>
    %cst_162 = arith.constant 0.606530666 : f32
    %333 = vector.broadcast %cst_162 : f32 to vector<32x128xf32>
    %334 = arith.mulf %332, %333 : vector<32x128xf32>
    %335 = arith.addf %331, %334 : vector<32x128xf32>
    %c127_i32_163 = arith.constant 127 : i32
    %336 = tpu.dynamic_rotate %329 by %c127_i32_163 dim 1 : vector<32x128xf32>, i32 -> vector<32x128xf32>
    %cst_164 = arith.constant 0.606530666 : f32
    %337 = vector.broadcast %cst_164 : f32 to vector<32x128xf32>
    %338 = arith.mulf %336, %337 : vector<32x128xf32>
    %339 = arith.addf %335, %338 : vector<32x128xf32>
    %c2_i32_165 = arith.constant 2 : i32
    %340 = tpu.dynamic_rotate %329 by %c2_i32_165 dim 1 : vector<32x128xf32>, i32 -> vector<32x128xf32>
    %cst_166 = arith.constant 0.135335281 : f32
    %341 = vector.broadcast %cst_166 : f32 to vector<32x128xf32>
    %342 = arith.mulf %340, %341 : vector<32x128xf32>
    %343 = arith.addf %339, %342 : vector<32x128xf32>
    %c126_i32_167 = arith.constant 126 : i32
    %344 = tpu.dynamic_rotate %329 by %c126_i32_167 dim 1 : vector<32x128xf32>, i32 -> vector<32x128xf32>
    %cst_168 = arith.constant 0.135335281 : f32
    %345 = vector.broadcast %cst_168 : f32 to vector<32x128xf32>
    %346 = arith.mulf %344, %345 : vector<32x128xf32>
    %347 = arith.addf %343, %346 : vector<32x128xf32>
    %cst_169 = arith.constant 1.000000e+00 : f32
    %348 = vector.broadcast %cst_169 : f32 to vector<32x128xf32>
    %349 = arith.mulf %347, %348 : vector<32x128xf32>
    %c1_i32_170 = arith.constant 1 : i32
    %350 = tpu.dynamic_rotate %347 by %c1_i32_170 dim 0 : vector<32x128xf32>, i32 -> vector<32x128xf32>
    %cst_171 = arith.constant 0.606530666 : f32
    %351 = vector.broadcast %cst_171 : f32 to vector<32x128xf32>
    %352 = arith.mulf %350, %351 : vector<32x128xf32>
    %353 = arith.addf %349, %352 : vector<32x128xf32>
    %c31_i32_172 = arith.constant 31 : i32
    %354 = tpu.dynamic_rotate %347 by %c31_i32_172 dim 0 : vector<32x128xf32>, i32 -> vector<32x128xf32>
    %cst_173 = arith.constant 0.606530666 : f32
    %355 = vector.broadcast %cst_173 : f32 to vector<32x128xf32>
    %356 = arith.mulf %354, %355 : vector<32x128xf32>
    %357 = arith.addf %353, %356 : vector<32x128xf32>
    %c2_i32_174 = arith.constant 2 : i32
    %358 = tpu.dynamic_rotate %347 by %c2_i32_174 dim 0 : vector<32x128xf32>, i32 -> vector<32x128xf32>
    %cst_175 = arith.constant 0.135335281 : f32
    %359 = vector.broadcast %cst_175 : f32 to vector<32x128xf32>
    %360 = arith.mulf %358, %359 : vector<32x128xf32>
    %361 = arith.addf %357, %360 : vector<32x128xf32>
    %c30_i32_176 = arith.constant 30 : i32
    %362 = tpu.dynamic_rotate %347 by %c30_i32_176 dim 0 : vector<32x128xf32>, i32 -> vector<32x128xf32>
    %cst_177 = arith.constant 0.135335281 : f32
    %363 = vector.broadcast %cst_177 : f32 to vector<32x128xf32>
    %364 = arith.mulf %362, %363 : vector<32x128xf32>
    %365 = arith.addf %361, %364 : vector<32x128xf32>
    %cst_178 = arith.constant 0.000000e+00 : f32
    %366 = vector.broadcast %cst_178 : f32 to vector<32x128xf32>
    %367 = arith.select %13, %365, %366 : vector<32x128xi1>, vector<32x128xf32>
    %c1_i32_179 = arith.constant 1 : i32
    %368 = tpu.dynamic_rotate %367 by %c1_i32_179 dim 0 : vector<32x128xf32>, i32 -> vector<32x128xf32>
    %c31_i32_180 = arith.constant 31 : i32
    %369 = tpu.dynamic_rotate %367 by %c31_i32_180 dim 0 : vector<32x128xf32>, i32 -> vector<32x128xf32>
    %c1_i32_181 = arith.constant 1 : i32
    %370 = tpu.dynamic_rotate %368 by %c1_i32_181 dim 1 : vector<32x128xf32>, i32 -> vector<32x128xf32>
    %c127_i32_182 = arith.constant 127 : i32
    %371 = tpu.dynamic_rotate %368 by %c127_i32_182 dim 1 : vector<32x128xf32>, i32 -> vector<32x128xf32>
    %c1_i32_183 = arith.constant 1 : i32
    %372 = tpu.dynamic_rotate %367 by %c1_i32_183 dim 1 : vector<32x128xf32>, i32 -> vector<32x128xf32>
    %c127_i32_184 = arith.constant 127 : i32
    %373 = tpu.dynamic_rotate %367 by %c127_i32_184 dim 1 : vector<32x128xf32>, i32 -> vector<32x128xf32>
    %c1_i32_185 = arith.constant 1 : i32
    %374 = tpu.dynamic_rotate %369 by %c1_i32_185 dim 1 : vector<32x128xf32>, i32 -> vector<32x128xf32>
    %c127_i32_186 = arith.constant 127 : i32
    %375 = tpu.dynamic_rotate %369 by %c127_i32_186 dim 1 : vector<32x128xf32>, i32 -> vector<32x128xf32>
    %376 = arith.subf %370, %371 : vector<32x128xf32>
    %cst_187 = arith.constant 2.000000e+00 : f32
    %377 = vector.broadcast %cst_187 : f32 to vector<32x128xf32>
    %378 = arith.mulf %377, %372 : vector<32x128xf32>
    %379 = arith.addf %376, %378 : vector<32x128xf32>
    %cst_188 = arith.constant 2.000000e+00 : f32
    %380 = vector.broadcast %cst_188 : f32 to vector<32x128xf32>
    %381 = arith.mulf %380, %373 : vector<32x128xf32>
    %382 = arith.subf %379, %381 : vector<32x128xf32>
    %383 = arith.addf %382, %374 : vector<32x128xf32>
    %384 = arith.subf %383, %375 : vector<32x128xf32>
    %cst_189 = arith.constant 2.000000e+00 : f32
    %385 = vector.broadcast %cst_189 : f32 to vector<32x128xf32>
    %386 = arith.mulf %385, %368 : vector<32x128xf32>
    %387 = arith.addf %370, %386 : vector<32x128xf32>
    %388 = arith.addf %387, %371 : vector<32x128xf32>
    %389 = arith.subf %388, %374 : vector<32x128xf32>
    %cst_190 = arith.constant 2.000000e+00 : f32
    %390 = vector.broadcast %cst_190 : f32 to vector<32x128xf32>
    %391 = arith.mulf %390, %369 : vector<32x128xf32>
    %392 = arith.subf %389, %391 : vector<32x128xf32>
    %393 = arith.subf %392, %375 : vector<32x128xf32>
    %394 = arith.mulf %384, %384 : vector<32x128xf32>
    %395 = arith.mulf %393, %393 : vector<32x128xf32>
    %396 = arith.addf %394, %395 : vector<32x128xf32>
    %397 = math.sqrt %396 : vector<32x128xf32>
    %398 = arith.addf %324, %397 : vector<32x128xf32>
    %399 = arith.addf %311, %384 : vector<32x128xf32>
    %400 = arith.addf %320, %393 : vector<32x128xf32>
    %c1_191 = arith.constant 1 : index
    %c2_192 = arith.constant 2 : index
    %c0_193 = arith.constant 0 : index
    %c0_194 = arith.constant 0 : index
    %401 = vector.load %arg1[%c1_191, %c2_192, %c0_193, %c0_194] : memref<2x3x16x128xf32, #tpu.memory_space<vmem>>, vector<1x1x16x128xf32>
    %402 = vector.shape_cast %401 : vector<1x1x16x128xf32> to vector<16x128xf32>
    %c1_195 = arith.constant 1 : index
    %c2_196 = arith.constant 2 : index
    %c0_197 = arith.constant 0 : index
    %c0_198 = arith.constant 0 : index
    %403 = vector.load %arg2[%c1_195, %c2_196, %c0_197, %c0_198] : memref<2x3x16x128xf32, #tpu.memory_space<vmem>>, vector<1x1x16x128xf32>
    %404 = vector.shape_cast %403 : vector<1x1x16x128xf32> to vector<16x128xf32>
    %405 = tpu.concatenate %402, %404 in 0 : vector<16x128xf32>, vector<16x128xf32> -> vector<32x128xf32>
    %cst_199 = arith.constant 1.000000e+00 : f32
    %406 = vector.broadcast %cst_199 : f32 to vector<32x128xf32>
    %407 = arith.mulf %405, %406 : vector<32x128xf32>
    %c1_i32_200 = arith.constant 1 : i32
    %408 = tpu.dynamic_rotate %405 by %c1_i32_200 dim 1 : vector<32x128xf32>, i32 -> vector<32x128xf32>
    %cst_201 = arith.constant 0.606530666 : f32
    %409 = vector.broadcast %cst_201 : f32 to vector<32x128xf32>
    %410 = arith.mulf %408, %409 : vector<32x128xf32>
    %411 = arith.addf %407, %410 : vector<32x128xf32>
    %c127_i32_202 = arith.constant 127 : i32
    %412 = tpu.dynamic_rotate %405 by %c127_i32_202 dim 1 : vector<32x128xf32>, i32 -> vector<32x128xf32>
    %cst_203 = arith.constant 0.606530666 : f32
    %413 = vector.broadcast %cst_203 : f32 to vector<32x128xf32>
    %414 = arith.mulf %412, %413 : vector<32x128xf32>
    %415 = arith.addf %411, %414 : vector<32x128xf32>
    %c2_i32_204 = arith.constant 2 : i32
    %416 = tpu.dynamic_rotate %405 by %c2_i32_204 dim 1 : vector<32x128xf32>, i32 -> vector<32x128xf32>
    %cst_205 = arith.constant 0.135335281 : f32
    %417 = vector.broadcast %cst_205 : f32 to vector<32x128xf32>
    %418 = arith.mulf %416, %417 : vector<32x128xf32>
    %419 = arith.addf %415, %418 : vector<32x128xf32>
    %c126_i32_206 = arith.constant 126 : i32
    %420 = tpu.dynamic_rotate %405 by %c126_i32_206 dim 1 : vector<32x128xf32>, i32 -> vector<32x128xf32>
    %cst_207 = arith.constant 0.135335281 : f32
    %421 = vector.broadcast %cst_207 : f32 to vector<32x128xf32>
    %422 = arith.mulf %420, %421 : vector<32x128xf32>
    %423 = arith.addf %419, %422 : vector<32x128xf32>
    %cst_208 = arith.constant 1.000000e+00 : f32
    %424 = vector.broadcast %cst_208 : f32 to vector<32x128xf32>
    %425 = arith.mulf %423, %424 : vector<32x128xf32>
    %c1_i32_209 = arith.constant 1 : i32
    %426 = tpu.dynamic_rotate %423 by %c1_i32_209 dim 0 : vector<32x128xf32>, i32 -> vector<32x128xf32>
    %cst_210 = arith.constant 0.606530666 : f32
    %427 = vector.broadcast %cst_210 : f32 to vector<32x128xf32>
    %428 = arith.mulf %426, %427 : vector<32x128xf32>
    %429 = arith.addf %425, %428 : vector<32x128xf32>
    %c31_i32_211 = arith.constant 31 : i32
    %430 = tpu.dynamic_rotate %423 by %c31_i32_211 dim 0 : vector<32x128xf32>, i32 -> vector<32x128xf32>
    %cst_212 = arith.constant 0.606530666 : f32
    %431 = vector.broadcast %cst_212 : f32 to vector<32x128xf32>
    %432 = arith.mulf %430, %431 : vector<32x128xf32>
    %433 = arith.addf %429, %432 : vector<32x128xf32>
    %c2_i32_213 = arith.constant 2 : i32
    %434 = tpu.dynamic_rotate %423 by %c2_i32_213 dim 0 : vector<32x128xf32>, i32 -> vector<32x128xf32>
    %cst_214 = arith.constant 0.135335281 : f32
    %435 = vector.broadcast %cst_214 : f32 to vector<32x128xf32>
    %436 = arith.mulf %434, %435 : vector<32x128xf32>
    %437 = arith.addf %433, %436 : vector<32x128xf32>
    %c30_i32_215 = arith.constant 30 : i32
    %438 = tpu.dynamic_rotate %423 by %c30_i32_215 dim 0 : vector<32x128xf32>, i32 -> vector<32x128xf32>
    %cst_216 = arith.constant 0.135335281 : f32
    %439 = vector.broadcast %cst_216 : f32 to vector<32x128xf32>
    %440 = arith.mulf %438, %439 : vector<32x128xf32>
    %441 = arith.addf %437, %440 : vector<32x128xf32>
    %cst_217 = arith.constant 0.000000e+00 : f32
    %442 = vector.broadcast %cst_217 : f32 to vector<32x128xf32>
    %443 = arith.select %13, %441, %442 : vector<32x128xi1>, vector<32x128xf32>
    %c1_i32_218 = arith.constant 1 : i32
    %444 = tpu.dynamic_rotate %443 by %c1_i32_218 dim 0 : vector<32x128xf32>, i32 -> vector<32x128xf32>
    %c31_i32_219 = arith.constant 31 : i32
    %445 = tpu.dynamic_rotate %443 by %c31_i32_219 dim 0 : vector<32x128xf32>, i32 -> vector<32x128xf32>
    %c1_i32_220 = arith.constant 1 : i32
    %446 = tpu.dynamic_rotate %444 by %c1_i32_220 dim 1 : vector<32x128xf32>, i32 -> vector<32x128xf32>
    %c127_i32_221 = arith.constant 127 : i32
    %447 = tpu.dynamic_rotate %444 by %c127_i32_221 dim 1 : vector<32x128xf32>, i32 -> vector<32x128xf32>
    %c1_i32_222 = arith.constant 1 : i32
    %448 = tpu.dynamic_rotate %443 by %c1_i32_222 dim 1 : vector<32x128xf32>, i32 -> vector<32x128xf32>
    %c127_i32_223 = arith.constant 127 : i32
    %449 = tpu.dynamic_rotate %443 by %c127_i32_223 dim 1 : vector<32x128xf32>, i32 -> vector<32x128xf32>
    %c1_i32_224 = arith.constant 1 : i32
    %450 = tpu.dynamic_rotate %445 by %c1_i32_224 dim 1 : vector<32x128xf32>, i32 -> vector<32x128xf32>
    %c127_i32_225 = arith.constant 127 : i32
    %451 = tpu.dynamic_rotate %445 by %c127_i32_225 dim 1 : vector<32x128xf32>, i32 -> vector<32x128xf32>
    %452 = arith.subf %446, %447 : vector<32x128xf32>
    %cst_226 = arith.constant 2.000000e+00 : f32
    %453 = vector.broadcast %cst_226 : f32 to vector<32x128xf32>
    %454 = arith.mulf %453, %448 : vector<32x128xf32>
    %455 = arith.addf %452, %454 : vector<32x128xf32>
    %cst_227 = arith.constant 2.000000e+00 : f32
    %456 = vector.broadcast %cst_227 : f32 to vector<32x128xf32>
    %457 = arith.mulf %456, %449 : vector<32x128xf32>
    %458 = arith.subf %455, %457 : vector<32x128xf32>
    %459 = arith.addf %458, %450 : vector<32x128xf32>
    %460 = arith.subf %459, %451 : vector<32x128xf32>
    %cst_228 = arith.constant 2.000000e+00 : f32
    %461 = vector.broadcast %cst_228 : f32 to vector<32x128xf32>
    %462 = arith.mulf %461, %444 : vector<32x128xf32>
    %463 = arith.addf %446, %462 : vector<32x128xf32>
    %464 = arith.addf %463, %447 : vector<32x128xf32>
    %465 = arith.subf %464, %450 : vector<32x128xf32>
    %cst_229 = arith.constant 2.000000e+00 : f32
    %466 = vector.broadcast %cst_229 : f32 to vector<32x128xf32>
    %467 = arith.mulf %466, %445 : vector<32x128xf32>
    %468 = arith.subf %465, %467 : vector<32x128xf32>
    %469 = arith.subf %468, %451 : vector<32x128xf32>
    %470 = arith.mulf %460, %460 : vector<32x128xf32>
    %471 = arith.mulf %469, %469 : vector<32x128xf32>
    %472 = arith.addf %470, %471 : vector<32x128xf32>
    %473 = math.sqrt %472 : vector<32x128xf32>
    %474 = arith.addf %398, %473 : vector<32x128xf32>
    %475 = arith.addf %399, %460 : vector<32x128xf32>
    %476 = arith.addf %400, %469 : vector<32x128xf32>
    %cst_230 = arith.constant 0.000000e+00 : f32
    %477 = vector.broadcast %cst_230 : f32 to vector<32x128xf32>
    %478 = arith.select %13, %474, %477 : vector<32x128xi1>, vector<32x128xf32>
    %479 = math.absf %248 : vector<32x128xf32>
    %480 = math.absf %249 : vector<32x128xf32>
    %cst_231 = arith.constant 0.000000e+00 : f32
    %481 = vector.broadcast %cst_231 : f32 to vector<32x128xf32>
    %482 = arith.cmpf oge, %248, %481 : vector<32x128xf32>
    %cst_232 = arith.constant 0.000000e+00 : f32
    %483 = vector.broadcast %cst_232 : f32 to vector<32x128xf32>
    %484 = arith.cmpf oge, %249, %483 : vector<32x128xf32>
    %c0_i32_233 = arith.constant 0 : i32
    %c4_i32 = arith.constant 4 : i32
    %485 = vector.broadcast %c0_i32_233 : i32 to vector<32x128xi32>
    %486 = vector.broadcast %c4_i32 : i32 to vector<32x128xi32>
    %487 = arith.select %482, %485, %486 : vector<32x128xi1>, vector<32x128xi32>
    %c2_i32_234 = arith.constant 2 : i32
    %c-2_i32 = arith.constant -2 : i32
    %488 = vector.broadcast %c2_i32_234 : i32 to vector<32x128xi32>
    %489 = vector.broadcast %c-2_i32 : i32 to vector<32x128xi32>
    %490 = arith.select %484, %488, %489 : vector<32x128xi1>, vector<32x128xi32>
    %c1_i32_235 = arith.constant 1 : i32
    %c-1_i32 = arith.constant -1 : i32
    %491 = vector.broadcast %c1_i32_235 : i32 to vector<32x128xi32>
    %492 = vector.broadcast %c-1_i32 : i32 to vector<32x128xi32>
    %493 = arith.select %484, %491, %492 : vector<32x128xi1>, vector<32x128xi32>
    %c3_i32 = arith.constant 3 : i32
    %c-3_i32 = arith.constant -3 : i32
    %494 = vector.broadcast %c3_i32 : i32 to vector<32x128xi32>
    %495 = vector.broadcast %c-3_i32 : i32 to vector<32x128xi32>
    %496 = arith.select %484, %494, %495 : vector<32x128xi1>, vector<32x128xi32>
    %497 = arith.select %482, %493, %496 : vector<32x128xi1>, vector<32x128xi32>
    %cst_236 = arith.constant 0.414213568 : f32
    %498 = vector.broadcast %cst_236 : f32 to vector<32x128xf32>
    %499 = arith.mulf %498, %479 : vector<32x128xf32>
    %500 = arith.cmpf ole, %480, %499 : vector<32x128xf32>
    %cst_237 = arith.constant 2.41421366 : f32
    %501 = vector.broadcast %cst_237 : f32 to vector<32x128xf32>
    %502 = arith.mulf %501, %479 : vector<32x128xf32>
    %503 = arith.cmpf oge, %480, %502 : vector<32x128xf32>
    %504 = arith.select %503, %490, %497 : vector<32x128xi1>, vector<32x128xi32>
    %505 = arith.select %500, %487, %504 : vector<32x128xi1>, vector<32x128xi32>
    %c4_i32_238 = arith.constant 4 : i32
    %506 = vector.broadcast %c4_i32_238 : i32 to vector<32x128xi32>
    %507 = arith.addi %505, %506 : vector<32x128xi32>
    %c8_i32_239 = arith.constant 8 : i32
    %c0_i32_240 = arith.constant 0 : i32
    %508 = arith.cmpi eq, %c8_i32_239, %c0_i32_240 : i32
    %c1_i32_241 = arith.constant 1 : i32
    %509 = arith.select %508, %c1_i32_241, %c8_i32_239 : i32
    %510 = vector.broadcast %509 : i32 to vector<32x128xi32>
    %511 = arith.remsi %507, %510 : vector<32x128xi32>
    %c0_i32_242 = arith.constant 0 : i32
    %512 = vector.broadcast %c0_i32_242 : i32 to vector<32x128xi32>
    %513 = arith.cmpi ne, %511, %512 : vector<32x128xi32>
    %c0_i32_243 = arith.constant 0 : i32
    %514 = vector.broadcast %c0_i32_243 : i32 to vector<32x128xi32>
    %515 = arith.cmpi slt, %511, %514 : vector<32x128xi32>
    %c0_i32_244 = arith.constant 0 : i32
    %516 = arith.cmpi slt, %509, %c0_i32_244 : i32
    %517 = vector.broadcast %516 : i1 to vector<32x128xi1>
    %518 = vector.broadcast %517 : vector<32x128xi1> to vector<32x128xi1>
    %519 = arith.xori %515, %518 : vector<32x128xi1>
    %520 = arith.andi %519, %513 : vector<32x128xi1>
    %521 = vector.broadcast %509 : i32 to vector<32x128xi32>
    %522 = arith.addi %511, %521 : vector<32x128xi32>
    %523 = arith.select %520, %522, %511 : vector<32x128xi1>, vector<32x128xi32>
    %c127_i32_245 = arith.constant 127 : i32
    %524 = tpu.dynamic_rotate %251 by %c127_i32_245 dim 1 : vector<32x128xf32>, i32 -> vector<32x128xf32>
    %525 = arith.subf %251, %524 : vector<32x128xf32>
    %c31_i32_246 = arith.constant 31 : i32
    %526 = tpu.dynamic_rotate %251 by %c31_i32_246 dim 0 : vector<32x128xf32>, i32 -> vector<32x128xf32>
    %527 = arith.subf %251, %526 : vector<32x128xf32>
    %c1_i32_247 = arith.constant 1 : i32
    %528 = tpu.dynamic_rotate %251 by %c1_i32_247 dim 1 : vector<32x128xf32>, i32 -> vector<32x128xf32>
    %529 = arith.subf %251, %528 : vector<32x128xf32>
    %c1_i32_248 = arith.constant 1 : i32
    %530 = tpu.dynamic_rotate %251 by %c1_i32_248 dim 0 : vector<32x128xf32>, i32 -> vector<32x128xf32>
    %531 = arith.subf %251, %530 : vector<32x128xf32>
    %c127_i32_249 = arith.constant 127 : i32
    %532 = tpu.dynamic_rotate %478 by %c127_i32_249 dim 1 : vector<32x128xf32>, i32 -> vector<32x128xf32>
    %533 = arith.subf %478, %532 : vector<32x128xf32>
    %c31_i32_250 = arith.constant 31 : i32
    %534 = tpu.dynamic_rotate %478 by %c31_i32_250 dim 0 : vector<32x128xf32>, i32 -> vector<32x128xf32>
    %535 = arith.subf %478, %534 : vector<32x128xf32>
    %c1_i32_251 = arith.constant 1 : i32
    %536 = tpu.dynamic_rotate %478 by %c1_i32_251 dim 1 : vector<32x128xf32>, i32 -> vector<32x128xf32>
    %537 = arith.subf %478, %536 : vector<32x128xf32>
    %c1_i32_252 = arith.constant 1 : i32
    %538 = tpu.dynamic_rotate %478 by %c1_i32_252 dim 0 : vector<32x128xf32>, i32 -> vector<32x128xf32>
    %539 = arith.subf %478, %538 : vector<32x128xf32>
    %cst_253 = arith.constant 0.000000e+00 : f32
    %540 = vector.broadcast %cst_253 : f32 to vector<32x128xf32>
    %cst_254 = arith.constant 0.000000e+00 : f32
    %541 = vector.broadcast %cst_254 : f32 to vector<32x128xf32>
    %c0_i32_255 = arith.constant 0 : i32
    %542 = vector.broadcast %c0_i32_255 : i32 to vector<32x128xi32>
    %543 = arith.cmpi eq, %523, %542 : vector<32x128xi32>
    %544 = arith.select %543, %525, %540 : vector<32x128xi1>, vector<32x128xf32>
    %545 = arith.select %543, %533, %541 : vector<32x128xi1>, vector<32x128xf32>
    %c1_i32_256 = arith.constant 1 : i32
    %546 = vector.broadcast %c1_i32_256 : i32 to vector<32x128xi32>
    %547 = arith.cmpi eq, %523, %546 : vector<32x128xi32>
    %548 = arith.select %547, %527, %544 : vector<32x128xi1>, vector<32x128xf32>
    %549 = arith.select %547, %535, %545 : vector<32x128xi1>, vector<32x128xf32>
    %c2_i32_257 = arith.constant 2 : i32
    %550 = vector.broadcast %c2_i32_257 : i32 to vector<32x128xi32>
    %551 = arith.cmpi eq, %523, %550 : vector<32x128xi32>
    %552 = arith.select %551, %529, %548 : vector<32x128xi1>, vector<32x128xf32>
    %553 = arith.select %551, %537, %549 : vector<32x128xi1>, vector<32x128xf32>
    %c3_i32_258 = arith.constant 3 : i32
    %554 = vector.broadcast %c3_i32_258 : i32 to vector<32x128xi32>
    %555 = arith.cmpi eq, %523, %554 : vector<32x128xi32>
    %556 = arith.select %555, %531, %552 : vector<32x128xi1>, vector<32x128xf32>
    %557 = arith.select %555, %539, %553 : vector<32x128xi1>, vector<32x128xf32>
    %c4_i32_259 = arith.constant 4 : i32
    %558 = vector.broadcast %c4_i32_259 : i32 to vector<32x128xi32>
    %559 = arith.cmpi eq, %523, %558 : vector<32x128xi32>
    %560 = arith.select %559, %533, %556 : vector<32x128xi1>, vector<32x128xf32>
    %561 = arith.select %559, %525, %557 : vector<32x128xi1>, vector<32x128xf32>
    %c5_i32 = arith.constant 5 : i32
    %562 = vector.broadcast %c5_i32 : i32 to vector<32x128xi32>
    %563 = arith.cmpi eq, %523, %562 : vector<32x128xi32>
    %564 = arith.select %563, %535, %560 : vector<32x128xi1>, vector<32x128xf32>
    %565 = arith.select %563, %527, %561 : vector<32x128xi1>, vector<32x128xf32>
    %c6_i32 = arith.constant 6 : i32
    %566 = vector.broadcast %c6_i32 : i32 to vector<32x128xi32>
    %567 = arith.cmpi eq, %523, %566 : vector<32x128xi32>
    %568 = arith.select %567, %537, %564 : vector<32x128xi1>, vector<32x128xf32>
    %569 = arith.select %567, %529, %565 : vector<32x128xi1>, vector<32x128xf32>
    %c7_i32 = arith.constant 7 : i32
    %570 = vector.broadcast %c7_i32 : i32 to vector<32x128xi32>
    %571 = arith.cmpi eq, %523, %570 : vector<32x128xi32>
    %572 = arith.select %571, %539, %568 : vector<32x128xi1>, vector<32x128xf32>
    %573 = arith.select %571, %531, %569 : vector<32x128xi1>, vector<32x128xf32>
    %574 = arith.minimumf %572, %573 : vector<32x128xf32>
    %cst_260 = arith.constant 0.000000e+00 : f32
    %575 = vector.broadcast %cst_260 : f32 to vector<32x128xf32>
    %576 = arith.cmpf ogt, %574, %575 : vector<32x128xf32>
    %cst_261 = arith.constant 0.000000e+00 : f32
    %577 = vector.broadcast %cst_261 : f32 to vector<32x128xf32>
    %578 = arith.select %576, %251, %577 : vector<32x128xi1>, vector<32x128xf32>
    %cst_262 = arith.constant 1.000000e+02 : f32
    %579 = vector.broadcast %cst_262 : f32 to vector<32x128xf32>
    %580 = arith.cmpf ogt, %578, %579 : vector<32x128xf32>
    %cst_263 = arith.constant 1.000000e+01 : f32
    %581 = vector.broadcast %cst_263 : f32 to vector<32x128xf32>
    %582 = arith.cmpf oge, %578, %581 : vector<32x128xf32>
    %cst_264 = arith.constant 1.000000e+02 : f32
    %583 = vector.broadcast %cst_264 : f32 to vector<32x128xf32>
    %584 = arith.cmpf ole, %578, %583 : vector<32x128xf32>
    %585 = arith.andi %582, %584 : vector<32x128xi1>
    %cst_265 = arith.constant 1.000000e+00 : f32
    %cst_266 = arith.constant 0.000000e+00 : f32
    %586 = vector.broadcast %cst_265 : f32 to vector<32x128xf32>
    %587 = vector.broadcast %cst_266 : f32 to vector<32x128xf32>
    %588 = arith.select %580, %586, %587 : vector<32x128xi1>, vector<32x128xf32>
    %c1_i32_267 = arith.constant 1 : i32
    %589 = tpu.dynamic_rotate %588 by %c1_i32_267 dim 0 : vector<32x128xf32>, i32 -> vector<32x128xf32>
    %c31_i32_268 = arith.constant 31 : i32
    %590 = tpu.dynamic_rotate %588 by %c31_i32_268 dim 0 : vector<32x128xf32>, i32 -> vector<32x128xf32>
    %c1_i32_269 = arith.constant 1 : i32
    %591 = tpu.dynamic_rotate %589 by %c1_i32_269 dim 1 : vector<32x128xf32>, i32 -> vector<32x128xf32>
    %592 = arith.addf %591, %589 : vector<32x128xf32>
    %c127_i32_270 = arith.constant 127 : i32
    %593 = tpu.dynamic_rotate %589 by %c127_i32_270 dim 1 : vector<32x128xf32>, i32 -> vector<32x128xf32>
    %594 = arith.addf %592, %593 : vector<32x128xf32>
    %c1_i32_271 = arith.constant 1 : i32
    %595 = tpu.dynamic_rotate %588 by %c1_i32_271 dim 1 : vector<32x128xf32>, i32 -> vector<32x128xf32>
    %596 = arith.addf %594, %595 : vector<32x128xf32>
    %c127_i32_272 = arith.constant 127 : i32
    %597 = tpu.dynamic_rotate %588 by %c127_i32_272 dim 1 : vector<32x128xf32>, i32 -> vector<32x128xf32>
    %598 = arith.addf %596, %597 : vector<32x128xf32>
    %c1_i32_273 = arith.constant 1 : i32
    %599 = tpu.dynamic_rotate %590 by %c1_i32_273 dim 1 : vector<32x128xf32>, i32 -> vector<32x128xf32>
    %600 = arith.addf %598, %599 : vector<32x128xf32>
    %601 = arith.addf %600, %590 : vector<32x128xf32>
    %c127_i32_274 = arith.constant 127 : i32
    %602 = tpu.dynamic_rotate %590 by %c127_i32_274 dim 1 : vector<32x128xf32>, i32 -> vector<32x128xf32>
    %603 = arith.addf %601, %602 : vector<32x128xf32>
    %cst_275 = arith.constant 0.000000e+00 : f32
    %604 = vector.broadcast %cst_275 : f32 to vector<32x128xf32>
    %605 = arith.cmpf ogt, %603, %604 : vector<32x128xf32>
    %606 = arith.andi %585, %605 : vector<32x128xi1>
    %607 = arith.ori %580, %606 : vector<32x128xi1>
    %608 = arith.andi %607, %24 : vector<32x128xi1>
    %cst_276 = arith.constant 0.00392156886 : f32
    %cst_277 = arith.constant 0.000000e+00 : f32
    %609 = vector.broadcast %cst_276 : f32 to vector<32x128xf32>
    %610 = vector.broadcast %cst_277 : f32 to vector<32x128xf32>
    %611 = arith.select %608, %609, %610 : vector<32x128xi1>, vector<32x128xf32>
    %612 = vector.extract_strided_slice %611 {offsets = [8, 0], sizes = [16, 128], strides = [1, 1]} : vector<32x128xf32> to vector<16x128xf32>
    %c0_278 = arith.constant 0 : index
    %c0_279 = arith.constant 0 : index
    %c0_280 = arith.constant 0 : index
    %c0_281 = arith.constant 0 : index
    %613 = vector.load %arg3[%c0_278, %c0_279, %c0_280, %c0_281] : memref<2x1x16x128xf32, #tpu.memory_space<vmem>>, vector<1x1x16x128xf32>
    %614 = vector.shape_cast %613 : vector<1x1x16x128xf32> to vector<16x128xf32>
    %615 = vector.shape_cast %612 : vector<16x128xf32> to vector<1x1x16x128xf32>
    tpu.vector_store %arg3[%c0_278, %c0_279, %c0_280, %c0_281], %615 {strides = array<i32>} : memref<2x1x16x128xf32, #tpu.memory_space<vmem>>, vector<1x1x16x128xf32>,
    %616 = math.absf %475 : vector<32x128xf32>
    %617 = math.absf %476 : vector<32x128xf32>
    %cst_282 = arith.constant 0.000000e+00 : f32
    %618 = vector.broadcast %cst_282 : f32 to vector<32x128xf32>
    %619 = arith.cmpf oge, %475, %618 : vector<32x128xf32>
    %cst_283 = arith.constant 0.000000e+00 : f32
    %620 = vector.broadcast %cst_283 : f32 to vector<32x128xf32>
    %621 = arith.cmpf oge, %476, %620 : vector<32x128xf32>
    %c0_i32_284 = arith.constant 0 : i32
    %c4_i32_285 = arith.constant 4 : i32
    %622 = vector.broadcast %c0_i32_284 : i32 to vector<32x128xi32>
    %623 = vector.broadcast %c4_i32_285 : i32 to vector<32x128xi32>
    %624 = arith.select %619, %622, %623 : vector<32x128xi1>, vector<32x128xi32>
    %c2_i32_286 = arith.constant 2 : i32
    %c-2_i32_287 = arith.constant -2 : i32
    %625 = vector.broadcast %c2_i32_286 : i32 to vector<32x128xi32>
    %626 = vector.broadcast %c-2_i32_287 : i32 to vector<32x128xi32>
    %627 = arith.select %621, %625, %626 : vector<32x128xi1>, vector<32x128xi32>
    %c1_i32_288 = arith.constant 1 : i32
    %c-1_i32_289 = arith.constant -1 : i32
    %628 = vector.broadcast %c1_i32_288 : i32 to vector<32x128xi32>
    %629 = vector.broadcast %c-1_i32_289 : i32 to vector<32x128xi32>
    %630 = arith.select %621, %628, %629 : vector<32x128xi1>, vector<32x128xi32>
    %c3_i32_290 = arith.constant 3 : i32
    %c-3_i32_291 = arith.constant -3 : i32
    %631 = vector.broadcast %c3_i32_290 : i32 to vector<32x128xi32>
    %632 = vector.broadcast %c-3_i32_291 : i32 to vector<32x128xi32>
    %633 = arith.select %621, %631, %632 : vector<32x128xi1>, vector<32x128xi32>
    %634 = arith.select %619, %630, %633 : vector<32x128xi1>, vector<32x128xi32>
    %cst_292 = arith.constant 0.414213568 : f32
    %635 = vector.broadcast %cst_292 : f32 to vector<32x128xf32>
    %636 = arith.mulf %635, %616 : vector<32x128xf32>
    %637 = arith.cmpf ole, %617, %636 : vector<32x128xf32>
    %cst_293 = arith.constant 2.41421366 : f32
    %638 = vector.broadcast %cst_293 : f32 to vector<32x128xf32>
    %639 = arith.mulf %638, %616 : vector<32x128xf32>
    %640 = arith.cmpf oge, %617, %639 : vector<32x128xf32>
    %641 = arith.select %640, %627, %634 : vector<32x128xi1>, vector<32x128xi32>
    %642 = arith.select %637, %624, %641 : vector<32x128xi1>, vector<32x128xi32>
    %c4_i32_294 = arith.constant 4 : i32
    %643 = vector.broadcast %c4_i32_294 : i32 to vector<32x128xi32>
    %644 = arith.addi %642, %643 : vector<32x128xi32>
    %c8_i32_295 = arith.constant 8 : i32
    %c0_i32_296 = arith.constant 0 : i32
    %645 = arith.cmpi eq, %c8_i32_295, %c0_i32_296 : i32
    %c1_i32_297 = arith.constant 1 : i32
    %646 = arith.select %645, %c1_i32_297, %c8_i32_295 : i32
    %647 = vector.broadcast %646 : i32 to vector<32x128xi32>
    %648 = arith.remsi %644, %647 : vector<32x128xi32>
    %c0_i32_298 = arith.constant 0 : i32
    %649 = vector.broadcast %c0_i32_298 : i32 to vector<32x128xi32>
    %650 = arith.cmpi ne, %648, %649 : vector<32x128xi32>
    %c0_i32_299 = arith.constant 0 : i32
    %651 = vector.broadcast %c0_i32_299 : i32 to vector<32x128xi32>
    %652 = arith.cmpi slt, %648, %651 : vector<32x128xi32>
    %c0_i32_300 = arith.constant 0 : i32
    %653 = arith.cmpi slt, %646, %c0_i32_300 : i32
    %654 = vector.broadcast %653 : i1 to vector<32x128xi1>
    %655 = vector.broadcast %654 : vector<32x128xi1> to vector<32x128xi1>
    %656 = arith.xori %652, %655 : vector<32x128xi1>
    %657 = arith.andi %656, %650 : vector<32x128xi1>
    %658 = vector.broadcast %646 : i32 to vector<32x128xi32>
    %659 = arith.addi %648, %658 : vector<32x128xi32>
    %660 = arith.select %657, %659, %648 : vector<32x128xi1>, vector<32x128xi32>
    %c31_i32_301 = arith.constant 31 : i32
    %661 = tpu.dynamic_rotate %251 by %c31_i32_301 dim 0 : vector<32x128xf32>, i32 -> vector<32x128xf32>
    %c127_i32_302 = arith.constant 127 : i32
    %662 = tpu.dynamic_rotate %661 by %c127_i32_302 dim 1 : vector<32x128xf32>, i32 -> vector<32x128xf32>
    %663 = arith.subf %251, %662 : vector<32x128xf32>
    %c31_i32_303 = arith.constant 31 : i32
    %664 = tpu.dynamic_rotate %251 by %c31_i32_303 dim 0 : vector<32x128xf32>, i32 -> vector<32x128xf32>
    %c1_i32_304 = arith.constant 1 : i32
    %665 = tpu.dynamic_rotate %664 by %c1_i32_304 dim 1 : vector<32x128xf32>, i32 -> vector<32x128xf32>
    %666 = arith.subf %251, %665 : vector<32x128xf32>
    %c1_i32_305 = arith.constant 1 : i32
    %667 = tpu.dynamic_rotate %251 by %c1_i32_305 dim 0 : vector<32x128xf32>, i32 -> vector<32x128xf32>
    %c1_i32_306 = arith.constant 1 : i32
    %668 = tpu.dynamic_rotate %667 by %c1_i32_306 dim 1 : vector<32x128xf32>, i32 -> vector<32x128xf32>
    %669 = arith.subf %251, %668 : vector<32x128xf32>
    %c1_i32_307 = arith.constant 1 : i32
    %670 = tpu.dynamic_rotate %251 by %c1_i32_307 dim 0 : vector<32x128xf32>, i32 -> vector<32x128xf32>
    %c127_i32_308 = arith.constant 127 : i32
    %671 = tpu.dynamic_rotate %670 by %c127_i32_308 dim 1 : vector<32x128xf32>, i32 -> vector<32x128xf32>
    %672 = arith.subf %251, %671 : vector<32x128xf32>
    %c31_i32_309 = arith.constant 31 : i32
    %673 = tpu.dynamic_rotate %478 by %c31_i32_309 dim 0 : vector<32x128xf32>, i32 -> vector<32x128xf32>
    %c127_i32_310 = arith.constant 127 : i32
    %674 = tpu.dynamic_rotate %673 by %c127_i32_310 dim 1 : vector<32x128xf32>, i32 -> vector<32x128xf32>
    %675 = arith.subf %478, %674 : vector<32x128xf32>
    %c31_i32_311 = arith.constant 31 : i32
    %676 = tpu.dynamic_rotate %478 by %c31_i32_311 dim 0 : vector<32x128xf32>, i32 -> vector<32x128xf32>
    %c1_i32_312 = arith.constant 1 : i32
    %677 = tpu.dynamic_rotate %676 by %c1_i32_312 dim 1 : vector<32x128xf32>, i32 -> vector<32x128xf32>
    %678 = arith.subf %478, %677 : vector<32x128xf32>
    %c1_i32_313 = arith.constant 1 : i32
    %679 = tpu.dynamic_rotate %478 by %c1_i32_313 dim 0 : vector<32x128xf32>, i32 -> vector<32x128xf32>
    %c1_i32_314 = arith.constant 1 : i32
    %680 = tpu.dynamic_rotate %679 by %c1_i32_314 dim 1 : vector<32x128xf32>, i32 -> vector<32x128xf32>
    %681 = arith.subf %478, %680 : vector<32x128xf32>
    %c1_i32_315 = arith.constant 1 : i32
    %682 = tpu.dynamic_rotate %478 by %c1_i32_315 dim 0 : vector<32x128xf32>, i32 -> vector<32x128xf32>
    %c127_i32_316 = arith.constant 127 : i32
    %683 = tpu.dynamic_rotate %682 by %c127_i32_316 dim 1 : vector<32x128xf32>, i32 -> vector<32x128xf32>
    %684 = arith.subf %478, %683 : vector<32x128xf32>
    %cst_317 = arith.constant 0.000000e+00 : f32
    %685 = vector.broadcast %cst_317 : f32 to vector<32x128xf32>
    %cst_318 = arith.constant 0.000000e+00 : f32
    %686 = vector.broadcast %cst_318 : f32 to vector<32x128xf32>
    %c0_i32_319 = arith.constant 0 : i32
    %687 = vector.broadcast %c0_i32_319 : i32 to vector<32x128xi32>
    %688 = arith.cmpi eq, %660, %687 : vector<32x128xi32>
    %689 = arith.select %688, %663, %685 : vector<32x128xi1>, vector<32x128xf32>
    %690 = arith.select %688, %675, %686 : vector<32x128xi1>, vector<32x128xf32>
    %c1_i32_320 = arith.constant 1 : i32
    %691 = vector.broadcast %c1_i32_320 : i32 to vector<32x128xi32>
    %692 = arith.cmpi eq, %660, %691 : vector<32x128xi32>
    %693 = arith.select %692, %666, %689 : vector<32x128xi1>, vector<32x128xf32>
    %694 = arith.select %692, %678, %690 : vector<32x128xi1>, vector<32x128xf32>
    %c2_i32_321 = arith.constant 2 : i32
    %695 = vector.broadcast %c2_i32_321 : i32 to vector<32x128xi32>
    %696 = arith.cmpi eq, %660, %695 : vector<32x128xi32>
    %697 = arith.select %696, %669, %693 : vector<32x128xi1>, vector<32x128xf32>
    %698 = arith.select %696, %681, %694 : vector<32x128xi1>, vector<32x128xf32>
    %c3_i32_322 = arith.constant 3 : i32
    %699 = vector.broadcast %c3_i32_322 : i32 to vector<32x128xi32>
    %700 = arith.cmpi eq, %660, %699 : vector<32x128xi32>
    %701 = arith.select %700, %672, %697 : vector<32x128xi1>, vector<32x128xf32>
    %702 = arith.select %700, %684, %698 : vector<32x128xi1>, vector<32x128xf32>
    %c4_i32_323 = arith.constant 4 : i32
    %703 = vector.broadcast %c4_i32_323 : i32 to vector<32x128xi32>
    %704 = arith.cmpi eq, %660, %703 : vector<32x128xi32>
    %705 = arith.select %704, %675, %701 : vector<32x128xi1>, vector<32x128xf32>
    %706 = arith.select %704, %663, %702 : vector<32x128xi1>, vector<32x128xf32>
    %c5_i32_324 = arith.constant 5 : i32
    %707 = vector.broadcast %c5_i32_324 : i32 to vector<32x128xi32>
    %708 = arith.cmpi eq, %660, %707 : vector<32x128xi32>
    %709 = arith.select %708, %678, %705 : vector<32x128xi1>, vector<32x128xf32>
    %710 = arith.select %708, %666, %706 : vector<32x128xi1>, vector<32x128xf32>
    %c6_i32_325 = arith.constant 6 : i32
    %711 = vector.broadcast %c6_i32_325 : i32 to vector<32x128xi32>
    %712 = arith.cmpi eq, %660, %711 : vector<32x128xi32>
    %713 = arith.select %712, %681, %709 : vector<32x128xi1>, vector<32x128xf32>
    %714 = arith.select %712, %669, %710 : vector<32x128xi1>, vector<32x128xf32>
    %c7_i32_326 = arith.constant 7 : i32
    %715 = vector.broadcast %c7_i32_326 : i32 to vector<32x128xi32>
    %716 = arith.cmpi eq, %660, %715 : vector<32x128xi32>
    %717 = arith.select %716, %684, %713 : vector<32x128xi1>, vector<32x128xf32>
    %718 = arith.select %716, %672, %714 : vector<32x128xi1>, vector<32x128xf32>
    %719 = arith.minimumf %717, %718 : vector<32x128xf32>
    %cst_327 = arith.constant 0.000000e+00 : f32
    %720 = vector.broadcast %cst_327 : f32 to vector<32x128xf32>
    %721 = arith.cmpf ogt, %719, %720 : vector<32x128xf32>
    %cst_328 = arith.constant 0.000000e+00 : f32
    %722 = vector.broadcast %cst_328 : f32 to vector<32x128xf32>
    %723 = arith.select %721, %478, %722 : vector<32x128xi1>, vector<32x128xf32>
    %cst_329 = arith.constant 1.000000e+02 : f32
    %724 = vector.broadcast %cst_329 : f32 to vector<32x128xf32>
    %725 = arith.cmpf ogt, %723, %724 : vector<32x128xf32>
    %cst_330 = arith.constant 1.000000e+01 : f32
    %726 = vector.broadcast %cst_330 : f32 to vector<32x128xf32>
    %727 = arith.cmpf oge, %723, %726 : vector<32x128xf32>
    %cst_331 = arith.constant 1.000000e+02 : f32
    %728 = vector.broadcast %cst_331 : f32 to vector<32x128xf32>
    %729 = arith.cmpf ole, %723, %728 : vector<32x128xf32>
    %730 = arith.andi %727, %729 : vector<32x128xi1>
    %cst_332 = arith.constant 1.000000e+00 : f32
    %cst_333 = arith.constant 0.000000e+00 : f32
    %731 = vector.broadcast %cst_332 : f32 to vector<32x128xf32>
    %732 = vector.broadcast %cst_333 : f32 to vector<32x128xf32>
    %733 = arith.select %725, %731, %732 : vector<32x128xi1>, vector<32x128xf32>
    %c1_i32_334 = arith.constant 1 : i32
    %734 = tpu.dynamic_rotate %733 by %c1_i32_334 dim 0 : vector<32x128xf32>, i32 -> vector<32x128xf32>
    %c31_i32_335 = arith.constant 31 : i32
    %735 = tpu.dynamic_rotate %733 by %c31_i32_335 dim 0 : vector<32x128xf32>, i32 -> vector<32x128xf32>
    %c1_i32_336 = arith.constant 1 : i32
    %736 = tpu.dynamic_rotate %734 by %c1_i32_336 dim 1 : vector<32x128xf32>, i32 -> vector<32x128xf32>
    %737 = arith.addf %736, %734 : vector<32x128xf32>
    %c127_i32_337 = arith.constant 127 : i32
    %738 = tpu.dynamic_rotate %734 by %c127_i32_337 dim 1 : vector<32x128xf32>, i32 -> vector<32x128xf32>
    %739 = arith.addf %737, %738 : vector<32x128xf32>
    %c1_i32_338 = arith.constant 1 : i32
    %740 = tpu.dynamic_rotate %733 by %c1_i32_338 dim 1 : vector<32x128xf32>, i32 -> vector<32x128xf32>
    %741 = arith.addf %739, %740 : vector<32x128xf32>
    %c127_i32_339 = arith.constant 127 : i32
    %742 = tpu.dynamic_rotate %733 by %c127_i32_339 dim 1 : vector<32x128xf32>, i32 -> vector<32x128xf32>
    %743 = arith.addf %741, %742 : vector<32x128xf32>
    %c1_i32_340 = arith.constant 1 : i32
    %744 = tpu.dynamic_rotate %735 by %c1_i32_340 dim 1 : vector<32x128xf32>, i32 -> vector<32x128xf32>
    %745 = arith.addf %743, %744 : vector<32x128xf32>
    %746 = arith.addf %745, %735 : vector<32x128xf32>
    %c127_i32_341 = arith.constant 127 : i32
    %747 = tpu.dynamic_rotate %735 by %c127_i32_341 dim 1 : vector<32x128xf32>, i32 -> vector<32x128xf32>
    %748 = arith.addf %746, %747 : vector<32x128xf32>
    %cst_342 = arith.constant 0.000000e+00 : f32
    %749 = vector.broadcast %cst_342 : f32 to vector<32x128xf32>
    %750 = arith.cmpf ogt, %748, %749 : vector<32x128xf32>
    %751 = arith.andi %730, %750 : vector<32x128xi1>
    %752 = arith.ori %725, %751 : vector<32x128xi1>
    %753 = arith.andi %752, %24 : vector<32x128xi1>
    %cst_343 = arith.constant 0.00392156886 : f32
    %cst_344 = arith.constant 0.000000e+00 : f32
    %754 = vector.broadcast %cst_343 : f32 to vector<32x128xf32>
    %755 = vector.broadcast %cst_344 : f32 to vector<32x128xf32>
    %756 = arith.select %753, %754, %755 : vector<32x128xi1>, vector<32x128xf32>
    %757 = vector.extract_strided_slice %756 {offsets = [8, 0], sizes = [16, 128], strides = [1, 1]} : vector<32x128xf32> to vector<16x128xf32>
    %c1_345 = arith.constant 1 : index
    %c0_346 = arith.constant 0 : index
    %c0_347 = arith.constant 0 : index
    %c0_348 = arith.constant 0 : index
    %758 = vector.load %arg3[%c1_345, %c0_346, %c0_347, %c0_348] : memref<2x1x16x128xf32, #tpu.memory_space<vmem>>, vector<1x1x16x128xf32>
    %759 = vector.shape_cast %758 : vector<1x1x16x128xf32> to vector<16x128xf32>
    %760 = vector.shape_cast %757 : vector<16x128xf32> to vector<1x1x16x128xf32>
    tpu.vector_store %arg3[%c1_345, %c0_346, %c0_347, %c0_348], %760 {strides = array<i32>} : memref<2x1x16x128xf32, #tpu.memory_space<vmem>>, vector<1x1x16x128xf32>,
    return
  }
  func.func @transform_0(%arg0: i32) -> (i32, i32, i32, i32) {
    %c0_i32 = arith.constant 0 : i32
    %c0_i32_0 = arith.constant 0 : i32
    %c0_i32_1 = arith.constant 0 : i32
    %c0_i32_2 = arith.constant 0 : i32
    return %c0_i32, %c0_i32_0, %arg0, %c0_i32_1 : i32, i32, i32, i32
  }
  func.func @transform_1(%arg0: i32) -> (i32, i32, i32, i32) {
    %c1_i32 = arith.constant 1 : i32
    %0 = arith.addi %arg0, %c1_i32 : i32
    %c1_i32_0 = arith.constant 1 : i32
    %1 = arith.muli %0, %c1_i32_0 : i32
    %c0_i32 = arith.constant 0 : i32
    %c0_i32_1 = arith.constant 0 : i32
    %c0_i32_2 = arith.constant 0 : i32
    %c0_i32_3 = arith.constant 0 : i32
    return %c0_i32, %c0_i32_1, %1, %c0_i32_2 : i32, i32, i32, i32
  }
  func.func @transform_2(%arg0: i32) -> (i32, i32, i32, i32) {
    %c0_i32 = arith.constant 0 : i32
    %c0_i32_0 = arith.constant 0 : i32
    %c0_i32_1 = arith.constant 0 : i32
    %c0_i32_2 = arith.constant 0 : i32
    return %c0_i32, %c0_i32_0, %arg0, %c0_i32_1 : i32, i32, i32, i32
  }
}

</mosaic_0001>

<llo_original>
// kernel: canny_detector.1
$region0: #{canny_detector.1}
  #allocation0 [shape = 'u32[]', space=smem, size = 0x4, offset = 0x4, fixed_abs, tag = 'smem constant byte address 0x4 - core index']
  #allocation1 [shape = 'u32[144,128]{1,0:T(1,128)}', space=vmem, size = 0x12000, scoped, tag = 'internal scratch']
  %s0 = inlined_call_operand.vmem [shape: f32[2,3,32,128], index: 0, kind: input, shape index: {}, may-alias: {0,1}]
  %s1 = inlined_call_operand.vmem [shape: f32[2,3,32,128], index: 1, kind: input, shape index: {}, may-alias: {0,1}]
  %s2 = inlined_call_operand.hbm [shape: f32[2,1,16,128], index: 2, kind: output, shape index: {}]
  %s3 = sld [smem:[#allocation0]]
  $region94: #{canny_detector.1} parent=0
    _
  %s5 = ssub.s32 1, %s3
  %s6 = scalar_select 0, %s5, %s3
  $region1: #{canny_detector.1} parent=0
    #allocation2 [shape = 'u8[49152]{0}', space=vmem, size = 0xc000, scoped, tag = 'input window, operand 0, single buffered']
    #allocation3 [shape = 'u8[49152]{0}', space=vmem, size = 0xc000, scoped, tag = 'input window, operand 1, single buffered']
    #allocation4 [shape = 'u8[16384]{0}', space=vmem, size = 0x4000, scoped, tag = 'output window, operand 0, single buffered']
    #allocation5 [shape = 's32[1]{0}', space=sflag, size = 0x4, scoped, tag = 'scoped memory for canny_detector.1']
    %7 = vsyncpa [#allocation5], 0
    // Predicated region
    $region2: #{canny_detector.1} parent=1 // pred_check
      _
    $region3: #{canny_detector.1} parent=1 // pred_check_branch
      %9 = sbr.rel (0) target = $region5
    $region4: #{canny_detector.1} parent=1 // pred_region
      // Predicated region
      $region6: #{canny_detector.1} parent=4 // pred_check
        _
      $region7: #{canny_detector.1} parent=4 // pred_check_branch
        %11 = sbr.rel (0) target = $region9
      $region8: #{canny_detector.1} parent=4 // pred_region
        // Predicated region
        $region10: #{canny_detector.1} parent=8 // pred_check
          _
        $region11: #{canny_detector.1} parent=8 // pred_check_branch
          %13 = sbr.rel (0) target = $region13
        $region12: #{canny_detector.1} parent=8 // pred_region
          // Predicated region
          $region25: #{canny_detector.1} parent=12 // pred_check
            _
          $region26: #{canny_detector.1} parent=12 // pred_check_branch
            %50 = sbr.rel (0) target = $region28
          $region27: #{canny_detector.1} parent=12 // pred_region
            loop: start=0, step=1, limit=1
            $region29: #{canny_detector.1} parent=27 // loop_pre_header
              _
            $region30: #{canny_detector.1} parent=27 // loop_header
              %s52 = sphi 0, %s56
              %p53 = scmp.ge.s32.totalorder %s52, 1
              %s57 = sphi %s0, %s0
              %s58 = sphi [#allocation2], [#allocation2]
            $region31: #{canny_detector.1} parent=27 // loop_header_branch
              %55 = sbr.rel (%p53) target = $region35
            $region32: #{canny_detector.1} parent=27 // loop_body
              %v59 = vld [vmem:[%s57] sm:$0xff]
              %60 = vst [vmem:[%s58] sm:$0xff] %v59
              %v61 = vld [vmem:[%s57 + $0x8] sm:$0xff]
              %62 = vst [vmem:[%s58 + $0x8] sm:$0xff] %v61
              %v63 = vld [vmem:[%s57 + $0x20] sm:$0xff]
              %64 = vst [vmem:[%s58 + $0x10] sm:$0xff] %v63
              %v65 = vld [vmem:[%s57 + $0x28] sm:$0xff]
              %66 = vst [vmem:[%s58 + $0x18] sm:$0xff] %v65
              %v67 = vld [vmem:[%s57 + $0x40] sm:$0xff]
              %68 = vst [vmem:[%s58 + $0x20] sm:$0xff] %v67
              %v69 = vld [vmem:[%s57 + $0x48] sm:$0xff]
              %70 = vst [vmem:[%s58 + $0x28] sm:$0xff] %v69
              %v71 = vld [vmem:[%s57 + $0x60] sm:$0xff]
              %72 = vst [vmem:[%s58 + $0x30] sm:$0xff] %v71
              %v73 = vld [vmem:[%s57 + $0x68] sm:$0xff]
              %74 = vst [vmem:[%s58 + $0x38] sm:$0xff] %v73
              %v75 = vld [vmem:[%s57 + $0x80] sm:$0xff]
              %76 = vst [vmem:[%s58 + $0x40] sm:$0xff] %v75
              %v77 = vld [vmem:[%s57 + $0x88] sm:$0xff]
              %78 = vst [vmem:[%s58 + $0x48] sm:$0xff] %v77
              %v79 = vld [vmem:[%s57 + $0xa0] sm:$0xff]
              %80 = vst [vmem:[%s58 + $0x50] sm:$0xff] %v79
              %v81 = vld [vmem:[%s57 + $0xa8] sm:$0xff]
              %82 = vst [vmem:[%s58 + $0x58] sm:$0xff] %v81
            $region33: #{canny_detector.1} parent=27 // loop_footer
              %s56 = sadd.s32 1, %s52
            $region34: #{canny_detector.1} parent=27 // loop_footer_branch
              %51 = sbr.rel target = $region30
            $region35: #{canny_detector.1} parent=27 // loop_exit
              _
          $region28: #{canny_detector.1} parent=12 // pred_fallthru
            _
          // Predicated region
          $region36: #{canny_detector.1} parent=12 // pred_check
            _
          $region37: #{canny_detector.1} parent=12 // pred_check_branch
            %84 = sbr.rel target = $region39
          $region38: #{canny_detector.1} parent=12 // pred_region
            _
          $region39: #{canny_detector.1} parent=12 // pred_fallthru
            _
        $region13: #{canny_detector.1} parent=8 // pred_fallthru
          _
        // Predicated region
        $region14: #{canny_detector.1} parent=8 // pred_check
          _
        $region15: #{canny_detector.1} parent=8 // pred_check_branch
          %15 = sbr.rel target = $region17
        $region16: #{canny_detector.1} parent=8 // pred_region
          loop: start=0, step=1, limit=1
          $region18: #{canny_detector.1} parent=16 // loop_pre_header
            _
          $region19: #{canny_detector.1} parent=16 // loop_header
            %s18 = sphi 0, %s22
            %p19 = scmp.ge.s32.totalorder %s18, 1
            %s23 = sphi %s0, %s0
            %s24 = sphi [#allocation2], [#allocation2]
          $region20: #{canny_detector.1} parent=16 // loop_header_branch
            %21 = sbr.rel (%p19) target = $region24
          $region21: #{canny_detector.1} parent=16 // loop_body
            %v25 = vld [vmem:[%s23] sm:$0xff]
            %26 = vst [vmem:[%s24] sm:$0xff] %v25
            %v27 = vld [vmem:[%s23 + $0x8] sm:$0xff]
            %28 = vst [vmem:[%s24 + $0x8] sm:$0xff] %v27
            %v29 = vld [vmem:[%s23 + $0x20] sm:$0xff]
            %30 = vst [vmem:[%s24 + $0x10] sm:$0xff] %v29
            %v31 = vld [vmem:[%s23 + $0x28] sm:$0xff]
            %32 = vst [vmem:[%s24 + $0x18] sm:$0xff] %v31
            %v33 = vld [vmem:[%s23 + $0x40] sm:$0xff]
            %34 = vst [vmem:[%s24 + $0x20] sm:$0xff] %v33
            %v35 = vld [vmem:[%s23 + $0x48] sm:$0xff]
            %36 = vst [vmem:[%s24 + $0x28] sm:$0xff] %v35
            %v37 = vld [vmem:[%s23 + $0x60] sm:$0xff]
            %38 = vst [vmem:[%s24 + $0x30] sm:$0xff] %v37
            %v39 = vld [vmem:[%s23 + $0x68] sm:$0xff]
            %40 = vst [vmem:[%s24 + $0x38] sm:$0xff] %v39
            %v41 = vld [vmem:[%s23 + $0x80] sm:$0xff]
            %42 = vst [vmem:[%s24 + $0x40] sm:$0xff] %v41
            %v43 = vld [vmem:[%s23 + $0x88] sm:$0xff]
            %44 = vst [vmem:[%s24 + $0x48] sm:$0xff] %v43
            %v45 = vld [vmem:[%s23 + $0xa0] sm:$0xff]
            %46 = vst [vmem:[%s24 + $0x50] sm:$0xff] %v45
            %v47 = vld [vmem:[%s23 + $0xa8] sm:$0xff]
            %48 = vst [vmem:[%s24 + $0x58] sm:$0xff] %v47
          $region22: #{canny_detector.1} parent=16 // loop_footer
            %s22 = sadd.s32 1, %s18
          $region23: #{canny_detector.1} parent=16 // loop_footer_branch
            %17 = sbr.rel target = $region19
          $region24: #{canny_detector.1} parent=16 // loop_exit
            _
        $region17: #{canny_detector.1} parent=8 // pred_fallthru
          _
      $region9: #{canny_detector.1} parent=4 // pred_fallthru
        _
      %85 = vnop
    $region5: #{canny_detector.1} parent=1 // pred_fallthru
      _
    // Predicated region
    $region40: #{canny_detector.1} parent=1 // pred_check
      _
    $region41: #{canny_detector.1} parent=1 // pred_check_branch
      %87 = sbr.rel (0) target = $region43
    $region42: #{canny_detector.1} parent=1 // pred_region
      %s88 = sadd.s32 0, 1
      %s89 = smul.u32 2, %s88
      %s90 = smul.addr %s89, 8
      %s91 = scalar_lea.vmem %s1, %s90
      // Predicated region
      $region44: #{canny_detector.1} parent=42 // pred_check
        _
      $region45: #{canny_detector.1} parent=42 // pred_check_branch
        %93 = sbr.rel (0) target = $region47
      $region46: #{canny_detector.1} parent=42 // pred_region
        // Predicated region
        $region48: #{canny_detector.1} parent=46 // pred_check
          _
        $region49: #{canny_detector.1} parent=46 // pred_check_branch
          %95 = sbr.rel (0) target = $region51
        $region50: #{canny_detector.1} parent=46 // pred_region
          // Predicated region
          $region63: #{canny_detector.1} parent=50 // pred_check
            _
          $region64: #{canny_detector.1} parent=50 // pred_check_branch
            %132 = sbr.rel (0) target = $region66
          $region65: #{canny_detector.1} parent=50 // pred_region
            loop: start=0, step=1, limit=1
            $region67: #{canny_detector.1} parent=65 // loop_pre_header
              _
            $region68: #{canny_detector.1} parent=65 // loop_header
              %s134 = sphi 0, %s138
              %p135 = scmp.ge.s32.totalorder %s134, 1
              %s139 = sphi %s91, %s91
              %s140 = sphi [#allocation3], [#allocation3]
            $region69: #{canny_detector.1} parent=65 // loop_header_branch
              %137 = sbr.rel (%p135) target = $region73
            $region70: #{canny_detector.1} parent=65 // loop_body
              %v141 = vld [vmem:[%s139] sm:$0xff]
              %142 = vst [vmem:[%s140] sm:$0xff] %v141
              %v143 = vld [vmem:[%s139 + $0x8] sm:$0xff]
              %144 = vst [vmem:[%s140 + $0x8] sm:$0xff] %v143
              %v145 = vld [vmem:[%s139 + $0x20] sm:$0xff]
              %146 = vst [vmem:[%s140 + $0x10] sm:$0xff] %v145
              %v147 = vld [vmem:[%s139 + $0x28] sm:$0xff]
              %148 = vst [vmem:[%s140 + $0x18] sm:$0xff] %v147
              %v149 = vld [vmem:[%s139 + $0x40] sm:$0xff]
              %150 = vst [vmem:[%s140 + $0x20] sm:$0xff] %v149
              %v151 = vld [vmem:[%s139 + $0x48] sm:$0xff]
              %152 = vst [vmem:[%s140 + $0x28] sm:$0xff] %v151
              %v153 = vld [vmem:[%s139 + $0x60] sm:$0xff]
              %154 = vst [vmem:[%s140 + $0x30] sm:$0xff] %v153
              %v155 = vld [vmem:[%s139 + $0x68] sm:$0xff]
              %156 = vst [vmem:[%s140 + $0x38] sm:$0xff] %v155
              %v157 = vld [vmem:[%s139 + $0x80] sm:$0xff]
              %158 = vst [vmem:[%s140 + $0x40] sm:$0xff] %v157
              %v159 = vld [vmem:[%s139 + $0x88] sm:$0xff]
              %160 = vst [vmem:[%s140 + $0x48] sm:$0xff] %v159
              %v161 = vld [vmem:[%s139 + $0xa0] sm:$0xff]
              %162 = vst [vmem:[%s140 + $0x50] sm:$0xff] %v161
              %v163 = vld [vmem:[%s139 + $0xa8] sm:$0xff]
              %164 = vst [vmem:[%s140 + $0x58] sm:$0xff] %v163
            $region71: #{canny_detector.1} parent=65 // loop_footer
              %s138 = sadd.s32 1, %s134
            $region72: #{canny_detector.1} parent=65 // loop_footer_branch
              %133 = sbr.rel target = $region68
            $region73: #{canny_detector.1} parent=65 // loop_exit
              _
          $region66: #{canny_detector.1} parent=50 // pred_fallthru
            _
          // Predicated region
          $region74: #{canny_detector.1} parent=50 // pred_check
            _
          $region75: #{canny_detector.1} parent=50 // pred_check_branch
            %166 = sbr.rel target = $region77
          $region76: #{canny_detector.1} parent=50 // pred_region
            _
          $region77: #{canny_detector.1} parent=50 // pred_fallthru
            _
        $region51: #{canny_detector.1} parent=46 // pred_fallthru
          _
        // Predicated region
        $region52: #{canny_detector.1} parent=46 // pred_check
          _
        $region53: #{canny_detector.1} parent=46 // pred_check_branch
          %97 = sbr.rel target = $region55
        $region54: #{canny_detector.1} parent=46 // pred_region
          loop: start=0, step=1, limit=1
          $region56: #{canny_detector.1} parent=54 // loop_pre_header
            _
          $region57: #{canny_detector.1} parent=54 // loop_header
            %s100 = sphi 0, %s104
            %p101 = scmp.ge.s32.totalorder %s100, 1
            %s105 = sphi %s91, %s91
            %s106 = sphi [#allocation3], [#allocation3]
          $region58: #{canny_detector.1} parent=54 // loop_header_branch
            %103 = sbr.rel (%p101) target = $region62
          $region59: #{canny_detector.1} parent=54 // loop_body
            %v107 = vld [vmem:[%s105] sm:$0xff]
            %108 = vst [vmem:[%s106] sm:$0xff] %v107
            %v109 = vld [vmem:[%s105 + $0x8] sm:$0xff]
            %110 = vst [vmem:[%s106 + $0x8] sm:$0xff] %v109
            %v111 = vld [vmem:[%s105 + $0x20] sm:$0xff]
            %112 = vst [vmem:[%s106 + $0x10] sm:$0xff] %v111
            %v113 = vld [vmem:[%s105 + $0x28] sm:$0xff]
            %114 = vst [vmem:[%s106 + $0x18] sm:$0xff] %v113
            %v115 = vld [vmem:[%s105 + $0x40] sm:$0xff]
            %116 = vst [vmem:[%s106 + $0x20] sm:$0xff] %v115
            %v117 = vld [vmem:[%s105 + $0x48] sm:$0xff]
            %118 = vst [vmem:[%s106 + $0x28] sm:$0xff] %v117
            %v119 = vld [vmem:[%s105 + $0x60] sm:$0xff]
            %120 = vst [vmem:[%s106 + $0x30] sm:$0xff] %v119
            %v121 = vld [vmem:[%s105 + $0x68] sm:$0xff]
            %122 = vst [vmem:[%s106 + $0x38] sm:$0xff] %v121
            %v123 = vld [vmem:[%s105 + $0x80] sm:$0xff]
            %124 = vst [vmem:[%s106 + $0x40] sm:$0xff] %v123
            %v125 = vld [vmem:[%s105 + $0x88] sm:$0xff]
            %126 = vst [vmem:[%s106 + $0x48] sm:$0xff] %v125
            %v127 = vld [vmem:[%s105 + $0xa0] sm:$0xff]
            %128 = vst [vmem:[%s106 + $0x50] sm:$0xff] %v127
            %v129 = vld [vmem:[%s105 + $0xa8] sm:$0xff]
            %130 = vst [vmem:[%s106 + $0x58] sm:$0xff] %v129
          $region60: #{canny_detector.1} parent=54 // loop_footer
            %s104 = sadd.s32 1, %s100
          $region61: #{canny_detector.1} parent=54 // loop_footer_branch
            %99 = sbr.rel target = $region57
          $region62: #{canny_detector.1} parent=54 // loop_exit
            _
        $region55: #{canny_detector.1} parent=46 // pred_fallthru
          _
      $region47: #{canny_detector.1} parent=42 // pred_fallthru
        _
      %167 = vnop
    $region43: #{canny_detector.1} parent=1 // pred_fallthru
      _
    // Predicated region
    $region78: #{canny_detector.1} parent=1 // pred_check
      _
    $region79: #{canny_detector.1} parent=1 // pred_check_branch
      %169 = sbr.rel (0) target = $region81
    $region80: #{canny_detector.1} parent=1 // pred_region
      _
    $region81: #{canny_detector.1} parent=1 // pred_fallthru
      _
    // Predicated region
    $region82: #{canny_detector.1} parent=1 // pred_check
      _
    $region83: #{canny_detector.1} parent=1 // pred_check_branch
      %171 = sbr.rel (0) target = $region85
    $region84: #{canny_detector.1} parent=1 // pred_region
      _
    $region85: #{canny_detector.1} parent=1 // pred_fallthru
      _
    %s172 = sadd.s32 0, 1
    %s173 = smul.u32 2, %s172
    %v174 = vlaneseq
    %v175 = vshrl.u32 %v174, 7
    %v176 = vadd.s32 %v175, 8
    %v177 = vadd.s32 %v175, 16
    %v178 = vadd.s32 %v175, 24
    %s179 = smul.u32 0, 16
    %s180 = ssub.s32 %s179, 8
    %v181 = vstv %s180
    %v182 = vadd.s32 %v175, %v181
    %v183 = vadd.s32 %v176, %v181
    %v184 = vadd.s32 %v177, %v181
    %v185 = vadd.s32 %v178, %v181
    %v186 = vlaneseq
    %v187 = vand.u32 %v186, 127
    %vm188 = vcmp.ge.s32.totalorder %v182, 0
    %vm189 = vcmp.ge.s32.totalorder %v183, 0
    %vm190 = vcmp.ge.s32.totalorder %v184, 0
    %vm191 = vcmp.ge.s32.totalorder %v185, 0
    %vm192 = vcmp.lt.s32.totalorder %v182, 16
    %vm193 = vcmp.lt.s32.totalorder %v183, 16
    %vm194 = vcmp.lt.s32.totalorder %v184, 16
    %vm195 = vcmp.lt.s32.totalorder %v185, 16
    %vm196 = vmand %vm188, %vm192
    %vm197 = vmand %vm189, %vm193
    %vm198 = vmand %vm190, %vm194
    %vm199 = vmand %vm191, %vm195
    %vm200 = vcmp.lt.s32.totalorder %v187, 16
    %vm201 = vmand %vm196, %vm200
    %vm202 = vmand %vm197, %vm200
    %vm203 = vmand %vm198, %vm200
    %vm204 = vmand %vm199, %vm200
    %vm205 = vcmp.ge.s32.totalorder %v183, 1
    %vm206 = vcmp.ge.s32.totalorder %v184, 1
    %vm207 = vcmp.le.s32.totalorder %v183, 14
    %vm208 = vcmp.le.s32.totalorder %v184, 14
    %vm209 = vmand %vm205, %vm207
    %vm210 = vmand %vm206, %vm208
    %vm211 = vcmp.ge.s32.totalorder %v187, 1
    %vm212 = vmand %vm209, %vm211
    %vm213 = vmand %vm210, %vm211
    %vm214 = vcmp.le.s32.totalorder %v187, 14
    %vm215 = vmand %vm212, %vm214
    %vm216 = vmand %vm213, %vm214
    %v217 = vld [vmem:[#allocation2] sm:$0xff]
    %v218 = vld [vmem:[#allocation2 + $0x8] sm:$0xff]
    %v219 = vld [vmem:[#allocation3] sm:$0xff]
    %v220 = vld [vmem:[#allocation3 + $0x8] sm:$0xff]
    %221 = vrot.lane.b32.xlu0 %v217, 1
    %v222 = vpop.permute.xlu0 %221
    %223 = vrot.lane.b32.xlu0 %v218, 1
    %v224 = vpop.permute.xlu0 %223
    %225 = vrot.lane.b32.xlu0 %v219, 1
    %v226 = vpop.permute.xlu0 %225
    %227 = vrot.lane.b32.xlu0 %v220, 1
    %v228 = vpop.permute.xlu0 %227
    %v229 = vmul.f32 %v222, 0.60653067
    %v230 = vmul.f32 %v224, 0.60653067
    %v231 = vmul.f32 %v226, 0.60653067
    %v232 = vmul.f32 %v228, 0.60653067
    %v233 = vadd.f32 %v217, %v229
    %v234 = vadd.f32 %v218, %v230
    %v235 = vadd.f32 %v219, %v231
    %v236 = vadd.f32 %v220, %v232
    %237 = vrot.lane.b32.xlu0 %v217, 127
    %v238 = vpop.permute.xlu0 %237
    %239 = vrot.lane.b32.xlu0 %v218, 127
    %v240 = vpop.permute.xlu0 %239
    %241 = vrot.lane.b32.xlu0 %v219, 127
    %v242 = vpop.permute.xlu0 %241
    %243 = vrot.lane.b32.xlu0 %v220, 127
    %v244 = vpop.permute.xlu0 %243
    %v245 = vmul.f32 %v238, 0.60653067
    %v246 = vmul.f32 %v240, 0.60653067
    %v247 = vmul.f32 %v242, 0.60653067
    %v248 = vmul.f32 %v244, 0.60653067
    %v249 = vadd.f32 %v233, %v245
    %v250 = vadd.f32 %v234, %v246
    %v251 = vadd.f32 %v235, %v247
    %v252 = vadd.f32 %v236, %v248
    %253 = vrot.lane.b32.xlu0 %v217, 2
    %v254 = vpop.permute.xlu0 %253
    %255 = vrot.lane.b32.xlu0 %v218, 2
    %v256 = vpop.permute.xlu0 %255
    %257 = vrot.lane.b32.xlu0 %v219, 2
    %v258 = vpop.permute.xlu0 %257
    %259 = vrot.lane.b32.xlu0 %v220, 2
    %v260 = vpop.permute.xlu0 %259
    %v261 = vmul.f32 %v254, 0.13533528
    %v262 = vmul.f32 %v256, 0.13533528
    %v263 = vmul.f32 %v258, 0.13533528
    %v264 = vmul.f32 %v260, 0.13533528
    %v265 = vadd.f32 %v249, %v261
    %v266 = vadd.f32 %v250, %v262
    %v267 = vadd.f32 %v251, %v263
    %v268 = vadd.f32 %v252, %v264
    %269 = vrot.lane.b32.xlu0 %v217, 126
    %v270 = vpop.permute.xlu0 %269
    %271 = vrot.lane.b32.xlu0 %v218, 126
    %v272 = vpop.permute.xlu0 %271
    %273 = vrot.lane.b32.xlu0 %v219, 126
    %v274 = vpop.permute.xlu0 %273
    %275 = vrot.lane.b32.xlu0 %v220, 126
    %v276 = vpop.permute.xlu0 %275
    %v277 = vmul.f32 %v270, 0.13533528
    %v278 = vmul.f32 %v272, 0.13533528
    %v279 = vmul.f32 %v274, 0.13533528
    %v280 = vmul.f32 %v276, 0.13533528
    %v281 = vadd.f32 %v265, %v277
    %v282 = vadd.f32 %v266, %v278
    %v283 = vadd.f32 %v267, %v279
    %v284 = vadd.f32 %v268, %v280
    %v285 = vrot.slane %v281, 7
    %v286 = vrot.slane %v282, 7
    %v287 = vrot.slane %v283, 7
    %v288 = vrot.slane %v284, 7
    %vm289 = vcmp.lt.s32.totalorder %v175, 1
    %v290 = vsel %vm289, %v287, %v288
    %v291 = vsel %vm289, %v286, %v287
    %v292 = vsel %vm289, %v285, %v286
    %v293 = vsel %vm289, %v288, %v285
    %v294 = vmul.f32 %v293, 0.60653067
    %v295 = vmul.f32 %v292, 0.60653067
    %v296 = vmul.f32 %v291, 0.60653067
    %v297 = vmul.f32 %v290, 0.60653067
    %v298 = vadd.f32 %v281, %v294
    %v299 = vadd.f32 %v282, %v295
    %v300 = vadd.f32 %v283, %v296
    %v301 = vadd.f32 %v284, %v297
    %v302 = vrot.slane %v281, 1
    %v303 = vrot.slane %v282, 1
    %v304 = vrot.slane %v283, 1
    %v305 = vrot.slane %v284, 1
    %vm306 = vcmp.lt.s32.totalorder %v175, 7
    %v307 = vsel %vm306, %v304, %v305
    %v308 = vsel %vm306, %v303, %v304
    %v309 = vsel %vm306, %v302, %v303
    %v310 = vsel %vm306, %v305, %v302
    %v311 = vmul.f32 %v309, 0.60653067
    %v312 = vmul.f32 %v308, 0.60653067
    %v313 = vmul.f32 %v307, 0.60653067
    %v314 = vmul.f32 %v310, 0.60653067
    %v315 = vadd.f32 %v298, %v311
    %v316 = vadd.f32 %v299, %v312
    %v317 = vadd.f32 %v300, %v313
    %v318 = vadd.f32 %v301, %v314
    %v319 = vrot.slane %v281, 6
    %v320 = vrot.slane %v282, 6
    %v321 = vrot.slane %v283, 6
    %v322 = vrot.slane %v284, 6
    %vm323 = vcmp.lt.s32.totalorder %v175, 2
    %v324 = vsel %vm323, %v321, %v322
    %v325 = vsel %vm323, %v320, %v321
    %v326 = vsel %vm323, %v319, %v320
    %v327 = vsel %vm323, %v322, %v319
    %v328 = vmul.f32 %v327, 0.13533528
    %v329 = vmul.f32 %v326, 0.13533528
    %v330 = vmul.f32 %v325, 0.13533528
    %v331 = vmul.f32 %v324, 0.13533528
    %v332 = vadd.f32 %v315, %v328
    %v333 = vadd.f32 %v316, %v329
    %v334 = vadd.f32 %v317, %v330
    %v335 = vadd.f32 %v318, %v331
    %v336 = vrot.slane %v281, 2
    %v337 = vrot.slane %v282, 2
    %v338 = vrot.slane %v283, 2
    %v339 = vrot.slane %v284, 2
    %vm340 = vcmp.lt.s32.totalorder %v175, 6
    %v341 = vsel %vm340, %v338, %v339
    %v342 = vsel %vm340, %v337, %v338
    %v343 = vsel %vm340, %v336, %v337
    %v344 = vsel %vm340, %v339, %v336
    %v345 = vmul.f32 %v343, 0.13533528
    %v346 = vmul.f32 %v342, 0.13533528
    %v347 = vmul.f32 %v341, 0.13533528
    %v348 = vmul.f32 %v344, 0.13533528
    %v349 = vadd.f32 %v332, %v345
    %v350 = vadd.f32 %v333, %v346
    %v351 = vadd.f32 %v334, %v347
    %v352 = vadd.f32 %v335, %v348
    %v353 = vsel %vm201, %v349, 0.0
    %v354 = vsel %vm202, %v350, 0.0
    %v355 = vsel %vm203, %v351, 0.0
    %v356 = vsel %vm204, %v352, 0.0
    %v357 = vrot.slane %v353, 7
    %v358 = vrot.slane %v354, 7
    %v359 = vrot.slane %v355, 7
    %v360 = vrot.slane %v356, 7
    %v361 = vsel %vm289, %v359, %v360
    %v362 = vsel %vm289, %v358, %v359
    %v363 = vsel %vm289, %v357, %v358
    %v364 = vsel %vm289, %v360, %v357
    %v365 = vrot.slane %v353, 1
    %v366 = vrot.slane %v354, 1
    %v367 = vrot.slane %v355, 1
    %v368 = vrot.slane %v356, 1
    %v369 = vsel %vm306, %v367, %v368
    %v370 = vsel %vm306, %v366, %v367
    %v371 = vsel %vm306, %v365, %v366
    %v372 = vsel %vm306, %v368, %v365
    %373 = vrot.lane.b32.xlu0 %v364, 1
    %v374 = vpop.permute.xlu0 %373
    %375 = vrot.lane.b32.xlu0 %v363, 1
    %v376 = vpop.permute.xlu0 %375
    %377 = vrot.lane.b32.xlu0 %v362, 1
    %v378 = vpop.permute.xlu0 %377
    %379 = vrot.lane.b32.xlu0 %v361, 1
    %v380 = vpop.permute.xlu0 %379
    %381 = vrot.lane.b32.xlu0 %v364, 127
    %v382 = vpop.permute.xlu0 %381
    %383 = vrot.lane.b32.xlu0 %v363, 127
    %v384 = vpop.permute.xlu0 %383
    %385 = vrot.lane.b32.xlu0 %v362, 127
    %v386 = vpop.permute.xlu0 %385
    %387 = vrot.lane.b32.xlu0 %v361, 127
    %v388 = vpop.permute.xlu0 %387
    %389 = vrot.lane.b32.xlu0 %v353, 1
    %v390 = vpop.permute.xlu0 %389
    %391 = vrot.lane.b32.xlu0 %v354, 1
    %v392 = vpop.permute.xlu0 %391
    %393 = vrot.lane.b32.xlu0 %v355, 1
    %v394 = vpop.permute.xlu0 %393
    %395 = vrot.lane.b32.xlu0 %v356, 1
    %v396 = vpop.permute.xlu0 %395
    %397 = vrot.lane.b32.xlu0 %v353, 127
    %v398 = vpop.permute.xlu0 %397
    %399 = vrot.lane.b32.xlu0 %v354, 127
    %v400 = vpop.permute.xlu0 %399
    %401 = vrot.lane.b32.xlu0 %v355, 127
    %v402 = vpop.permute.xlu0 %401
    %403 = vrot.lane.b32.xlu0 %v356, 127
    %v404 = vpop.permute.xlu0 %403
    %405 = vrot.lane.b32.xlu0 %v371, 1
    %v406 = vpop.permute.xlu0 %405
    %407 = vrot.lane.b32.xlu0 %v370, 1
    %v408 = vpop.permute.xlu0 %407
    %409 = vrot.lane.b32.xlu0 %v369, 1
    %v410 = vpop.permute.xlu0 %409
    %411 = vrot.lane.b32.xlu0 %v372, 1
    %v412 = vpop.permute.xlu0 %411
    %413 = vrot.lane.b32.xlu0 %v371, 127
    %v414 = vpop.permute.xlu0 %413
    %415 = vrot.lane.b32.xlu0 %v370, 127
    %v416 = vpop.permute.xlu0 %415
    %417 = vrot.lane.b32.xlu0 %v369, 127
    %v418 = vpop.permute.xlu0 %417
    %419 = vrot.lane.b32.xlu0 %v372, 127
    %v420 = vpop.permute.xlu0 %419
    %v421 = vsub.f32 %v374, %v382
    %v422 = vsub.f32 %v376, %v384
    %v423 = vsub.f32 %v378, %v386
    %v424 = vsub.f32 %v380, %v388
    %v425 = vmul.f32 %v390, 2.0
    %v426 = vmul.f32 %v392, 2.0
    %v427 = vmul.f32 %v394, 2.0
    %v428 = vmul.f32 %v396, 2.0
    %v429 = vadd.f32 %v421, %v425
    %v430 = vadd.f32 %v422, %v426
    %v431 = vadd.f32 %v423, %v427
    %v432 = vadd.f32 %v424, %v428
    %v433 = vmul.f32 %v398, 2.0
    %v434 = vmul.f32 %v400, 2.0
    %v435 = vmul.f32 %v402, 2.0
    %v436 = vmul.f32 %v404, 2.0
    %v437 = vsub.f32 %v429, %v433
    %v438 = vsub.f32 %v430, %v434
    %v439 = vsub.f32 %v431, %v435
    %v440 = vsub.f32 %v432, %v436
    %v441 = vadd.f32 %v437, %v406
    %v442 = vadd.f32 %v438, %v408
    %v443 = vadd.f32 %v439, %v410
    %v444 = vadd.f32 %v440, %v412
    %v445 = vsub.f32 %v441, %v414
    %v446 = vsub.f32 %v442, %v416
    %v447 = vsub.f32 %v443, %v418
    %v448 = vsub.f32 %v444, %v420
    %v449 = vmul.f32 %v364, 2.0
    %v450 = vmul.f32 %v363, 2.0
    %v451 = vmul.f32 %v362, 2.0
    %v452 = vmul.f32 %v361, 2.0
    %v453 = vadd.f32 %v374, %v449
    %v454 = vadd.f32 %v376, %v450
    %v455 = vadd.f32 %v378, %v451
    %v456 = vadd.f32 %v380, %v452
    %v457 = vadd.f32 %v453, %v382
    %v458 = vadd.f32 %v454, %v384
    %v459 = vadd.f32 %v455, %v386
    %v460 = vadd.f32 %v456, %v388
    %v461 = vsub.f32 %v457, %v406
    %v462 = vsub.f32 %v458, %v408
    %v463 = vsub.f32 %v459, %v410
    %v464 = vsub.f32 %v460, %v412
    %v465 = vmul.f32 %v371, 2.0
    %v466 = vmul.f32 %v370, 2.0
    %v467 = vmul.f32 %v369, 2.0
    %v468 = vmul.f32 %v372, 2.0
    %v469 = vsub.f32 %v461, %v465
    %v470 = vsub.f32 %v462, %v466
    %v471 = vsub.f32 %v463, %v467
    %v472 = vsub.f32 %v464, %v468
    %v473 = vsub.f32 %v469, %v414
    %v474 = vsub.f32 %v470, %v416
    %v475 = vsub.f32 %v471, %v418
    %v476 = vsub.f32 %v472, %v420
    %v477 = vmul.f32 %v445, %v445
    %v478 = vmul.f32 %v446, %v446
    %v479 = vmul.f32 %v447, %v447
    %v480 = vmul.f32 %v448, %v448
    %v481 = vmul.f32 %v473, %v473
    %v482 = vmul.f32 %v474, %v474
    %v483 = vmul.f32 %v475, %v475
    %v484 = vmul.f32 %v476, %v476
    %v485 = vadd.f32 %v477, %v481
    %v486 = vadd.f32 %v478, %v482
    %v487 = vadd.f32 %v479, %v483
    %v488 = vadd.f32 %v480, %v484
    %v489 = vrsqrt.pop %v485
    %v490 = vmul.f32 %v485, %v489
    %vm491 = vcmp.eq.f32.partialorder %v485, inf
    %v492 = vsel %vm491, %v485, %v490
    %vm493 = vcmp.eq.f32.partialorder %v485, 0.0
    %v494 = vand.u32 %v485, 2147483648
    %v495 = vsel %vm493, %v494, %v492
    %v496 = vrsqrt.pop %v486
    %v497 = vmul.f32 %v486, %v496
    %vm498 = vcmp.eq.f32.partialorder %v486, inf
    %v499 = vsel %vm498, %v486, %v497
    %vm500 = vcmp.eq.f32.partialorder %v486, 0.0
    %v501 = vand.u32 %v486, 2147483648
    %v502 = vsel %vm500, %v501, %v499
    %v503 = vrsqrt.pop %v487
    %v504 = vmul.f32 %v487, %v503
    %vm505 = vcmp.eq.f32.partialorder %v487, inf
    %v506 = vsel %vm505, %v487, %v504
    %vm507 = vcmp.eq.f32.partialorder %v487, 0.0
    %v508 = vand.u32 %v487, 2147483648
    %v509 = vsel %vm507, %v508, %v506
    %v510 = vrsqrt.pop %v488
    %v511 = vmul.f32 %v488, %v510
    %vm512 = vcmp.eq.f32.partialorder %v488, inf
    %v513 = vsel %vm512, %v488, %v511
    %vm514 = vcmp.eq.f32.partialorder %v488, 0.0
    %v515 = vand.u32 %v488, 2147483648
    %v516 = vsel %vm514, %v515, %v513
    %s517 = scalar_lea.vmem [#allocation2], 16
    %v518 = vld [vmem:[%s517] sm:$0xff]
    %v519 = vld [vmem:[%s517 + $0x8] sm:$0xff]
    %s520 = scalar_lea.vmem [#allocation3], 16
    %v521 = vld [vmem:[%s520] sm:$0xff]
    %v522 = vld [vmem:[%s520 + $0x8] sm:$0xff]
    %523 = vrot.lane.b32.xlu0 %v518, 1
    %v524 = vpop.permute.xlu0 %523
    %525 = vrot.lane.b32.xlu0 %v519, 1
    %v526 = vpop.permute.xlu0 %525
    %527 = vrot.lane.b32.xlu0 %v521, 1
    %v528 = vpop.permute.xlu0 %527
    %529 = vrot.lane.b32.xlu0 %v522, 1
    %v530 = vpop.permute.xlu0 %529
    %v531 = vmul.f32 %v524, 0.60653067
    %v532 = vmul.f32 %v526, 0.60653067
    %v533 = vmul.f32 %v528, 0.60653067
    %v534 = vmul.f32 %v530, 0.60653067
    %v535 = vadd.f32 %v518, %v531
    %v536 = vadd.f32 %v519, %v532
    %v537 = vadd.f32 %v521, %v533
    %v538 = vadd.f32 %v522, %v534
    %539 = vrot.lane.b32.xlu0 %v518, 127
    %v540 = vpop.permute.xlu0 %539
    %541 = vrot.lane.b32.xlu0 %v519, 127
    %v542 = vpop.permute.xlu0 %541
    %543 = vrot.lane.b32.xlu0 %v521, 127
    %v544 = vpop.permute.xlu0 %543
    %545 = vrot.lane.b32.xlu0 %v522, 127
    %v546 = vpop.permute.xlu0 %545
    %v547 = vmul.f32 %v540, 0.60653067
    %v548 = vmul.f32 %v542, 0.60653067
    %v549 = vmul.f32 %v544, 0.60653067
    %v550 = vmul.f32 %v546, 0.60653067
    %v551 = vadd.f32 %v535, %v547
    %v552 = vadd.f32 %v536, %v548
    %v553 = vadd.f32 %v537, %v549
    %v554 = vadd.f32 %v538, %v550
    %555 = vrot.lane.b32.xlu0 %v518, 2
    %v556 = vpop.permute.xlu0 %555
    %557 = vrot.lane.b32.xlu0 %v519, 2
    %v558 = vpop.permute.xlu0 %557
    %559 = vrot.lane.b32.xlu0 %v521, 2
    %v560 = vpop.permute.xlu0 %559
    %561 = vrot.lane.b32.xlu0 %v522, 2
    %v562 = vpop.permute.xlu0 %561
    %v563 = vmul.f32 %v556, 0.13533528
    %v564 = vmul.f32 %v558, 0.13533528
    %v565 = vmul.f32 %v560, 0.13533528
    %v566 = vmul.f32 %v562, 0.13533528
    %v567 = vadd.f32 %v551, %v563
    %v568 = vadd.f32 %v552, %v564
    %v569 = vadd.f32 %v553, %v565
    %v570 = vadd.f32 %v554, %v566
    %571 = vrot.lane.b32.xlu0 %v518, 126
    %v572 = vpop.permute.xlu0 %571
    %573 = vrot.lane.b32.xlu0 %v519, 126
    %v574 = vpop.permute.xlu0 %573
    %575 = vrot.lane.b32.xlu0 %v521, 126
    %v576 = vpop.permute.xlu0 %575
    %577 = vrot.lane.b32.xlu0 %v522, 126
    %v578 = vpop.permute.xlu0 %577
    %v579 = vmul.f32 %v572, 0.13533528
    %v580 = vmul.f32 %v574, 0.13533528
    %v581 = vmul.f32 %v576, 0.13533528
    %v582 = vmul.f32 %v578, 0.13533528
    %v583 = vadd.f32 %v567, %v579
    %v584 = vadd.f32 %v568, %v580
    %v585 = vadd.f32 %v569, %v581
    %v586 = vadd.f32 %v570, %v582
    %v587 = vrot.slane %v583, 7
    %v588 = vrot.slane %v584, 7
    %v589 = vrot.slane %v585, 7
    %v590 = vrot.slane %v586, 7
    %v591 = vsel %vm289, %v589, %v590
    %v592 = vsel %vm289, %v588, %v589
    %v593 = vsel %vm289, %v587, %v588
    %v594 = vsel %vm289, %v590, %v587
    %v595 = vmul.f32 %v594, 0.60653067
    %v596 = vmul.f32 %v593, 0.60653067
    %v597 = vmul.f32 %v592, 0.60653067
    %v598 = vmul.f32 %v591, 0.60653067
    %v599 = vadd.f32 %v583, %v595
    %v600 = vadd.f32 %v584, %v596
    %v601 = vadd.f32 %v585, %v597
    %v602 = vadd.f32 %v586, %v598
    %v603 = vrot.slane %v583, 1
    %v604 = vrot.slane %v584, 1
    %v605 = vrot.slane %v585, 1
    %v606 = vrot.slane %v586, 1
    %v607 = vsel %vm306, %v605, %v606
    %v608 = vsel %vm306, %v604, %v605
    %v609 = vsel %vm306, %v603, %v604
    %v610 = vsel %vm306, %v606, %v603
    %v611 = vmul.f32 %v609, 0.60653067
    %v612 = vmul.f32 %v608, 0.60653067
    %v613 = vmul.f32 %v607, 0.60653067
    %v614 = vmul.f32 %v610, 0.60653067
    %v615 = vadd.f32 %v599, %v611
    %v616 = vadd.f32 %v600, %v612
    %v617 = vadd.f32 %v601, %v613
    %v618 = vadd.f32 %v602, %v614
    %v619 = vrot.slane %v583, 6
    %v620 = vrot.slane %v584, 6
    %v621 = vrot.slane %v585, 6
    %v622 = vrot.slane %v586, 6
    %v623 = vsel %vm323, %v621, %v622
    %v624 = vsel %vm323, %v620, %v621
    %v625 = vsel %vm323, %v619, %v620
    %v626 = vsel %vm323, %v622, %v619
    %v627 = vmul.f32 %v626, 0.13533528
    %v628 = vmul.f32 %v625, 0.13533528
    %v629 = vmul.f32 %v624, 0.13533528
    %v630 = vmul.f32 %v623, 0.13533528
    %v631 = vadd.f32 %v615, %v627
    %v632 = vadd.f32 %v616, %v628
    %v633 = vadd.f32 %v617, %v629
    %v634 = vadd.f32 %v618, %v630
    %v635 = vrot.slane %v583, 2
    %v636 = vrot.slane %v584, 2
    %v637 = vrot.slane %v585, 2
    %v638 = vrot.slane %v586, 2
    %v639 = vsel %vm340, %v637, %v638
    %v640 = vsel %vm340, %v636, %v637
    %v641 = vsel %vm340, %v635, %v636
    %v642 = vsel %vm340, %v638, %v635
    %v643 = vmul.f32 %v641, 0.13533528
    %v644 = vmul.f32 %v640, 0.13533528
    %v645 = vmul.f32 %v639, 0.13533528
    %v646 = vmul.f32 %v642, 0.13533528
    %v647 = vadd.f32 %v631, %v643
    %v648 = vadd.f32 %v632, %v644
    %v649 = vadd.f32 %v633, %v645
    %v650 = vadd.f32 %v634, %v646
    %v651 = vsel %vm201, %v647, 0.0
    %v652 = vsel %vm202, %v648, 0.0
    %v653 = vsel %vm203, %v649, 0.0
    %v654 = vsel %vm204, %v650, 0.0
    %v655 = vrot.slane %v651, 7
    %v656 = vrot.slane %v652, 7
    %v657 = vrot.slane %v653, 7
    %v658 = vrot.slane %v654, 7
    %v659 = vsel %vm289, %v657, %v658
    %v660 = vsel %vm289, %v656, %v657
    %v661 = vsel %vm289, %v655, %v656
    %v662 = vsel %vm289, %v658, %v655
    %v663 = vrot.slane %v651, 1
    %v664 = vrot.slane %v652, 1
    %v665 = vrot.slane %v653, 1
    %v666 = vrot.slane %v654, 1
    %v667 = vsel %vm306, %v665, %v666
    %v668 = vsel %vm306, %v664, %v665
    %v669 = vsel %vm306, %v663, %v664
    %v670 = vsel %vm306, %v666, %v663
    %671 = vrot.lane.b32.xlu0 %v662, 1
    %v672 = vpop.permute.xlu0 %671
    %673 = vrot.lane.b32.xlu0 %v661, 1
    %v674 = vpop.permute.xlu0 %673
    %675 = vrot.lane.b32.xlu0 %v660, 1
    %v676 = vpop.permute.xlu0 %675
    %677 = vrot.lane.b32.xlu0 %v659, 1
    %v678 = vpop.permute.xlu0 %677
    %679 = vrot.lane.b32.xlu0 %v662, 127
    %v680 = vpop.permute.xlu0 %679
    %681 = vrot.lane.b32.xlu0 %v661, 127
    %v682 = vpop.permute.xlu0 %681
    %683 = vrot.lane.b32.xlu0 %v660, 127
    %v684 = vpop.permute.xlu0 %683
    %685 = vrot.lane.b32.xlu0 %v659, 127
    %v686 = vpop.permute.xlu0 %685
    %687 = vrot.lane.b32.xlu0 %v651, 1
    %v688 = vpop.permute.xlu0 %687
    %689 = vrot.lane.b32.xlu0 %v652, 1
    %v690 = vpop.permute.xlu0 %689
    %691 = vrot.lane.b32.xlu0 %v653, 1
    %v692 = vpop.permute.xlu0 %691
    %693 = vrot.lane.b32.xlu0 %v654, 1
    %v694 = vpop.permute.xlu0 %693
    %695 = vrot.lane.b32.xlu0 %v651, 127
    %v696 = vpop.permute.xlu0 %695
    %697 = vrot.lane.b32.xlu0 %v652, 127
    %v698 = vpop.permute.xlu0 %697
    %699 = vrot.lane.b32.xlu0 %v653, 127
    %v700 = vpop.permute.xlu0 %699
    %701 = vrot.lane.b32.xlu0 %v654, 127
    %v702 = vpop.permute.xlu0 %701
    %703 = vrot.lane.b32.xlu0 %v669, 1
    %v704 = vpop.permute.xlu0 %703
    %705 = vrot.lane.b32.xlu0 %v668, 1
    %v706 = vpop.permute.xlu0 %705
    %707 = vrot.lane.b32.xlu0 %v667, 1
    %v708 = vpop.permute.xlu0 %707
    %709 = vrot.lane.b32.xlu0 %v670, 1
    %v710 = vpop.permute.xlu0 %709
    %711 = vrot.lane.b32.xlu0 %v669, 127
    %v712 = vpop.permute.xlu0 %711
    %713 = vrot.lane.b32.xlu0 %v668, 127
    %v714 = vpop.permute.xlu0 %713
    %715 = vrot.lane.b32.xlu0 %v667, 127
    %v716 = vpop.permute.xlu0 %715
    %717 = vrot.lane.b32.xlu0 %v670, 127
    %v718 = vpop.permute.xlu0 %717
    %v719 = vsub.f32 %v672, %v680
    %v720 = vsub.f32 %v674, %v682
    %v721 = vsub.f32 %v676, %v684
    %v722 = vsub.f32 %v678, %v686
    %v723 = vmul.f32 %v688, 2.0
    %v724 = vmul.f32 %v690, 2.0
    %v725 = vmul.f32 %v692, 2.0
    %v726 = vmul.f32 %v694, 2.0
    %v727 = vadd.f32 %v719, %v723
    %v728 = vadd.f32 %v720, %v724
    %v729 = vadd.f32 %v721, %v725
    %v730 = vadd.f32 %v722, %v726
    %v731 = vmul.f32 %v696, 2.0
    %v732 = vmul.f32 %v698, 2.0
    %v733 = vmul.f32 %v700, 2.0
    %v734 = vmul.f32 %v702, 2.0
    %v735 = vsub.f32 %v727, %v731
    %v736 = vsub.f32 %v728, %v732
    %v737 = vsub.f32 %v729, %v733
    %v738 = vsub.f32 %v730, %v734
    %v739 = vadd.f32 %v735, %v704
    %v740 = vadd.f32 %v736, %v706
    %v741 = vadd.f32 %v737, %v708
    %v742 = vadd.f32 %v738, %v710
    %v743 = vsub.f32 %v739, %v712
    %v744 = vsub.f32 %v740, %v714
    %v745 = vsub.f32 %v741, %v716
    %v746 = vsub.f32 %v742, %v718
    %v747 = vmul.f32 %v662, 2.0
    %v748 = vmul.f32 %v661, 2.0
    %v749 = vmul.f32 %v660, 2.0
    %v750 = vmul.f32 %v659, 2.0
    %v751 = vadd.f32 %v672, %v747
    %v752 = vadd.f32 %v674, %v748
    %v753 = vadd.f32 %v676, %v749
    %v754 = vadd.f32 %v678, %v750
    %v755 = vadd.f32 %v751, %v680
    %v756 = vadd.f32 %v752, %v682
    %v757 = vadd.f32 %v753, %v684
    %v758 = vadd.f32 %v754, %v686
    %v759 = vsub.f32 %v755, %v704
    %v760 = vsub.f32 %v756, %v706
    %v761 = vsub.f32 %v757, %v708
    %v762 = vsub.f32 %v758, %v710
    %v763 = vmul.f32 %v669, 2.0
    %v764 = vmul.f32 %v668, 2.0
    %v765 = vmul.f32 %v667, 2.0
    %v766 = vmul.f32 %v670, 2.0
    %v767 = vsub.f32 %v759, %v763
    %v768 = vsub.f32 %v760, %v764
    %v769 = vsub.f32 %v761, %v765
    %v770 = vsub.f32 %v762, %v766
    %v771 = vsub.f32 %v767, %v712
    %v772 = vsub.f32 %v768, %v714
    %v773 = vsub.f32 %v769, %v716
    %v774 = vsub.f32 %v770, %v718
    %v775 = vmul.f32 %v743, %v743
    %v776 = vmul.f32 %v744, %v744
    %v777 = vmul.f32 %v745, %v745
    %v778 = vmul.f32 %v746, %v746
    %v779 = vmul.f32 %v771, %v771
    %v780 = vmul.f32 %v772, %v772
    %v781 = vmul.f32 %v773, %v773
    %v782 = vmul.f32 %v774, %v774
    %v783 = vadd.f32 %v775, %v779
    %v784 = vadd.f32 %v776, %v780
    %v785 = vadd.f32 %v777, %v781
    %v786 = vadd.f32 %v778, %v782
    %v787 = vrsqrt.pop %v783
    %v788 = vmul.f32 %v783, %v787
    %vm789 = vcmp.eq.f32.partialorder %v783, inf
    %v790 = vsel %vm789, %v783, %v788
    %vm791 = vcmp.eq.f32.partialorder %v783, 0.0
    %v792 = vand.u32 %v783, 2147483648
    %v793 = vsel %vm791, %v792, %v790
    %v794 = vrsqrt.pop %v784
    %v795 = vmul.f32 %v784, %v794
    %vm796 = vcmp.eq.f32.partialorder %v784, inf
    %v797 = vsel %vm796, %v784, %v795
    %vm798 = vcmp.eq.f32.partialorder %v784, 0.0
    %v799 = vand.u32 %v784, 2147483648
    %v800 = vsel %vm798, %v799, %v797
    %v801 = vrsqrt.pop %v785
    %v802 = vmul.f32 %v785, %v801
    %vm803 = vcmp.eq.f32.partialorder %v785, inf
    %v804 = vsel %vm803, %v785, %v802
    %vm805 = vcmp.eq.f32.partialorder %v785, 0.0
    %v806 = vand.u32 %v785, 2147483648
    %v807 = vsel %vm805, %v806, %v804
    %v808 = vrsqrt.pop %v786
    %v809 = vmul.f32 %v786, %v808
    %vm810 = vcmp.eq.f32.partialorder %v786, inf
    %v811 = vsel %vm810, %v786, %v809
    %vm812 = vcmp.eq.f32.partialorder %v786, 0.0
    %v813 = vand.u32 %v786, 2147483648
    %v814 = vsel %vm812, %v813, %v811
    %v815 = vadd.f32 %v495, %v793
    %v816 = vadd.f32 %v502, %v800
    %v817 = vadd.f32 %v509, %v807
    %v818 = vadd.f32 %v516, %v814
    %v819 = vadd.f32 %v445, %v743
    %v820 = vadd.f32 %v446, %v744
    %v821 = vadd.f32 %v447, %v745
    %v822 = vadd.f32 %v448, %v746
    %v823 = vadd.f32 %v473, %v771
    %v824 = vadd.f32 %v474, %v772
    %v825 = vadd.f32 %v475, %v773
    %v826 = vadd.f32 %v476, %v774
    %s827 = scalar_lea.vmem [#allocation2], 32
    %v828 = vld [vmem:[%s827] sm:$0xff]
    %v829 = vld [vmem:[%s827 + $0x8] sm:$0xff]
    %s830 = scalar_lea.vmem [#allocation3], 32
    %v831 = vld [vmem:[%s830] sm:$0xff]
    %v832 = vld [vmem:[%s830 + $0x8] sm:$0xff]
    %833 = vrot.lane.b32.xlu0 %v828, 1
    %v834 = vpop.permute.xlu0 %833
    %835 = vrot.lane.b32.xlu0 %v829, 1
    %v836 = vpop.permute.xlu0 %835
    %837 = vrot.lane.b32.xlu0 %v831, 1
    %v838 = vpop.permute.xlu0 %837
    %839 = vrot.lane.b32.xlu0 %v832, 1
    %v840 = vpop.permute.xlu0 %839
    %v841 = vmul.f32 %v834, 0.60653067
    %v842 = vmul.f32 %v836, 0.60653067
    %v843 = vmul.f32 %v838, 0.60653067
    %v844 = vmul.f32 %v840, 0.60653067
    %v845 = vadd.f32 %v828, %v841
    %v846 = vadd.f32 %v829, %v842
    %v847 = vadd.f32 %v831, %v843
    %v848 = vadd.f32 %v832, %v844
    %849 = vrot.lane.b32.xlu0 %v828, 127
    %v850 = vpop.permute.xlu0 %849
    %851 = vrot.lane.b32.xlu0 %v829, 127
    %v852 = vpop.permute.xlu0 %851
    %853 = vrot.lane.b32.xlu0 %v831, 127
    %v854 = vpop.permute.xlu0 %853
    %855 = vrot.lane.b32.xlu0 %v832, 127
    %v856 = vpop.permute.xlu0 %855
    %v857 = vmul.f32 %v850, 0.60653067
    %v858 = vmul.f32 %v852, 0.60653067
    %v859 = vmul.f32 %v854, 0.60653067
    %v860 = vmul.f32 %v856, 0.60653067
    %v861 = vadd.f32 %v845, %v857
    %v862 = vadd.f32 %v846, %v858
    %v863 = vadd.f32 %v847, %v859
    %v864 = vadd.f32 %v848, %v860
    %865 = vrot.lane.b32.xlu0 %v828, 2
    %v866 = vpop.permute.xlu0 %865
    %867 = vrot.lane.b32.xlu0 %v829, 2
    %v868 = vpop.permute.xlu0 %867
    %869 = vrot.lane.b32.xlu0 %v831, 2
    %v870 = vpop.permute.xlu0 %869
    %871 = vrot.lane.b32.xlu0 %v832, 2
    %v872 = vpop.permute.xlu0 %871
    %v873 = vmul.f32 %v866, 0.13533528
    %v874 = vmul.f32 %v868, 0.13533528
    %v875 = vmul.f32 %v870, 0.13533528
    %v876 = vmul.f32 %v872, 0.13533528
    %v877 = vadd.f32 %v861, %v873
    %v878 = vadd.f32 %v862, %v874
    %v879 = vadd.f32 %v863, %v875
    %v880 = vadd.f32 %v864, %v876
    %881 = vrot.lane.b32.xlu0 %v828, 126
    %v882 = vpop.permute.xlu0 %881
    %883 = vrot.lane.b32.xlu0 %v829, 126
    %v884 = vpop.permute.xlu0 %883
    %885 = vrot.lane.b32.xlu0 %v831, 126
    %v886 = vpop.permute.xlu0 %885
    %887 = vrot.lane.b32.xlu0 %v832, 126
    %v888 = vpop.permute.xlu0 %887
    %v889 = vmul.f32 %v882, 0.13533528
    %v890 = vmul.f32 %v884, 0.13533528
    %v891 = vmul.f32 %v886, 0.13533528
    %v892 = vmul.f32 %v888, 0.13533528
    %v893 = vadd.f32 %v877, %v889
    %v894 = vadd.f32 %v878, %v890
    %v895 = vadd.f32 %v879, %v891
    %v896 = vadd.f32 %v880, %v892
    %v897 = vrot.slane %v893, 7
    %v898 = vrot.slane %v894, 7
    %v899 = vrot.slane %v895, 7
    %v900 = vrot.slane %v896, 7
    %v901 = vsel %vm289, %v899, %v900
    %v902 = vsel %vm289, %v898, %v899
    %v903 = vsel %vm289, %v897, %v898
    %v904 = vsel %vm289, %v900, %v897
    %v905 = vmul.f32 %v904, 0.60653067
    %v906 = vmul.f32 %v903, 0.60653067
    %v907 = vmul.f32 %v902, 0.60653067
    %v908 = vmul.f32 %v901, 0.60653067
    %v909 = vadd.f32 %v893, %v905
    %v910 = vadd.f32 %v894, %v906
    %v911 = vadd.f32 %v895, %v907
    %v912 = vadd.f32 %v896, %v908
    %v913 = vrot.slane %v893, 1
    %v914 = vrot.slane %v894, 1
    %v915 = vrot.slane %v895, 1
    %v916 = vrot.slane %v896, 1
    %v917 = vsel %vm306, %v915, %v916
    %v918 = vsel %vm306, %v914, %v915
    %v919 = vsel %vm306, %v913, %v914
    %v920 = vsel %vm306, %v916, %v913
    %v921 = vmul.f32 %v919, 0.60653067
    %v922 = vmul.f32 %v918, 0.60653067
    %v923 = vmul.f32 %v917, 0.60653067
    %v924 = vmul.f32 %v920, 0.60653067
    %v925 = vadd.f32 %v909, %v921
    %v926 = vadd.f32 %v910, %v922
    %v927 = vadd.f32 %v911, %v923
    %v928 = vadd.f32 %v912, %v924
    %v929 = vrot.slane %v893, 6
    %v930 = vrot.slane %v894, 6
    %v931 = vrot.slane %v895, 6
    %v932 = vrot.slane %v896, 6
    %v933 = vsel %vm323, %v931, %v932
    %v934 = vsel %vm323, %v930, %v931
    %v935 = vsel %vm323, %v929, %v930
    %v936 = vsel %vm323, %v932, %v929
    %v937 = vmul.f32 %v936, 0.13533528
    %v938 = vmul.f32 %v935, 0.13533528
    %v939 = vmul.f32 %v934, 0.13533528
    %v940 = vmul.f32 %v933, 0.13533528
    %v941 = vadd.f32 %v925, %v937
    %v942 = vadd.f32 %v926, %v938
    %v943 = vadd.f32 %v927, %v939
    %v944 = vadd.f32 %v928, %v940
    %v945 = vrot.slane %v893, 2
    %v946 = vrot.slane %v894, 2
    %v947 = vrot.slane %v895, 2
    %v948 = vrot.slane %v896, 2
    %v949 = vsel %vm340, %v947, %v948
    %v950 = vsel %vm340, %v946, %v947
    %v951 = vsel %vm340, %v945, %v946
    %v952 = vsel %vm340, %v948, %v945
    %v953 = vmul.f32 %v951, 0.13533528
    %v954 = vmul.f32 %v950, 0.13533528
    %v955 = vmul.f32 %v949, 0.13533528
    %v956 = vmul.f32 %v952, 0.13533528
    %v957 = vadd.f32 %v941, %v953
    %v958 = vadd.f32 %v942, %v954
    %v959 = vadd.f32 %v943, %v955
    %v960 = vadd.f32 %v944, %v956
    %v961 = vsel %vm201, %v957, 0.0
    %v962 = vsel %vm202, %v958, 0.0
    %v963 = vsel %vm203, %v959, 0.0
    %v964 = vsel %vm204, %v960, 0.0
    %v965 = vrot.slane %v961, 7
    %v966 = vrot.slane %v962, 7
    %v967 = vrot.slane %v963, 7
    %v968 = vrot.slane %v964, 7
    %v969 = vsel %vm289, %v967, %v968
    %v970 = vsel %vm289, %v966, %v967
    %v971 = vsel %vm289, %v965, %v966
    %v972 = vsel %vm289, %v968, %v965
    %v973 = vrot.slane %v961, 1
    %v974 = vrot.slane %v962, 1
    %v975 = vrot.slane %v963, 1
    %v976 = vrot.slane %v964, 1
    %v977 = vsel %vm306, %v975, %v976
    %v978 = vsel %vm306, %v974, %v975
    %v979 = vsel %vm306, %v973, %v974
    %v980 = vsel %vm306, %v976, %v973
    %981 = vrot.lane.b32.xlu0 %v972, 1
    %v982 = vpop.permute.xlu0 %981
    %983 = vrot.lane.b32.xlu0 %v971, 1
    %v984 = vpop.permute.xlu0 %983
    %985 = vrot.lane.b32.xlu0 %v970, 1
    %v986 = vpop.permute.xlu0 %985
    %987 = vrot.lane.b32.xlu0 %v969, 1
    %v988 = vpop.permute.xlu0 %987
    %989 = vrot.lane.b32.xlu0 %v972, 127
    %v990 = vpop.permute.xlu0 %989
    %991 = vrot.lane.b32.xlu0 %v971, 127
    %v992 = vpop.permute.xlu0 %991
    %993 = vrot.lane.b32.xlu0 %v970, 127
    %v994 = vpop.permute.xlu0 %993
    %995 = vrot.lane.b32.xlu0 %v969, 127
    %v996 = vpop.permute.xlu0 %995
    %997 = vrot.lane.b32.xlu0 %v961, 1
    %v998 = vpop.permute.xlu0 %997
    %999 = vrot.lane.b32.xlu0 %v962, 1
    %v1000 = vpop.permute.xlu0 %999
    %1001 = vrot.lane.b32.xlu0 %v963, 1
    %v1002 = vpop.permute.xlu0 %1001
    %1003 = vrot.lane.b32.xlu0 %v964, 1
    %v1004 = vpop.permute.xlu0 %1003
    %1005 = vrot.lane.b32.xlu0 %v961, 127
    %v1006 = vpop.permute.xlu0 %1005
    %1007 = vrot.lane.b32.xlu0 %v962, 127
    %v1008 = vpop.permute.xlu0 %1007
    %1009 = vrot.lane.b32.xlu0 %v963, 127
    %v1010 = vpop.permute.xlu0 %1009
    %1011 = vrot.lane.b32.xlu0 %v964, 127
    %v1012 = vpop.permute.xlu0 %1011
    %1013 = vrot.lane.b32.xlu0 %v979, 1
    %v1014 = vpop.permute.xlu0 %1013
    %1015 = vrot.lane.b32.xlu0 %v978, 1
    %v1016 = vpop.permute.xlu0 %1015
    %1017 = vrot.lane.b32.xlu0 %v977, 1
    %v1018 = vpop.permute.xlu0 %1017
    %1019 = vrot.lane.b32.xlu0 %v980, 1
    %v1020 = vpop.permute.xlu0 %1019
    %1021 = vrot.lane.b32.xlu0 %v979, 127
    %v1022 = vpop.permute.xlu0 %1021
    %1023 = vrot.lane.b32.xlu0 %v978, 127
    %v1024 = vpop.permute.xlu0 %1023
    %1025 = vrot.lane.b32.xlu0 %v977, 127
    %v1026 = vpop.permute.xlu0 %1025
    %1027 = vrot.lane.b32.xlu0 %v980, 127
    %v1028 = vpop.permute.xlu0 %1027
    %v1029 = vsub.f32 %v982, %v990
    %v1030 = vsub.f32 %v984, %v992
    %v1031 = vsub.f32 %v986, %v994
    %v1032 = vsub.f32 %v988, %v996
    %v1033 = vmul.f32 %v998, 2.0
    %v1034 = vmul.f32 %v1000, 2.0
    %v1035 = vmul.f32 %v1002, 2.0
    %v1036 = vmul.f32 %v1004, 2.0
    %v1037 = vadd.f32 %v1029, %v1033
    %v1038 = vadd.f32 %v1030, %v1034
    %v1039 = vadd.f32 %v1031, %v1035
    %v1040 = vadd.f32 %v1032, %v1036
    %v1041 = vmul.f32 %v1006, 2.0
    %v1042 = vmul.f32 %v1008, 2.0
    %v1043 = vmul.f32 %v1010, 2.0
    %v1044 = vmul.f32 %v1012, 2.0
    %v1045 = vsub.f32 %v1037, %v1041
    %v1046 = vsub.f32 %v1038, %v1042
    %v1047 = vsub.f32 %v1039, %v1043
    %v1048 = vsub.f32 %v1040, %v1044
    %v1049 = vadd.f32 %v1045, %v1014
    %v1050 = vadd.f32 %v1046, %v1016
    %v1051 = vadd.f32 %v1047, %v1018
    %v1052 = vadd.f32 %v1048, %v1020
    %v1053 = vsub.f32 %v1049, %v1022
    %v1054 = vsub.f32 %v1050, %v1024
    %v1055 = vsub.f32 %v1051, %v1026
    %v1056 = vsub.f32 %v1052, %v1028
    %v1057 = vmul.f32 %v972, 2.0
    %v1058 = vmul.f32 %v971, 2.0
    %v1059 = vmul.f32 %v970, 2.0
    %v1060 = vmul.f32 %v969, 2.0
    %v1061 = vadd.f32 %v982, %v1057
    %v1062 = vadd.f32 %v984, %v1058
    %v1063 = vadd.f32 %v986, %v1059
    %v1064 = vadd.f32 %v988, %v1060
    %v1065 = vadd.f32 %v1061, %v990
    %v1066 = vadd.f32 %v1062, %v992
    %v1067 = vadd.f32 %v1063, %v994
    %v1068 = vadd.f32 %v1064, %v996
    %v1069 = vsub.f32 %v1065, %v1014
    %v1070 = vsub.f32 %v1066, %v1016
    %v1071 = vsub.f32 %v1067, %v1018
    %v1072 = vsub.f32 %v1068, %v1020
    %v1073 = vmul.f32 %v979, 2.0
    %v1074 = vmul.f32 %v978, 2.0
    %v1075 = vmul.f32 %v977, 2.0
    %v1076 = vmul.f32 %v980, 2.0
    %v1077 = vsub.f32 %v1069, %v1073
    %v1078 = vsub.f32 %v1070, %v1074
    %v1079 = vsub.f32 %v1071, %v1075
    %v1080 = vsub.f32 %v1072, %v1076
    %v1081 = vsub.f32 %v1077, %v1022
    %v1082 = vsub.f32 %v1078, %v1024
    %v1083 = vsub.f32 %v1079, %v1026
    %v1084 = vsub.f32 %v1080, %v1028
    %v1085 = vmul.f32 %v1053, %v1053
    %v1086 = vmul.f32 %v1054, %v1054
    %v1087 = vmul.f32 %v1055, %v1055
    %v1088 = vmul.f32 %v1056, %v1056
    %v1089 = vmul.f32 %v1081, %v1081
    %v1090 = vmul.f32 %v1082, %v1082
    %v1091 = vmul.f32 %v1083, %v1083
    %v1092 = vmul.f32 %v1084, %v1084
    %v1093 = vadd.f32 %v1085, %v1089
    %v1094 = vadd.f32 %v1086, %v1090
    %v1095 = vadd.f32 %v1087, %v1091
    %v1096 = vadd.f32 %v1088, %v1092
    %v1097 = vrsqrt.pop %v1093
    %v1098 = vmul.f32 %v1093, %v1097
    %vm1099 = vcmp.eq.f32.partialorder %v1093, inf
    %v1100 = vsel %vm1099, %v1093, %v1098
    %vm1101 = vcmp.eq.f32.partialorder %v1093, 0.0
    %v1102 = vand.u32 %v1093, 2147483648
    %v1103 = vsel %vm1101, %v1102, %v1100
    %v1104 = vrsqrt.pop %v1094
    %v1105 = vmul.f32 %v1094, %v1104
    %vm1106 = vcmp.eq.f32.partialorder %v1094, inf
    %v1107 = vsel %vm1106, %v1094, %v1105
    %vm1108 = vcmp.eq.f32.partialorder %v1094, 0.0
    %v1109 = vand.u32 %v1094, 2147483648
    %v1110 = vsel %vm1108, %v1109, %v1107
    %v1111 = vrsqrt.pop %v1095
    %v1112 = vmul.f32 %v1095, %v1111
    %vm1113 = vcmp.eq.f32.partialorder %v1095, inf
    %v1114 = vsel %vm1113, %v1095, %v1112
    %vm1115 = vcmp.eq.f32.partialorder %v1095, 0.0
    %v1116 = vand.u32 %v1095, 2147483648
    %v1117 = vsel %vm1115, %v1116, %v1114
    %v1118 = vrsqrt.pop %v1096
    %v1119 = vmul.f32 %v1096, %v1118
    %vm1120 = vcmp.eq.f32.partialorder %v1096, inf
    %v1121 = vsel %vm1120, %v1096, %v1119
    %vm1122 = vcmp.eq.f32.partialorder %v1096, 0.0
    %v1123 = vand.u32 %v1096, 2147483648
    %v1124 = vsel %vm1122, %v1123, %v1121
    %v1125 = vadd.f32 %v815, %v1103
    %v1126 = vadd.f32 %v816, %v1110
    %v1127 = vadd.f32 %v817, %v1117
    %v1128 = vadd.f32 %v818, %v1124
    %v1129 = vadd.f32 %v819, %v1053
    %v1130 = vadd.f32 %v820, %v1054
    %v1131 = vadd.f32 %v821, %v1055
    %v1132 = vadd.f32 %v822, %v1056
    %v1133 = vadd.f32 %v823, %v1081
    %v1134 = vadd.f32 %v824, %v1082
    %v1135 = vadd.f32 %v825, %v1083
    %v1136 = vadd.f32 %v826, %v1084
    %v1137 = vsel %vm201, %v1125, 0.0
    %v1138 = vsel %vm202, %v1126, 0.0
    %v1139 = vsel %vm203, %v1127, 0.0
    %v1140 = vsel %vm204, %v1128, 0.0
    %s1141 = scalar_lea.vmem [#allocation2], 48
    %v1142 = vld [vmem:[%s1141] sm:$0xff]
    %v1143 = vld [vmem:[%s1141 + $0x8] sm:$0xff]
    %s1144 = scalar_lea.vmem [#allocation3], 48
    %v1145 = vld [vmem:[%s1144] sm:$0xff]
    %v1146 = vld [vmem:[%s1144 + $0x8] sm:$0xff]
    %1147 = vrot.lane.b32.xlu0 %v1142, 1
    %v1148 = vpop.permute.xlu0 %1147
    %1149 = vrot.lane.b32.xlu0 %v1143, 1
    %v1150 = vpop.permute.xlu0 %1149
    %1151 = vrot.lane.b32.xlu0 %v1145, 1
    %v1152 = vpop.permute.xlu0 %1151
    %1153 = vrot.lane.b32.xlu0 %v1146, 1
    %v1154 = vpop.permute.xlu0 %1153
    %v1155 = vmul.f32 %v1148, 0.60653067
    %v1156 = vmul.f32 %v1150, 0.60653067
    %v1157 = vmul.f32 %v1152, 0.60653067
    %v1158 = vmul.f32 %v1154, 0.60653067
    %v1159 = vadd.f32 %v1142, %v1155
    %v1160 = vadd.f32 %v1143, %v1156
    %v1161 = vadd.f32 %v1145, %v1157
    %v1162 = vadd.f32 %v1146, %v1158
    %1163 = vrot.lane.b32.xlu0 %v1142, 127
    %v1164 = vpop.permute.xlu0 %1163
    %1165 = vrot.lane.b32.xlu0 %v1143, 127
    %v1166 = vpop.permute.xlu0 %1165
    %1167 = vrot.lane.b32.xlu0 %v1145, 127
    %v1168 = vpop.permute.xlu0 %1167
    %1169 = vrot.lane.b32.xlu0 %v1146, 127
    %v1170 = vpop.permute.xlu0 %1169
    %v1171 = vmul.f32 %v1164, 0.60653067
    %v1172 = vmul.f32 %v1166, 0.60653067
    %v1173 = vmul.f32 %v1168, 0.60653067
    %v1174 = vmul.f32 %v1170, 0.60653067
    %v1175 = vadd.f32 %v1159, %v1171
    %v1176 = vadd.f32 %v1160, %v1172
    %v1177 = vadd.f32 %v1161, %v1173
    %v1178 = vadd.f32 %v1162, %v1174
    %1179 = vrot.lane.b32.xlu0 %v1142, 2
    %v1180 = vpop.permute.xlu0 %1179
    %1181 = vrot.lane.b32.xlu0 %v1143, 2
    %v1182 = vpop.permute.xlu0 %1181
    %1183 = vrot.lane.b32.xlu0 %v1145, 2
    %v1184 = vpop.permute.xlu0 %1183
    %1185 = vrot.lane.b32.xlu0 %v1146, 2
    %v1186 = vpop.permute.xlu0 %1185
    %v1187 = vmul.f32 %v1180, 0.13533528
    %v1188 = vmul.f32 %v1182, 0.13533528
    %v1189 = vmul.f32 %v1184, 0.13533528
    %v1190 = vmul.f32 %v1186, 0.13533528
    %v1191 = vadd.f32 %v1175, %v1187
    %v1192 = vadd.f32 %v1176, %v1188
    %v1193 = vadd.f32 %v1177, %v1189
    %v1194 = vadd.f32 %v1178, %v1190
    %1195 = vrot.lane.b32.xlu0 %v1142, 126
    %v1196 = vpop.permute.xlu0 %1195
    %1197 = vrot.lane.b32.xlu0 %v1143, 126
    %v1198 = vpop.permute.xlu0 %1197
    %1199 = vrot.lane.b32.xlu0 %v1145, 126
    %v1200 = vpop.permute.xlu0 %1199
    %1201 = vrot.lane.b32.xlu0 %v1146, 126
    %v1202 = vpop.permute.xlu0 %1201
    %v1203 = vmul.f32 %v1196, 0.13533528
    %v1204 = vmul.f32 %v1198, 0.13533528
    %v1205 = vmul.f32 %v1200, 0.13533528
    %v1206 = vmul.f32 %v1202, 0.13533528
    %v1207 = vadd.f32 %v1191, %v1203
    %v1208 = vadd.f32 %v1192, %v1204
    %v1209 = vadd.f32 %v1193, %v1205
    %v1210 = vadd.f32 %v1194, %v1206
    %v1211 = vrot.slane %v1207, 7
    %v1212 = vrot.slane %v1208, 7
    %v1213 = vrot.slane %v1209, 7
    %v1214 = vrot.slane %v1210, 7
    %v1215 = vsel %vm289, %v1213, %v1214
    %v1216 = vsel %vm289, %v1212, %v1213
    %v1217 = vsel %vm289, %v1211, %v1212
    %v1218 = vsel %vm289, %v1214, %v1211
    %v1219 = vmul.f32 %v1218, 0.60653067
    %v1220 = vmul.f32 %v1217, 0.60653067
    %v1221 = vmul.f32 %v1216, 0.60653067
    %v1222 = vmul.f32 %v1215, 0.60653067
    %v1223 = vadd.f32 %v1207, %v1219
    %v1224 = vadd.f32 %v1208, %v1220
    %v1225 = vadd.f32 %v1209, %v1221
    %v1226 = vadd.f32 %v1210, %v1222
    %v1227 = vrot.slane %v1207, 1
    %v1228 = vrot.slane %v1208, 1
    %v1229 = vrot.slane %v1209, 1
    %v1230 = vrot.slane %v1210, 1
    %v1231 = vsel %vm306, %v1229, %v1230
    %v1232 = vsel %vm306, %v1228, %v1229
    %v1233 = vsel %vm306, %v1227, %v1228
    %v1234 = vsel %vm306, %v1230, %v1227
    %v1235 = vmul.f32 %v1233, 0.60653067
    %v1236 = vmul.f32 %v1232, 0.60653067
    %v1237 = vmul.f32 %v1231, 0.60653067
    %v1238 = vmul.f32 %v1234, 0.60653067
    %v1239 = vadd.f32 %v1223, %v1235
    %v1240 = vadd.f32 %v1224, %v1236
    %v1241 = vadd.f32 %v1225, %v1237
    %v1242 = vadd.f32 %v1226, %v1238
    %v1243 = vrot.slane %v1207, 6
    %v1244 = vrot.slane %v1208, 6
    %v1245 = vrot.slane %v1209, 6
    %v1246 = vrot.slane %v1210, 6
    %v1247 = vsel %vm323, %v1245, %v1246
    %v1248 = vsel %vm323, %v1244, %v1245
    %v1249 = vsel %vm323, %v1243, %v1244
    %v1250 = vsel %vm323, %v1246, %v1243
    %v1251 = vmul.f32 %v1250, 0.13533528
    %v1252 = vmul.f32 %v1249, 0.13533528
    %v1253 = vmul.f32 %v1248, 0.13533528
    %v1254 = vmul.f32 %v1247, 0.13533528
    %v1255 = vadd.f32 %v1239, %v1251
    %v1256 = vadd.f32 %v1240, %v1252
    %v1257 = vadd.f32 %v1241, %v1253
    %v1258 = vadd.f32 %v1242, %v1254
    %v1259 = vrot.slane %v1207, 2
    %v1260 = vrot.slane %v1208, 2
    %v1261 = vrot.slane %v1209, 2
    %v1262 = vrot.slane %v1210, 2
    %v1263 = vsel %vm340, %v1261, %v1262
    %v1264 = vsel %vm340, %v1260, %v1261
    %v1265 = vsel %vm340, %v1259, %v1260
    %v1266 = vsel %vm340, %v1262, %v1259
    %v1267 = vmul.f32 %v1265, 0.13533528
    %v1268 = vmul.f32 %v1264, 0.13533528
    %v1269 = vmul.f32 %v1263, 0.13533528
    %v1270 = vmul.f32 %v1266, 0.13533528
    %v1271 = vadd.f32 %v1255, %v1267
    %v1272 = vadd.f32 %v1256, %v1268
    %v1273 = vadd.f32 %v1257, %v1269
    %v1274 = vadd.f32 %v1258, %v1270
    %v1275 = vsel %vm201, %v1271, 0.0
    %v1276 = vsel %vm202, %v1272, 0.0
    %v1277 = vsel %vm203, %v1273, 0.0
    %v1278 = vsel %vm204, %v1274, 0.0
    %v1279 = vrot.slane %v1275, 7
    %v1280 = vrot.slane %v1276, 7
    %v1281 = vrot.slane %v1277, 7
    %v1282 = vrot.slane %v1278, 7
    %v1283 = vsel %vm289, %v1281, %v1282
    %v1284 = vsel %vm289, %v1280, %v1281
    %v1285 = vsel %vm289, %v1279, %v1280
    %v1286 = vsel %vm289, %v1282, %v1279
    %v1287 = vrot.slane %v1275, 1
    %v1288 = vrot.slane %v1276, 1
    %v1289 = vrot.slane %v1277, 1
    %v1290 = vrot.slane %v1278, 1
    %v1291 = vsel %vm306, %v1289, %v1290
    %v1292 = vsel %vm306, %v1288, %v1289
    %v1293 = vsel %vm306, %v1287, %v1288
    %v1294 = vsel %vm306, %v1290, %v1287
    %1295 = vrot.lane.b32.xlu0 %v1286, 1
    %v1296 = vpop.permute.xlu0 %1295
    %1297 = vrot.lane.b32.xlu0 %v1285, 1
    %v1298 = vpop.permute.xlu0 %1297
    %1299 = vrot.lane.b32.xlu0 %v1284, 1
    %v1300 = vpop.permute.xlu0 %1299
    %1301 = vrot.lane.b32.xlu0 %v1283, 1
    %v1302 = vpop.permute.xlu0 %1301
    %1303 = vrot.lane.b32.xlu0 %v1286, 127
    %v1304 = vpop.permute.xlu0 %1303
    %1305 = vrot.lane.b32.xlu0 %v1285, 127
    %v1306 = vpop.permute.xlu0 %1305
    %1307 = vrot.lane.b32.xlu0 %v1284, 127
    %v1308 = vpop.permute.xlu0 %1307
    %1309 = vrot.lane.b32.xlu0 %v1283, 127
    %v1310 = vpop.permute.xlu0 %1309
    %1311 = vrot.lane.b32.xlu0 %v1275, 1
    %v1312 = vpop.permute.xlu0 %1311
    %1313 = vrot.lane.b32.xlu0 %v1276, 1
    %v1314 = vpop.permute.xlu0 %1313
    %1315 = vrot.lane.b32.xlu0 %v1277, 1
    %v1316 = vpop.permute.xlu0 %1315
    %1317 = vrot.lane.b32.xlu0 %v1278, 1
    %v1318 = vpop.permute.xlu0 %1317
    %1319 = vrot.lane.b32.xlu0 %v1275, 127
    %v1320 = vpop.permute.xlu0 %1319
    %1321 = vrot.lane.b32.xlu0 %v1276, 127
    %v1322 = vpop.permute.xlu0 %1321
    %1323 = vrot.lane.b32.xlu0 %v1277, 127
    %v1324 = vpop.permute.xlu0 %1323
    %1325 = vrot.lane.b32.xlu0 %v1278, 127
    %v1326 = vpop.permute.xlu0 %1325
    %1327 = vrot.lane.b32.xlu0 %v1293, 1
    %v1328 = vpop.permute.xlu0 %1327
    %1329 = vrot.lane.b32.xlu0 %v1292, 1
    %v1330 = vpop.permute.xlu0 %1329
    %1331 = vrot.lane.b32.xlu0 %v1291, 1
    %v1332 = vpop.permute.xlu0 %1331
    %1333 = vrot.lane.b32.xlu0 %v1294, 1
    %v1334 = vpop.permute.xlu0 %1333
    %1335 = vrot.lane.b32.xlu0 %v1293, 127
    %v1336 = vpop.permute.xlu0 %1335
    %1337 = vrot.lane.b32.xlu0 %v1292, 127
    %v1338 = vpop.permute.xlu0 %1337
    %1339 = vrot.lane.b32.xlu0 %v1291, 127
    %v1340 = vpop.permute.xlu0 %1339
    %1341 = vrot.lane.b32.xlu0 %v1294, 127
    %v1342 = vpop.permute.xlu0 %1341
    %v1343 = vsub.f32 %v1296, %v1304
    %v1344 = vsub.f32 %v1298, %v1306
    %v1345 = vsub.f32 %v1300, %v1308
    %v1346 = vsub.f32 %v1302, %v1310
    %v1347 = vmul.f32 %v1312, 2.0
    %v1348 = vmul.f32 %v1314, 2.0
    %v1349 = vmul.f32 %v1316, 2.0
    %v1350 = vmul.f32 %v1318, 2.0
    %v1351 = vadd.f32 %v1343, %v1347
    %v1352 = vadd.f32 %v1344, %v1348
    %v1353 = vadd.f32 %v1345, %v1349
    %v1354 = vadd.f32 %v1346, %v1350
    %v1355 = vmul.f32 %v1320, 2.0
    %v1356 = vmul.f32 %v1322, 2.0
    %v1357 = vmul.f32 %v1324, 2.0
    %v1358 = vmul.f32 %v1326, 2.0
    %v1359 = vsub.f32 %v1351, %v1355
    %v1360 = vsub.f32 %v1352, %v1356
    %v1361 = vsub.f32 %v1353, %v1357
    %v1362 = vsub.f32 %v1354, %v1358
    %v1363 = vadd.f32 %v1359, %v1328
    %v1364 = vadd.f32 %v1360, %v1330
    %v1365 = vadd.f32 %v1361, %v1332
    %v1366 = vadd.f32 %v1362, %v1334
    %v1367 = vsub.f32 %v1363, %v1336
    %v1368 = vsub.f32 %v1364, %v1338
    %v1369 = vsub.f32 %v1365, %v1340
    %v1370 = vsub.f32 %v1366, %v1342
    %v1371 = vmul.f32 %v1286, 2.0
    %v1372 = vmul.f32 %v1285, 2.0
    %v1373 = vmul.f32 %v1284, 2.0
    %v1374 = vmul.f32 %v1283, 2.0
    %v1375 = vadd.f32 %v1296, %v1371
    %v1376 = vadd.f32 %v1298, %v1372
    %v1377 = vadd.f32 %v1300, %v1373
    %v1378 = vadd.f32 %v1302, %v1374
    %v1379 = vadd.f32 %v1375, %v1304
    %v1380 = vadd.f32 %v1376, %v1306
    %v1381 = vadd.f32 %v1377, %v1308
    %v1382 = vadd.f32 %v1378, %v1310
    %v1383 = vsub.f32 %v1379, %v1328
    %v1384 = vsub.f32 %v1380, %v1330
    %v1385 = vsub.f32 %v1381, %v1332
    %v1386 = vsub.f32 %v1382, %v1334
    %v1387 = vmul.f32 %v1293, 2.0
    %v1388 = vmul.f32 %v1292, 2.0
    %v1389 = vmul.f32 %v1291, 2.0
    %v1390 = vmul.f32 %v1294, 2.0
    %v1391 = vsub.f32 %v1383, %v1387
    %v1392 = vsub.f32 %v1384, %v1388
    %v1393 = vsub.f32 %v1385, %v1389
    %v1394 = vsub.f32 %v1386, %v1390
    %v1395 = vsub.f32 %v1391, %v1336
    %v1396 = vsub.f32 %v1392, %v1338
    %v1397 = vsub.f32 %v1393, %v1340
    %v1398 = vsub.f32 %v1394, %v1342
    %v1399 = vmul.f32 %v1367, %v1367
    %v1400 = vmul.f32 %v1368, %v1368
    %v1401 = vmul.f32 %v1369, %v1369
    %v1402 = vmul.f32 %v1370, %v1370
    %v1403 = vmul.f32 %v1395, %v1395
    %v1404 = vmul.f32 %v1396, %v1396
    %v1405 = vmul.f32 %v1397, %v1397
    %v1406 = vmul.f32 %v1398, %v1398
    %v1407 = vadd.f32 %v1399, %v1403
    %v1408 = vadd.f32 %v1400, %v1404
    %v1409 = vadd.f32 %v1401, %v1405
    %v1410 = vadd.f32 %v1402, %v1406
    %v1411 = vrsqrt.pop %v1407
    %v1412 = vmul.f32 %v1407, %v1411
    %vm1413 = vcmp.eq.f32.partialorder %v1407, inf
    %v1414 = vsel %vm1413, %v1407, %v1412
    %vm1415 = vcmp.eq.f32.partialorder %v1407, 0.0
    %v1416 = vand.u32 %v1407, 2147483648
    %v1417 = vsel %vm1415, %v1416, %v1414
    %v1418 = vrsqrt.pop %v1408
    %v1419 = vmul.f32 %v1408, %v1418
    %vm1420 = vcmp.eq.f32.partialorder %v1408, inf
    %v1421 = vsel %vm1420, %v1408, %v1419
    %vm1422 = vcmp.eq.f32.partialorder %v1408, 0.0
    %v1423 = vand.u32 %v1408, 2147483648
    %v1424 = vsel %vm1422, %v1423, %v1421
    %v1425 = vrsqrt.pop %v1409
    %v1426 = vmul.f32 %v1409, %v1425
    %vm1427 = vcmp.eq.f32.partialorder %v1409, inf
    %v1428 = vsel %vm1427, %v1409, %v1426
    %vm1429 = vcmp.eq.f32.partialorder %v1409, 0.0
    %v1430 = vand.u32 %v1409, 2147483648
    %v1431 = vsel %vm1429, %v1430, %v1428
    %v1432 = vrsqrt.pop %v1410
    %v1433 = vmul.f32 %v1410, %v1432
    %vm1434 = vcmp.eq.f32.partialorder %v1410, inf
    %v1435 = vsel %vm1434, %v1410, %v1433
    %vm1436 = vcmp.eq.f32.partialorder %v1410, 0.0
    %v1437 = vand.u32 %v1410, 2147483648
    %v1438 = vsel %vm1436, %v1437, %v1435
    %s1439 = scalar_lea.vmem [#allocation2], 64
    %v1440 = vld [vmem:[%s1439] sm:$0xff]
    %v1441 = vld [vmem:[%s1439 + $0x8] sm:$0xff]
    %s1442 = scalar_lea.vmem [#allocation3], 64
    %v1443 = vld [vmem:[%s1442] sm:$0xff]
    %v1444 = vld [vmem:[%s1442 + $0x8] sm:$0xff]
    %1445 = vrot.lane.b32.xlu0 %v1440, 1
    %v1446 = vpop.permute.xlu0 %1445
    %1447 = vrot.lane.b32.xlu0 %v1441, 1
    %v1448 = vpop.permute.xlu0 %1447
    %1449 = vrot.lane.b32.xlu0 %v1443, 1
    %v1450 = vpop.permute.xlu0 %1449
    %1451 = vrot.lane.b32.xlu0 %v1444, 1
    %v1452 = vpop.permute.xlu0 %1451
    %v1453 = vmul.f32 %v1446, 0.60653067
    %v1454 = vmul.f32 %v1448, 0.60653067
    %v1455 = vmul.f32 %v1450, 0.60653067
    %v1456 = vmul.f32 %v1452, 0.60653067
    %v1457 = vadd.f32 %v1440, %v1453
    %v1458 = vadd.f32 %v1441, %v1454
    %v1459 = vadd.f32 %v1443, %v1455
    %v1460 = vadd.f32 %v1444, %v1456
    %1461 = vrot.lane.b32.xlu0 %v1440, 127
    %v1462 = vpop.permute.xlu0 %1461
    %1463 = vrot.lane.b32.xlu0 %v1441, 127
    %v1464 = vpop.permute.xlu0 %1463
    %1465 = vrot.lane.b32.xlu0 %v1443, 127
    %v1466 = vpop.permute.xlu0 %1465
    %1467 = vrot.lane.b32.xlu0 %v1444, 127
    %v1468 = vpop.permute.xlu0 %1467
    %v1469 = vmul.f32 %v1462, 0.60653067
    %v1470 = vmul.f32 %v1464, 0.60653067
    %v1471 = vmul.f32 %v1466, 0.60653067
    %v1472 = vmul.f32 %v1468, 0.60653067
    %v1473 = vadd.f32 %v1457, %v1469
    %v1474 = vadd.f32 %v1458, %v1470
    %v1475 = vadd.f32 %v1459, %v1471
    %v1476 = vadd.f32 %v1460, %v1472
    %1477 = vrot.lane.b32.xlu0 %v1440, 2
    %v1478 = vpop.permute.xlu0 %1477
    %1479 = vrot.lane.b32.xlu0 %v1441, 2
    %v1480 = vpop.permute.xlu0 %1479
    %1481 = vrot.lane.b32.xlu0 %v1443, 2
    %v1482 = vpop.permute.xlu0 %1481
    %1483 = vrot.lane.b32.xlu0 %v1444, 2
    %v1484 = vpop.permute.xlu0 %1483
    %v1485 = vmul.f32 %v1478, 0.13533528
    %v1486 = vmul.f32 %v1480, 0.13533528
    %v1487 = vmul.f32 %v1482, 0.13533528
    %v1488 = vmul.f32 %v1484, 0.13533528
    %v1489 = vadd.f32 %v1473, %v1485
    %v1490 = vadd.f32 %v1474, %v1486
    %v1491 = vadd.f32 %v1475, %v1487
    %v1492 = vadd.f32 %v1476, %v1488
    %1493 = vrot.lane.b32.xlu0 %v1440, 126
    %v1494 = vpop.permute.xlu0 %1493
    %1495 = vrot.lane.b32.xlu0 %v1441, 126
    %v1496 = vpop.permute.xlu0 %1495
    %1497 = vrot.lane.b32.xlu0 %v1443, 126
    %v1498 = vpop.permute.xlu0 %1497
    %1499 = vrot.lane.b32.xlu0 %v1444, 126
    %v1500 = vpop.permute.xlu0 %1499
    %v1501 = vmul.f32 %v1494, 0.13533528
    %v1502 = vmul.f32 %v1496, 0.13533528
    %v1503 = vmul.f32 %v1498, 0.13533528
    %v1504 = vmul.f32 %v1500, 0.13533528
    %v1505 = vadd.f32 %v1489, %v1501
    %v1506 = vadd.f32 %v1490, %v1502
    %v1507 = vadd.f32 %v1491, %v1503
    %v1508 = vadd.f32 %v1492, %v1504
    %v1509 = vrot.slane %v1505, 7
    %v1510 = vrot.slane %v1506, 7
    %v1511 = vrot.slane %v1507, 7
    %v1512 = vrot.slane %v1508, 7
    %v1513 = vsel %vm289, %v1511, %v1512
    %v1514 = vsel %vm289, %v1510, %v1511
    %v1515 = vsel %vm289, %v1509, %v1510
    %v1516 = vsel %vm289, %v1512, %v1509
    %v1517 = vmul.f32 %v1516, 0.60653067
    %v1518 = vmul.f32 %v1515, 0.60653067
    %v1519 = vmul.f32 %v1514, 0.60653067
    %v1520 = vmul.f32 %v1513, 0.60653067
    %v1521 = vadd.f32 %v1505, %v1517
    %v1522 = vadd.f32 %v1506, %v1518
    %v1523 = vadd.f32 %v1507, %v1519
    %v1524 = vadd.f32 %v1508, %v1520
    %v1525 = vrot.slane %v1505, 1
    %v1526 = vrot.slane %v1506, 1
    %v1527 = vrot.slane %v1507, 1
    %v1528 = vrot.slane %v1508, 1
    %v1529 = vsel %vm306, %v1527, %v1528
    %v1530 = vsel %vm306, %v1526, %v1527
    %v1531 = vsel %vm306, %v1525, %v1526
    %v1532 = vsel %vm306, %v1528, %v1525
    %v1533 = vmul.f32 %v1531, 0.60653067
    %v1534 = vmul.f32 %v1530, 0.60653067
    %v1535 = vmul.f32 %v1529, 0.60653067
    %v1536 = vmul.f32 %v1532, 0.60653067
    %v1537 = vadd.f32 %v1521, %v1533
    %v1538 = vadd.f32 %v1522, %v1534
    %v1539 = vadd.f32 %v1523, %v1535
    %v1540 = vadd.f32 %v1524, %v1536
    %v1541 = vrot.slane %v1505, 6
    %v1542 = vrot.slane %v1506, 6
    %v1543 = vrot.slane %v1507, 6
    %v1544 = vrot.slane %v1508, 6
    %v1545 = vsel %vm323, %v1543, %v1544
    %v1546 = vsel %vm323, %v1542, %v1543
    %v1547 = vsel %vm323, %v1541, %v1542
    %v1548 = vsel %vm323, %v1544, %v1541
    %v1549 = vmul.f32 %v1548, 0.13533528
    %v1550 = vmul.f32 %v1547, 0.13533528
    %v1551 = vmul.f32 %v1546, 0.13533528
    %v1552 = vmul.f32 %v1545, 0.13533528
    %v1553 = vadd.f32 %v1537, %v1549
    %v1554 = vadd.f32 %v1538, %v1550
    %v1555 = vadd.f32 %v1539, %v1551
    %v1556 = vadd.f32 %v1540, %v1552
    %v1557 = vrot.slane %v1505, 2
    %v1558 = vrot.slane %v1506, 2
    %v1559 = vrot.slane %v1507, 2
    %v1560 = vrot.slane %v1508, 2
    %v1561 = vsel %vm340, %v1559, %v1560
    %v1562 = vsel %vm340, %v1558, %v1559
    %v1563 = vsel %vm340, %v1557, %v1558
    %v1564 = vsel %vm340, %v1560, %v1557
    %v1565 = vmul.f32 %v1563, 0.13533528
    %v1566 = vmul.f32 %v1562, 0.13533528
    %v1567 = vmul.f32 %v1561, 0.13533528
    %v1568 = vmul.f32 %v1564, 0.13533528
    %v1569 = vadd.f32 %v1553, %v1565
    %v1570 = vadd.f32 %v1554, %v1566
    %v1571 = vadd.f32 %v1555, %v1567
    %v1572 = vadd.f32 %v1556, %v1568
    %v1573 = vsel %vm201, %v1569, 0.0
    %v1574 = vsel %vm202, %v1570, 0.0
    %v1575 = vsel %vm203, %v1571, 0.0
    %v1576 = vsel %vm204, %v1572, 0.0
    %v1577 = vrot.slane %v1573, 7
    %v1578 = vrot.slane %v1574, 7
    %v1579 = vrot.slane %v1575, 7
    %v1580 = vrot.slane %v1576, 7
    %v1581 = vsel %vm289, %v1579, %v1580
    %v1582 = vsel %vm289, %v1578, %v1579
    %v1583 = vsel %vm289, %v1577, %v1578
    %v1584 = vsel %vm289, %v1580, %v1577
    %v1585 = vrot.slane %v1573, 1
    %v1586 = vrot.slane %v1574, 1
    %v1587 = vrot.slane %v1575, 1
    %v1588 = vrot.slane %v1576, 1
    %v1589 = vsel %vm306, %v1587, %v1588
    %v1590 = vsel %vm306, %v1586, %v1587
    %v1591 = vsel %vm306, %v1585, %v1586
    %v1592 = vsel %vm306, %v1588, %v1585
    %1593 = vrot.lane.b32.xlu0 %v1584, 1
    %v1594 = vpop.permute.xlu0 %1593
    %1595 = vrot.lane.b32.xlu0 %v1583, 1
    %v1596 = vpop.permute.xlu0 %1595
    %1597 = vrot.lane.b32.xlu0 %v1582, 1
    %v1598 = vpop.permute.xlu0 %1597
    %1599 = vrot.lane.b32.xlu0 %v1581, 1
    %v1600 = vpop.permute.xlu0 %1599
    %1601 = vrot.lane.b32.xlu0 %v1584, 127
    %v1602 = vpop.permute.xlu0 %1601
    %1603 = vrot.lane.b32.xlu0 %v1583, 127
    %v1604 = vpop.permute.xlu0 %1603
    %1605 = vrot.lane.b32.xlu0 %v1582, 127
    %v1606 = vpop.permute.xlu0 %1605
    %1607 = vrot.lane.b32.xlu0 %v1581, 127
    %v1608 = vpop.permute.xlu0 %1607
    %1609 = vrot.lane.b32.xlu0 %v1573, 1
    %v1610 = vpop.permute.xlu0 %1609
    %1611 = vrot.lane.b32.xlu0 %v1574, 1
    %v1612 = vpop.permute.xlu0 %1611
    %1613 = vrot.lane.b32.xlu0 %v1575, 1
    %v1614 = vpop.permute.xlu0 %1613
    %1615 = vrot.lane.b32.xlu0 %v1576, 1
    %v1616 = vpop.permute.xlu0 %1615
    %1617 = vrot.lane.b32.xlu0 %v1573, 127
    %v1618 = vpop.permute.xlu0 %1617
    %1619 = vrot.lane.b32.xlu0 %v1574, 127
    %v1620 = vpop.permute.xlu0 %1619
    %1621 = vrot.lane.b32.xlu0 %v1575, 127
    %v1622 = vpop.permute.xlu0 %1621
    %1623 = vrot.lane.b32.xlu0 %v1576, 127
    %v1624 = vpop.permute.xlu0 %1623
    %1625 = vrot.lane.b32.xlu0 %v1591, 1
    %v1626 = vpop.permute.xlu0 %1625
    %1627 = vrot.lane.b32.xlu0 %v1590, 1
    %v1628 = vpop.permute.xlu0 %1627
    %1629 = vrot.lane.b32.xlu0 %v1589, 1
    %v1630 = vpop.permute.xlu0 %1629
    %1631 = vrot.lane.b32.xlu0 %v1592, 1
    %v1632 = vpop.permute.xlu0 %1631
    %1633 = vrot.lane.b32.xlu0 %v1591, 127
    %v1634 = vpop.permute.xlu0 %1633
    %1635 = vrot.lane.b32.xlu0 %v1590, 127
    %v1636 = vpop.permute.xlu0 %1635
    %1637 = vrot.lane.b32.xlu0 %v1589, 127
    %v1638 = vpop.permute.xlu0 %1637
    %1639 = vrot.lane.b32.xlu0 %v1592, 127
    %v1640 = vpop.permute.xlu0 %1639
    %v1641 = vsub.f32 %v1594, %v1602
    %v1642 = vsub.f32 %v1596, %v1604
    %v1643 = vsub.f32 %v1598, %v1606
    %v1644 = vsub.f32 %v1600, %v1608
    %v1645 = vmul.f32 %v1610, 2.0
    %v1646 = vmul.f32 %v1612, 2.0
    %v1647 = vmul.f32 %v1614, 2.0
    %v1648 = vmul.f32 %v1616, 2.0
    %v1649 = vadd.f32 %v1641, %v1645
    %v1650 = vadd.f32 %v1642, %v1646
    %v1651 = vadd.f32 %v1643, %v1647
    %v1652 = vadd.f32 %v1644, %v1648
    %v1653 = vmul.f32 %v1618, 2.0
    %v1654 = vmul.f32 %v1620, 2.0
    %v1655 = vmul.f32 %v1622, 2.0
    %v1656 = vmul.f32 %v1624, 2.0
    %v1657 = vsub.f32 %v1649, %v1653
    %v1658 = vsub.f32 %v1650, %v1654
    %v1659 = vsub.f32 %v1651, %v1655
    %v1660 = vsub.f32 %v1652, %v1656
    %v1661 = vadd.f32 %v1657, %v1626
    %v1662 = vadd.f32 %v1658, %v1628
    %v1663 = vadd.f32 %v1659, %v1630
    %v1664 = vadd.f32 %v1660, %v1632
    %v1665 = vsub.f32 %v1661, %v1634
    %v1666 = vsub.f32 %v1662, %v1636
    %v1667 = vsub.f32 %v1663, %v1638
    %v1668 = vsub.f32 %v1664, %v1640
    %v1669 = vmul.f32 %v1584, 2.0
    %v1670 = vmul.f32 %v1583, 2.0
    %v1671 = vmul.f32 %v1582, 2.0
    %v1672 = vmul.f32 %v1581, 2.0
    %v1673 = vadd.f32 %v1594, %v1669
    %v1674 = vadd.f32 %v1596, %v1670
    %v1675 = vadd.f32 %v1598, %v1671
    %v1676 = vadd.f32 %v1600, %v1672
    %v1677 = vadd.f32 %v1673, %v1602
    %v1678 = vadd.f32 %v1674, %v1604
    %v1679 = vadd.f32 %v1675, %v1606
    %v1680 = vadd.f32 %v1676, %v1608
    %v1681 = vsub.f32 %v1677, %v1626
    %v1682 = vsub.f32 %v1678, %v1628
    %v1683 = vsub.f32 %v1679, %v1630
    %v1684 = vsub.f32 %v1680, %v1632
    %v1685 = vmul.f32 %v1591, 2.0
    %v1686 = vmul.f32 %v1590, 2.0
    %v1687 = vmul.f32 %v1589, 2.0
    %v1688 = vmul.f32 %v1592, 2.0
    %v1689 = vsub.f32 %v1681, %v1685
    %v1690 = vsub.f32 %v1682, %v1686
    %v1691 = vsub.f32 %v1683, %v1687
    %v1692 = vsub.f32 %v1684, %v1688
    %v1693 = vsub.f32 %v1689, %v1634
    %v1694 = vsub.f32 %v1690, %v1636
    %v1695 = vsub.f32 %v1691, %v1638
    %v1696 = vsub.f32 %v1692, %v1640
    %v1697 = vmul.f32 %v1665, %v1665
    %v1698 = vmul.f32 %v1666, %v1666
    %v1699 = vmul.f32 %v1667, %v1667
    %v1700 = vmul.f32 %v1668, %v1668
    %v1701 = vmul.f32 %v1693, %v1693
    %v1702 = vmul.f32 %v1694, %v1694
    %v1703 = vmul.f32 %v1695, %v1695
    %v1704 = vmul.f32 %v1696, %v1696
    %v1705 = vadd.f32 %v1697, %v1701
    %v1706 = vadd.f32 %v1698, %v1702
    %v1707 = vadd.f32 %v1699, %v1703
    %v1708 = vadd.f32 %v1700, %v1704
    %v1709 = vrsqrt.pop %v1705
    %v1710 = vmul.f32 %v1705, %v1709
    %vm1711 = vcmp.eq.f32.partialorder %v1705, inf
    %v1712 = vsel %vm1711, %v1705, %v1710
    %vm1713 = vcmp.eq.f32.partialorder %v1705, 0.0
    %v1714 = vand.u32 %v1705, 2147483648
    %v1715 = vsel %vm1713, %v1714, %v1712
    %v1716 = vrsqrt.pop %v1706
    %v1717 = vmul.f32 %v1706, %v1716
    %vm1718 = vcmp.eq.f32.partialorder %v1706, inf
    %v1719 = vsel %vm1718, %v1706, %v1717
    %vm1720 = vcmp.eq.f32.partialorder %v1706, 0.0
    %v1721 = vand.u32 %v1706, 2147483648
    %v1722 = vsel %vm1720, %v1721, %v1719
    %v1723 = vrsqrt.pop %v1707
    %v1724 = vmul.f32 %v1707, %v1723
    %vm1725 = vcmp.eq.f32.partialorder %v1707, inf
    %v1726 = vsel %vm1725, %v1707, %v1724
    %vm1727 = vcmp.eq.f32.partialorder %v1707, 0.0
    %v1728 = vand.u32 %v1707, 2147483648
    %v1729 = vsel %vm1727, %v1728, %v1726
    %v1730 = vrsqrt.pop %v1708
    %v1731 = vmul.f32 %v1708, %v1730
    %vm1732 = vcmp.eq.f32.partialorder %v1708, inf
    %v1733 = vsel %vm1732, %v1708, %v1731
    %vm1734 = vcmp.eq.f32.partialorder %v1708, 0.0
    %v1735 = vand.u32 %v1708, 2147483648
    %v1736 = vsel %vm1734, %v1735, %v1733
    %v1737 = vadd.f32 %v1417, %v1715
    %v1738 = vadd.f32 %v1424, %v1722
    %v1739 = vadd.f32 %v1431, %v1729
    %v1740 = vadd.f32 %v1438, %v1736
    %v1741 = vadd.f32 %v1367, %v1665
    %v1742 = vadd.f32 %v1368, %v1666
    %v1743 = vadd.f32 %v1369, %v1667
    %v1744 = vadd.f32 %v1370, %v1668
    %v1745 = vadd.f32 %v1395, %v1693
    %v1746 = vadd.f32 %v1396, %v1694
    %v1747 = vadd.f32 %v1397, %v1695
    %v1748 = vadd.f32 %v1398, %v1696
    %s1749 = scalar_lea.vmem [#allocation2], 80
    %v1750 = vld [vmem:[%s1749] sm:$0xff]
    %v1751 = vld [vmem:[%s1749 + $0x8] sm:$0xff]
    %s1752 = scalar_lea.vmem [#allocation3], 80
    %v1753 = vld [vmem:[%s1752] sm:$0xff]
    %v1754 = vld [vmem:[%s1752 + $0x8] sm:$0xff]
    %1755 = vrot.lane.b32.xlu0 %v1750, 1
    %v1756 = vpop.permute.xlu0 %1755
    %1757 = vrot.lane.b32.xlu0 %v1751, 1
    %v1758 = vpop.permute.xlu0 %1757
    %1759 = vrot.lane.b32.xlu0 %v1753, 1
    %v1760 = vpop.permute.xlu0 %1759
    %1761 = vrot.lane.b32.xlu0 %v1754, 1
    %v1762 = vpop.permute.xlu0 %1761
    %v1763 = vmul.f32 %v1756, 0.60653067
    %v1764 = vmul.f32 %v1758, 0.60653067
    %v1765 = vmul.f32 %v1760, 0.60653067
    %v1766 = vmul.f32 %v1762, 0.60653067
    %v1767 = vadd.f32 %v1750, %v1763
    %v1768 = vadd.f32 %v1751, %v1764
    %v1769 = vadd.f32 %v1753, %v1765
    %v1770 = vadd.f32 %v1754, %v1766
    %1771 = vrot.lane.b32.xlu0 %v1750, 127
    %v1772 = vpop.permute.xlu0 %1771
    %1773 = vrot.lane.b32.xlu0 %v1751, 127
    %v1774 = vpop.permute.xlu0 %1773
    %1775 = vrot.lane.b32.xlu0 %v1753, 127
    %v1776 = vpop.permute.xlu0 %1775
    %1777 = vrot.lane.b32.xlu0 %v1754, 127
    %v1778 = vpop.permute.xlu0 %1777
    %v1779 = vmul.f32 %v1772, 0.60653067
    %v1780 = vmul.f32 %v1774, 0.60653067
    %v1781 = vmul.f32 %v1776, 0.60653067
    %v1782 = vmul.f32 %v1778, 0.60653067
    %v1783 = vadd.f32 %v1767, %v1779
    %v1784 = vadd.f32 %v1768, %v1780
    %v1785 = vadd.f32 %v1769, %v1781
    %v1786 = vadd.f32 %v1770, %v1782
    %1787 = vrot.lane.b32.xlu0 %v1750, 2
    %v1788 = vpop.permute.xlu0 %1787
    %1789 = vrot.lane.b32.xlu0 %v1751, 2
    %v1790 = vpop.permute.xlu0 %1789
    %1791 = vrot.lane.b32.xlu0 %v1753, 2
    %v1792 = vpop.permute.xlu0 %1791
    %1793 = vrot.lane.b32.xlu0 %v1754, 2
    %v1794 = vpop.permute.xlu0 %1793
    %v1795 = vmul.f32 %v1788, 0.13533528
    %v1796 = vmul.f32 %v1790, 0.13533528
    %v1797 = vmul.f32 %v1792, 0.13533528
    %v1798 = vmul.f32 %v1794, 0.13533528
    %v1799 = vadd.f32 %v1783, %v1795
    %v1800 = vadd.f32 %v1784, %v1796
    %v1801 = vadd.f32 %v1785, %v1797
    %v1802 = vadd.f32 %v1786, %v1798
    %1803 = vrot.lane.b32.xlu0 %v1750, 126
    %v1804 = vpop.permute.xlu0 %1803
    %1805 = vrot.lane.b32.xlu0 %v1751, 126
    %v1806 = vpop.permute.xlu0 %1805
    %1807 = vrot.lane.b32.xlu0 %v1753, 126
    %v1808 = vpop.permute.xlu0 %1807
    %1809 = vrot.lane.b32.xlu0 %v1754, 126
    %v1810 = vpop.permute.xlu0 %1809
    %v1811 = vmul.f32 %v1804, 0.13533528
    %v1812 = vmul.f32 %v1806, 0.13533528
    %v1813 = vmul.f32 %v1808, 0.13533528
    %v1814 = vmul.f32 %v1810, 0.13533528
    %v1815 = vadd.f32 %v1799, %v1811
    %v1816 = vadd.f32 %v1800, %v1812
    %v1817 = vadd.f32 %v1801, %v1813
    %v1818 = vadd.f32 %v1802, %v1814
    %v1819 = vrot.slane %v1815, 7
    %v1820 = vrot.slane %v1816, 7
    %v1821 = vrot.slane %v1817, 7
    %v1822 = vrot.slane %v1818, 7
    %v1823 = vsel %vm289, %v1821, %v1822
    %v1824 = vsel %vm289, %v1820, %v1821
    %v1825 = vsel %vm289, %v1819, %v1820
    %v1826 = vsel %vm289, %v1822, %v1819
    %v1827 = vmul.f32 %v1826, 0.60653067
    %v1828 = vmul.f32 %v1825, 0.60653067
    %v1829 = vmul.f32 %v1824, 0.60653067
    %v1830 = vmul.f32 %v1823, 0.60653067
    %v1831 = vadd.f32 %v1815, %v1827
    %v1832 = vadd.f32 %v1816, %v1828
    %v1833 = vadd.f32 %v1817, %v1829
    %v1834 = vadd.f32 %v1818, %v1830
    %v1835 = vrot.slane %v1815, 1
    %v1836 = vrot.slane %v1816, 1
    %v1837 = vrot.slane %v1817, 1
    %v1838 = vrot.slane %v1818, 1
    %v1839 = vsel %vm306, %v1837, %v1838
    %v1840 = vsel %vm306, %v1836, %v1837
    %v1841 = vsel %vm306, %v1835, %v1836
    %v1842 = vsel %vm306, %v1838, %v1835
    %v1843 = vmul.f32 %v1841, 0.60653067
    %v1844 = vmul.f32 %v1840, 0.60653067
    %v1845 = vmul.f32 %v1839, 0.60653067
    %v1846 = vmul.f32 %v1842, 0.60653067
    %v1847 = vadd.f32 %v1831, %v1843
    %v1848 = vadd.f32 %v1832, %v1844
    %v1849 = vadd.f32 %v1833, %v1845
    %v1850 = vadd.f32 %v1834, %v1846
    %v1851 = vrot.slane %v1815, 6
    %v1852 = vrot.slane %v1816, 6
    %v1853 = vrot.slane %v1817, 6
    %v1854 = vrot.slane %v1818, 6
    %v1855 = vsel %vm323, %v1853, %v1854
    %v1856 = vsel %vm323, %v1852, %v1853
    %v1857 = vsel %vm323, %v1851, %v1852
    %v1858 = vsel %vm323, %v1854, %v1851
    %v1859 = vmul.f32 %v1858, 0.13533528
    %v1860 = vmul.f32 %v1857, 0.13533528
    %v1861 = vmul.f32 %v1856, 0.13533528
    %v1862 = vmul.f32 %v1855, 0.13533528
    %v1863 = vadd.f32 %v1847, %v1859
    %v1864 = vadd.f32 %v1848, %v1860
    %v1865 = vadd.f32 %v1849, %v1861
    %v1866 = vadd.f32 %v1850, %v1862
    %v1867 = vrot.slane %v1815, 2
    %v1868 = vrot.slane %v1816, 2
    %v1869 = vrot.slane %v1817, 2
    %v1870 = vrot.slane %v1818, 2
    %v1871 = vsel %vm340, %v1869, %v1870
    %v1872 = vsel %vm340, %v1868, %v1869
    %v1873 = vsel %vm340, %v1867, %v1868
    %v1874 = vsel %vm340, %v1870, %v1867
    %v1875 = vmul.f32 %v1873, 0.13533528
    %v1876 = vmul.f32 %v1872, 0.13533528
    %v1877 = vmul.f32 %v1871, 0.13533528
    %v1878 = vmul.f32 %v1874, 0.13533528
    %v1879 = vadd.f32 %v1863, %v1875
    %v1880 = vadd.f32 %v1864, %v1876
    %v1881 = vadd.f32 %v1865, %v1877
    %v1882 = vadd.f32 %v1866, %v1878
    %v1883 = vsel %vm201, %v1879, 0.0
    %v1884 = vsel %vm202, %v1880, 0.0
    %v1885 = vsel %vm203, %v1881, 0.0
    %v1886 = vsel %vm204, %v1882, 0.0
    %v1887 = vrot.slane %v1883, 7
    %v1888 = vrot.slane %v1884, 7
    %v1889 = vrot.slane %v1885, 7
    %v1890 = vrot.slane %v1886, 7
    %v1891 = vsel %vm289, %v1889, %v1890
    %v1892 = vsel %vm289, %v1888, %v1889
    %v1893 = vsel %vm289, %v1887, %v1888
    %v1894 = vsel %vm289, %v1890, %v1887
    %v1895 = vrot.slane %v1883, 1
    %v1896 = vrot.slane %v1884, 1
    %v1897 = vrot.slane %v1885, 1
    %v1898 = vrot.slane %v1886, 1
    %v1899 = vsel %vm306, %v1897, %v1898
    %v1900 = vsel %vm306, %v1896, %v1897
    %v1901 = vsel %vm306, %v1895, %v1896
    %v1902 = vsel %vm306, %v1898, %v1895
    %1903 = vrot.lane.b32.xlu0 %v1894, 1
    %v1904 = vpop.permute.xlu0 %1903
    %1905 = vrot.lane.b32.xlu0 %v1893, 1
    %v1906 = vpop.permute.xlu0 %1905
    %1907 = vrot.lane.b32.xlu0 %v1892, 1
    %v1908 = vpop.permute.xlu0 %1907
    %1909 = vrot.lane.b32.xlu0 %v1891, 1
    %v1910 = vpop.permute.xlu0 %1909
    %1911 = vrot.lane.b32.xlu0 %v1894, 127
    %v1912 = vpop.permute.xlu0 %1911
    %1913 = vrot.lane.b32.xlu0 %v1893, 127
    %v1914 = vpop.permute.xlu0 %1913
    %1915 = vrot.lane.b32.xlu0 %v1892, 127
    %v1916 = vpop.permute.xlu0 %1915
    %1917 = vrot.lane.b32.xlu0 %v1891, 127
    %v1918 = vpop.permute.xlu0 %1917
    %1919 = vrot.lane.b32.xlu0 %v1883, 1
    %v1920 = vpop.permute.xlu0 %1919
    %1921 = vrot.lane.b32.xlu0 %v1884, 1
    %v1922 = vpop.permute.xlu0 %1921
    %1923 = vrot.lane.b32.xlu0 %v1885, 1
    %v1924 = vpop.permute.xlu0 %1923
    %1925 = vrot.lane.b32.xlu0 %v1886, 1
    %v1926 = vpop.permute.xlu0 %1925
    %1927 = vrot.lane.b32.xlu0 %v1883, 127
    %v1928 = vpop.permute.xlu0 %1927
    %1929 = vrot.lane.b32.xlu0 %v1884, 127
    %v1930 = vpop.permute.xlu0 %1929
    %1931 = vrot.lane.b32.xlu0 %v1885, 127
    %v1932 = vpop.permute.xlu0 %1931
    %1933 = vrot.lane.b32.xlu0 %v1886, 127
    %v1934 = vpop.permute.xlu0 %1933
    %1935 = vrot.lane.b32.xlu0 %v1901, 1
    %v1936 = vpop.permute.xlu0 %1935
    %1937 = vrot.lane.b32.xlu0 %v1900, 1
    %v1938 = vpop.permute.xlu0 %1937
    %1939 = vrot.lane.b32.xlu0 %v1899, 1
    %v1940 = vpop.permute.xlu0 %1939
    %1941 = vrot.lane.b32.xlu0 %v1902, 1
    %v1942 = vpop.permute.xlu0 %1941
    %1943 = vrot.lane.b32.xlu0 %v1901, 127
    %v1944 = vpop.permute.xlu0 %1943
    %1945 = vrot.lane.b32.xlu0 %v1900, 127
    %v1946 = vpop.permute.xlu0 %1945
    %1947 = vrot.lane.b32.xlu0 %v1899, 127
    %v1948 = vpop.permute.xlu0 %1947
    %1949 = vrot.lane.b32.xlu0 %v1902, 127
    %v1950 = vpop.permute.xlu0 %1949
    %v1951 = vsub.f32 %v1904, %v1912
    %v1952 = vsub.f32 %v1906, %v1914
    %v1953 = vsub.f32 %v1908, %v1916
    %v1954 = vsub.f32 %v1910, %v1918
    %v1955 = vmul.f32 %v1920, 2.0
    %v1956 = vmul.f32 %v1922, 2.0
    %v1957 = vmul.f32 %v1924, 2.0
    %v1958 = vmul.f32 %v1926, 2.0
    %v1959 = vadd.f32 %v1951, %v1955
    %v1960 = vadd.f32 %v1952, %v1956
    %v1961 = vadd.f32 %v1953, %v1957
    %v1962 = vadd.f32 %v1954, %v1958
    %v1963 = vmul.f32 %v1928, 2.0
    %v1964 = vmul.f32 %v1930, 2.0
    %v1965 = vmul.f32 %v1932, 2.0
    %v1966 = vmul.f32 %v1934, 2.0
    %v1967 = vsub.f32 %v1959, %v1963
    %v1968 = vsub.f32 %v1960, %v1964
    %v1969 = vsub.f32 %v1961, %v1965
    %v1970 = vsub.f32 %v1962, %v1966
    %v1971 = vadd.f32 %v1967, %v1936
    %v1972 = vadd.f32 %v1968, %v1938
    %v1973 = vadd.f32 %v1969, %v1940
    %v1974 = vadd.f32 %v1970, %v1942
    %v1975 = vsub.f32 %v1971, %v1944
    %v1976 = vsub.f32 %v1972, %v1946
    %v1977 = vsub.f32 %v1973, %v1948
    %v1978 = vsub.f32 %v1974, %v1950
    %v1979 = vmul.f32 %v1894, 2.0
    %v1980 = vmul.f32 %v1893, 2.0
    %v1981 = vmul.f32 %v1892, 2.0
    %v1982 = vmul.f32 %v1891, 2.0
    %v1983 = vadd.f32 %v1904, %v1979
    %v1984 = vadd.f32 %v1906, %v1980
    %v1985 = vadd.f32 %v1908, %v1981
    %v1986 = vadd.f32 %v1910, %v1982
    %v1987 = vadd.f32 %v1983, %v1912
    %v1988 = vadd.f32 %v1984, %v1914
    %v1989 = vadd.f32 %v1985, %v1916
    %v1990 = vadd.f32 %v1986, %v1918
    %v1991 = vsub.f32 %v1987, %v1936
    %v1992 = vsub.f32 %v1988, %v1938
    %v1993 = vsub.f32 %v1989, %v1940
    %v1994 = vsub.f32 %v1990, %v1942
    %v1995 = vmul.f32 %v1901, 2.0
    %v1996 = vmul.f32 %v1900, 2.0
    %v1997 = vmul.f32 %v1899, 2.0
    %v1998 = vmul.f32 %v1902, 2.0
    %v1999 = vsub.f32 %v1991, %v1995
    %v2000 = vsub.f32 %v1992, %v1996
    %v2001 = vsub.f32 %v1993, %v1997
    %v2002 = vsub.f32 %v1994, %v1998
    %v2003 = vsub.f32 %v1999, %v1944
    %v2004 = vsub.f32 %v2000, %v1946
    %v2005 = vsub.f32 %v2001, %v1948
    %v2006 = vsub.f32 %v2002, %v1950
    %v2007 = vmul.f32 %v1975, %v1975
    %v2008 = vmul.f32 %v1976, %v1976
    %v2009 = vmul.f32 %v1977, %v1977
    %v2010 = vmul.f32 %v1978, %v1978
    %v2011 = vmul.f32 %v2003, %v2003
    %v2012 = vmul.f32 %v2004, %v2004
    %v2013 = vmul.f32 %v2005, %v2005
    %v2014 = vmul.f32 %v2006, %v2006
    %v2015 = vadd.f32 %v2007, %v2011
    %v2016 = vadd.f32 %v2008, %v2012
    %v2017 = vadd.f32 %v2009, %v2013
    %v2018 = vadd.f32 %v2010, %v2014
    %v2019 = vrsqrt.pop %v2015
    %v2020 = vmul.f32 %v2015, %v2019
    %vm2021 = vcmp.eq.f32.partialorder %v2015, inf
    %v2022 = vsel %vm2021, %v2015, %v2020
    %vm2023 = vcmp.eq.f32.partialorder %v2015, 0.0
    %v2024 = vand.u32 %v2015, 2147483648
    %v2025 = vsel %vm2023, %v2024, %v2022
    %v2026 = vrsqrt.pop %v2016
    %v2027 = vmul.f32 %v2016, %v2026
    %vm2028 = vcmp.eq.f32.partialorder %v2016, inf
    %v2029 = vsel %vm2028, %v2016, %v2027
    %vm2030 = vcmp.eq.f32.partialorder %v2016, 0.0
    %v2031 = vand.u32 %v2016, 2147483648
    %v2032 = vsel %vm2030, %v2031, %v2029
    %v2033 = vrsqrt.pop %v2017
    %v2034 = vmul.f32 %v2017, %v2033
    %vm2035 = vcmp.eq.f32.partialorder %v2017, inf
    %v2036 = vsel %vm2035, %v2017, %v2034
    %vm2037 = vcmp.eq.f32.partialorder %v2017, 0.0
    %v2038 = vand.u32 %v2017, 2147483648
    %v2039 = vsel %vm2037, %v2038, %v2036
    %v2040 = vrsqrt.pop %v2018
    %v2041 = vmul.f32 %v2018, %v2040
    %vm2042 = vcmp.eq.f32.partialorder %v2018, inf
    %v2043 = vsel %vm2042, %v2018, %v2041
    %vm2044 = vcmp.eq.f32.partialorder %v2018, 0.0
    %v2045 = vand.u32 %v2018, 2147483648
    %v2046 = vsel %vm2044, %v2045, %v2043
    %v2047 = vadd.f32 %v1737, %v2025
    %v2048 = vadd.f32 %v1738, %v2032
    %v2049 = vadd.f32 %v1739, %v2039
    %v2050 = vadd.f32 %v1740, %v2046
    %v2051 = vadd.f32 %v1741, %v1975
    %v2052 = vadd.f32 %v1742, %v1976
    %v2053 = vadd.f32 %v1743, %v1977
    %v2054 = vadd.f32 %v1744, %v1978
    %v2055 = vadd.f32 %v1745, %v2003
    %v2056 = vadd.f32 %v1746, %v2004
    %v2057 = vadd.f32 %v1747, %v2005
    %v2058 = vadd.f32 %v1748, %v2006
    %v2059 = vsel %vm201, %v2047, 0.0
    %v2060 = vsel %vm202, %v2048, 0.0
    %v2061 = vsel %vm203, %v2049, 0.0
    %v2062 = vsel %vm204, %v2050, 0.0
    %v2063 = vand.u32 2147483647, %v1129
    %v2064 = vand.u32 2147483647, %v1130
    %v2065 = vand.u32 2147483647, %v1131
    %v2066 = vand.u32 2147483647, %v1132
    %v2067 = vand.u32 2147483647, %v1133
    %v2068 = vand.u32 2147483647, %v1134
    %v2069 = vand.u32 2147483647, %v1135
    %v2070 = vand.u32 2147483647, %v1136
    %vm2071 = vcmp.ge.f32.partialorder %v1129, 0.0
    %vm2072 = vcmp.ge.f32.partialorder %v1130, 0.0
    %vm2073 = vcmp.ge.f32.partialorder %v1131, 0.0
    %vm2074 = vcmp.ge.f32.partialorder %v1132, 0.0
    %vm2075 = vcmp.ge.f32.partialorder %v1133, 0.0
    %vm2076 = vcmp.ge.f32.partialorder %v1134, 0.0
    %vm2077 = vcmp.ge.f32.partialorder %v1135, 0.0
    %vm2078 = vcmp.ge.f32.partialorder %v1136, 0.0
    %v2079 = vsel %vm2071, 0, 4
    %v2080 = vsel %vm2072, 0, 4
    %v2081 = vsel %vm2073, 0, 4
    %v2082 = vsel %vm2074, 0, 4
    %v2083 = vsel %vm2075, 2, 4294967294
    %v2084 = vsel %vm2076, 2, 4294967294
    %v2085 = vsel %vm2077, 2, 4294967294
    %v2086 = vsel %vm2078, 2, 4294967294
    %v2087 = vsel %vm2075, 1, 4294967295
    %v2088 = vsel %vm2076, 1, 4294967295
    %v2089 = vsel %vm2077, 1, 4294967295
    %v2090 = vsel %vm2078, 1, 4294967295
    %v2091 = vsel %vm2075, 3, 4294967293
    %v2092 = vsel %vm2076, 3, 4294967293
    %v2093 = vsel %vm2077, 3, 4294967293
    %v2094 = vsel %vm2078, 3, 4294967293
    %v2095 = vsel %vm2071, %v2087, %v2091
    %v2096 = vsel %vm2072, %v2088, %v2092
    %v2097 = vsel %vm2073, %v2089, %v2093
    %v2098 = vsel %vm2074, %v2090, %v2094
    %v2099 = vmul.f32 %v2063, 0.41421357
    %v2100 = vmul.f32 %v2064, 0.41421357
    %v2101 = vmul.f32 %v2065, 0.41421357
    %v2102 = vmul.f32 %v2066, 0.41421357
    %vm2103 = vcmp.le.f32.partialorder %v2067, %v2099
    %vm2104 = vcmp.le.f32.partialorder %v2068, %v2100
    %vm2105 = vcmp.le.f32.partialorder %v2069, %v2101
    %vm2106 = vcmp.le.f32.partialorder %v2070, %v2102
    %v2107 = vmul.f32 %v2063, 2.4142137
    %v2108 = vmul.f32 %v2064, 2.4142137
    %v2109 = vmul.f32 %v2065, 2.4142137
    %v2110 = vmul.f32 %v2066, 2.4142137
    %vm2111 = vcmp.ge.f32.partialorder %v2067, %v2107
    %vm2112 = vcmp.ge.f32.partialorder %v2068, %v2108
    %vm2113 = vcmp.ge.f32.partialorder %v2069, %v2109
    %vm2114 = vcmp.ge.f32.partialorder %v2070, %v2110
    %v2115 = vsel %vm2111, %v2083, %v2095
    %v2116 = vsel %vm2112, %v2084, %v2096
    %v2117 = vsel %vm2113, %v2085, %v2097
    %v2118 = vsel %vm2114, %v2086, %v2098
    %v2119 = vsel %vm2103, %v2079, %v2115
    %v2120 = vsel %vm2104, %v2080, %v2116
    %v2121 = vsel %vm2105, %v2081, %v2117
    %v2122 = vsel %vm2106, %v2082, %v2118
    %v2123 = vadd.s32 %v2119, 4
    %v2124 = vadd.s32 %v2120, 4
    %v2125 = vadd.s32 %v2121, 4
    %v2126 = vadd.s32 %v2122, 4
    %vm2127 = vcmp.lt.s32.totalorder %v2123, 0
    %v2128 = vsub.s32 0, %v2123
    %v2129 = vsel %vm2127, %v2128, %v2123
    %v2130 = vshrl.u32 %v2129, 3
    %v2131 = vand.u32 %v2129, 7
    %v2132 = vsub.s32 0, %v2131
    %v2133 = vsel %vm2127, %v2132, %v2131
    %vm2134 = vcmp.lt.s32.totalorder %v2124, 0
    %v2135 = vsub.s32 0, %v2124
    %v2136 = vsel %vm2134, %v2135, %v2124
    %v2137 = vshrl.u32 %v2136, 3
    %v2138 = vand.u32 %v2136, 7
    %v2139 = vsub.s32 0, %v2138
    %v2140 = vsel %vm2134, %v2139, %v2138
    %vm2141 = vcmp.lt.s32.totalorder %v2125, 0
    %v2142 = vsub.s32 0, %v2125
    %v2143 = vsel %vm2141, %v2142, %v2125
    %v2144 = vshrl.u32 %v2143, 3
    %v2145 = vand.u32 %v2143, 7
    %v2146 = vsub.s32 0, %v2145
    %v2147 = vsel %vm2141, %v2146, %v2145
    %vm2148 = vcmp.lt.s32.totalorder %v2126, 0
    %v2149 = vsub.s32 0, %v2126
    %v2150 = vsel %vm2148, %v2149, %v2126
    %v2151 = vshrl.u32 %v2150, 3
    %v2152 = vand.u32 %v2150, 7
    %v2153 = vsub.s32 0, %v2152
    %v2154 = vsel %vm2148, %v2153, %v2152
    %vm2155 = vcmp.ne.s32.totalorder %v2133, 0
    %vm2156 = vcmp.ne.s32.totalorder %v2140, 0
    %vm2157 = vcmp.ne.s32.totalorder %v2147, 0
    %vm2158 = vcmp.ne.s32.totalorder %v2154, 0
    %vm2159 = vcmp.lt.s32.totalorder %v2133, 0
    %vm2160 = vcmp.lt.s32.totalorder %v2140, 0
    %vm2161 = vcmp.lt.s32.totalorder %v2147, 0
    %vm2162 = vcmp.lt.s32.totalorder %v2154, 0
    %vm2163 = vmand %vm2159, %vm2155
    %vm2164 = vmand %vm2160, %vm2156
    %vm2165 = vmand %vm2161, %vm2157
    %vm2166 = vmand %vm2162, %vm2158
    %v2167 = vadd.s32 %v2133, 8
    %v2168 = vadd.s32 %v2140, 8
    %v2169 = vadd.s32 %v2147, 8
    %v2170 = vadd.s32 %v2154, 8
    %v2171 = vsel %vm2163, %v2167, %v2133
    %v2172 = vsel %vm2164, %v2168, %v2140
    %v2173 = vsel %vm2165, %v2169, %v2147
    %v2174 = vsel %vm2166, %v2170, %v2154
    %2175 = vrot.lane.b32.xlu0 %v1137, 127
    %v2176 = vpop.permute.xlu0 %2175
    %2177 = vrot.lane.b32.xlu0 %v1138, 127
    %v2178 = vpop.permute.xlu0 %2177
    %2179 = vrot.lane.b32.xlu0 %v1139, 127
    %v2180 = vpop.permute.xlu0 %2179
    %2181 = vrot.lane.b32.xlu0 %v1140, 127
    %v2182 = vpop.permute.xlu0 %2181
    %v2183 = vsub.f32 %v1137, %v2176
    %v2184 = vsub.f32 %v1138, %v2178
    %v2185 = vsub.f32 %v1139, %v2180
    %v2186 = vsub.f32 %v1140, %v2182
    %v2187 = vrot.slane %v1137, 1
    %v2188 = vrot.slane %v1138, 1
    %v2189 = vrot.slane %v1139, 1
    %v2190 = vrot.slane %v1140, 1
    %v2191 = vsel %vm306, %v2189, %v2190
    %v2192 = vsel %vm306, %v2188, %v2189
    %v2193 = vsel %vm306, %v2187, %v2188
    %v2194 = vsel %vm306, %v2190, %v2187
    %v2195 = vsub.f32 %v1137, %v2193
    %v2196 = vsub.f32 %v1138, %v2192
    %v2197 = vsub.f32 %v1139, %v2191
    %v2198 = vsub.f32 %v1140, %v2194
    %2199 = vrot.lane.b32.xlu0 %v1137, 1
    %v2200 = vpop.permute.xlu0 %2199
    %2201 = vrot.lane.b32.xlu0 %v1138, 1
    %v2202 = vpop.permute.xlu0 %2201
    %2203 = vrot.lane.b32.xlu0 %v1139, 1
    %v2204 = vpop.permute.xlu0 %2203
    %2205 = vrot.lane.b32.xlu0 %v1140, 1
    %v2206 = vpop.permute.xlu0 %2205
    %v2207 = vsub.f32 %v1137, %v2200
    %v2208 = vsub.f32 %v1138, %v2202
    %v2209 = vsub.f32 %v1139, %v2204
    %v2210 = vsub.f32 %v1140, %v2206
    %v2211 = vrot.slane %v1137, 7
    %v2212 = vrot.slane %v1138, 7
    %v2213 = vrot.slane %v1139, 7
    %v2214 = vrot.slane %v1140, 7
    %v2215 = vsel %vm289, %v2213, %v2214
    %v2216 = vsel %vm289, %v2212, %v2213
    %v2217 = vsel %vm289, %v2211, %v2212
    %v2218 = vsel %vm289, %v2214, %v2211
    %v2219 = vsub.f32 %v1137, %v2218
    %v2220 = vsub.f32 %v1138, %v2217
    %v2221 = vsub.f32 %v1139, %v2216
    %v2222 = vsub.f32 %v1140, %v2215
    %2223 = vrot.lane.b32.xlu0 %v2059, 127
    %v2224 = vpop.permute.xlu0 %2223
    %2225 = vrot.lane.b32.xlu0 %v2060, 127
    %v2226 = vpop.permute.xlu0 %2225
    %2227 = vrot.lane.b32.xlu0 %v2061, 127
    %v2228 = vpop.permute.xlu0 %2227
    %2229 = vrot.lane.b32.xlu0 %v2062, 127
    %v2230 = vpop.permute.xlu0 %2229
    %v2231 = vsub.f32 %v2059, %v2224
    %v2232 = vsub.f32 %v2060, %v2226
    %v2233 = vsub.f32 %v2061, %v2228
    %v2234 = vsub.f32 %v2062, %v2230
    %v2235 = vrot.slane %v2059, 1
    %v2236 = vrot.slane %v2060, 1
    %v2237 = vrot.slane %v2061, 1
    %v2238 = vrot.slane %v2062, 1
    %v2239 = vsel %vm306, %v2237, %v2238
    %v2240 = vsel %vm306, %v2236, %v2237
    %v2241 = vsel %vm306, %v2235, %v2236
    %v2242 = vsel %vm306, %v2238, %v2235
    %v2243 = vsub.f32 %v2059, %v2241
    %v2244 = vsub.f32 %v2060, %v2240
    %v2245 = vsub.f32 %v2061, %v2239
    %v2246 = vsub.f32 %v2062, %v2242
    %2247 = vrot.lane.b32.xlu0 %v2059, 1
    %v2248 = vpop.permute.xlu0 %2247
    %2249 = vrot.lane.b32.xlu0 %v2060, 1
    %v2250 = vpop.permute.xlu0 %2249
    %2251 = vrot.lane.b32.xlu0 %v2061, 1
    %v2252 = vpop.permute.xlu0 %2251
    %2253 = vrot.lane.b32.xlu0 %v2062, 1
    %v2254 = vpop.permute.xlu0 %2253
    %v2255 = vsub.f32 %v2059, %v2248
    %v2256 = vsub.f32 %v2060, %v2250
    %v2257 = vsub.f32 %v2061, %v2252
    %v2258 = vsub.f32 %v2062, %v2254
    %v2259 = vrot.slane %v2059, 7
    %v2260 = vrot.slane %v2060, 7
    %v2261 = vrot.slane %v2061, 7
    %v2262 = vrot.slane %v2062, 7
    %v2263 = vsel %vm289, %v2261, %v2262
    %v2264 = vsel %vm289, %v2260, %v2261
    %v2265 = vsel %vm289, %v2259, %v2260
    %v2266 = vsel %vm289, %v2262, %v2259
    %v2267 = vsub.f32 %v2059, %v2266
    %v2268 = vsub.f32 %v2060, %v2265
    %v2269 = vsub.f32 %v2061, %v2264
    %v2270 = vsub.f32 %v2062, %v2263
    %vm2271 = vcmp.eq.s32.totalorder %v2171, 0
    %vm2272 = vcmp.eq.s32.totalorder %v2172, 0
    %vm2273 = vcmp.eq.s32.totalorder %v2173, 0
    %vm2274 = vcmp.eq.s32.totalorder %v2174, 0
    %v2275 = vsel %vm2271, %v2183, 0.0
    %v2276 = vsel %vm2272, %v2184, 0.0
    %v2277 = vsel %vm2273, %v2185, 0.0
    %v2278 = vsel %vm2274, %v2186, 0.0
    %v2279 = vsel %vm2271, %v2231, 0.0
    %v2280 = vsel %vm2272, %v2232, 0.0
    %v2281 = vsel %vm2273, %v2233, 0.0
    %v2282 = vsel %vm2274, %v2234, 0.0
    %vm2283 = vcmp.eq.s32.totalorder %v2171, 1
    %vm2284 = vcmp.eq.s32.totalorder %v2172, 1
    %vm2285 = vcmp.eq.s32.totalorder %v2173, 1
    %vm2286 = vcmp.eq.s32.totalorder %v2174, 1
    %v2287 = vsel %vm2283, %v2195, %v2275
    %v2288 = vsel %vm2284, %v2196, %v2276
    %v2289 = vsel %vm2285, %v2197, %v2277
    %v2290 = vsel %vm2286, %v2198, %v2278
    %v2291 = vsel %vm2283, %v2243, %v2279
    %v2292 = vsel %vm2284, %v2244, %v2280
    %v2293 = vsel %vm2285, %v2245, %v2281
    %v2294 = vsel %vm2286, %v2246, %v2282
    %vm2295 = vcmp.eq.s32.totalorder %v2171, 2
    %vm2296 = vcmp.eq.s32.totalorder %v2172, 2
    %vm2297 = vcmp.eq.s32.totalorder %v2173, 2
    %vm2298 = vcmp.eq.s32.totalorder %v2174, 2
    %v2299 = vsel %vm2295, %v2207, %v2287
    %v2300 = vsel %vm2296, %v2208, %v2288
    %v2301 = vsel %vm2297, %v2209, %v2289
    %v2302 = vsel %vm2298, %v2210, %v2290
    %v2303 = vsel %vm2295, %v2255, %v2291
    %v2304 = vsel %vm2296, %v2256, %v2292
    %v2305 = vsel %vm2297, %v2257, %v2293
    %v2306 = vsel %vm2298, %v2258, %v2294
    %vm2307 = vcmp.eq.s32.totalorder %v2171, 3
    %vm2308 = vcmp.eq.s32.totalorder %v2172, 3
    %vm2309 = vcmp.eq.s32.totalorder %v2173, 3
    %vm2310 = vcmp.eq.s32.totalorder %v2174, 3
    %v2311 = vsel %vm2307, %v2219, %v2299
    %v2312 = vsel %vm2308, %v2220, %v2300
    %v2313 = vsel %vm2309, %v2221, %v2301
    %v2314 = vsel %vm2310, %v2222, %v2302
    %v2315 = vsel %vm2307, %v2267, %v2303
    %v2316 = vsel %vm2308, %v2268, %v2304
    %v2317 = vsel %vm2309, %v2269, %v2305
    %v2318 = vsel %vm2310, %v2270, %v2306
    %vm2319 = vcmp.eq.s32.totalorder %v2171, 4
    %vm2320 = vcmp.eq.s32.totalorder %v2172, 4
    %vm2321 = vcmp.eq.s32.totalorder %v2173, 4
    %vm2322 = vcmp.eq.s32.totalorder %v2174, 4
    %v2323 = vsel %vm2319, %v2231, %v2311
    %v2324 = vsel %vm2320, %v2232, %v2312
    %v2325 = vsel %vm2321, %v2233, %v2313
    %v2326 = vsel %vm2322, %v2234, %v2314
    %v2327 = vsel %vm2319, %v2183, %v2315
    %v2328 = vsel %vm2320, %v2184, %v2316
    %v2329 = vsel %vm2321, %v2185, %v2317
    %v2330 = vsel %vm2322, %v2186, %v2318
    %vm2331 = vcmp.eq.s32.totalorder %v2171, 5
    %vm2332 = vcmp.eq.s32.totalorder %v2172, 5
    %vm2333 = vcmp.eq.s32.totalorder %v2173, 5
    %vm2334 = vcmp.eq.s32.totalorder %v2174, 5
    %v2335 = vsel %vm2331, %v2243, %v2323
    %v2336 = vsel %vm2332, %v2244, %v2324
    %v2337 = vsel %vm2333, %v2245, %v2325
    %v2338 = vsel %vm2334, %v2246, %v2326
    %v2339 = vsel %vm2331, %v2195, %v2327
    %v2340 = vsel %vm2332, %v2196, %v2328
    %v2341 = vsel %vm2333, %v2197, %v2329
    %v2342 = vsel %vm2334, %v2198, %v2330
    %vm2343 = vcmp.eq.s32.totalorder %v2171, 6
    %vm2344 = vcmp.eq.s32.totalorder %v2172, 6
    %vm2345 = vcmp.eq.s32.totalorder %v2173, 6
    %vm2346 = vcmp.eq.s32.totalorder %v2174, 6
    %v2347 = vsel %vm2343, %v2255, %v2335
    %v2348 = vsel %vm2344, %v2256, %v2336
    %v2349 = vsel %vm2345, %v2257, %v2337
    %v2350 = vsel %vm2346, %v2258, %v2338
    %v2351 = vsel %vm2343, %v2207, %v2339
    %v2352 = vsel %vm2344, %v2208, %v2340
    %v2353 = vsel %vm2345, %v2209, %v2341
    %v2354 = vsel %vm2346, %v2210, %v2342
    %vm2355 = vcmp.eq.s32.totalorder %v2171, 7
    %vm2356 = vcmp.eq.s32.totalorder %v2172, 7
    %vm2357 = vcmp.eq.s32.totalorder %v2173, 7
    %vm2358 = vcmp.eq.s32.totalorder %v2174, 7
    %v2359 = vsel %vm2355, %v2267, %v2347
    %v2360 = vsel %vm2356, %v2268, %v2348
    %v2361 = vsel %vm2357, %v2269, %v2349
    %v2362 = vsel %vm2358, %v2270, %v2350
    %v2363 = vsel %vm2355, %v2219, %v2351
    %v2364 = vsel %vm2356, %v2220, %v2352
    %v2365 = vsel %vm2357, %v2221, %v2353
    %v2366 = vsel %vm2358, %v2222, %v2354
    %v2367 = vmin.f32 %v2359, %v2363
    %v2368 = vmin.f32 %v2360, %v2364
    %v2369 = vmin.f32 %v2361, %v2365
    %v2370 = vmin.f32 %v2362, %v2366
    %vm2371 = vcmp.gt.f32.partialorder %v2367, 0.0
    %vm2372 = vcmp.gt.f32.partialorder %v2368, 0.0
    %vm2373 = vcmp.gt.f32.partialorder %v2369, 0.0
    %vm2374 = vcmp.gt.f32.partialorder %v2370, 0.0
    %v2375 = vsel %vm2371, %v1137, 0.0
    %v2376 = vsel %vm2372, %v1138, 0.0
    %v2377 = vsel %vm2373, %v1139, 0.0
    %v2378 = vsel %vm2374, %v1140, 0.0
    %vm2379 = vcmp.gt.f32.partialorder %v2375, 100.0
    %vm2380 = vcmp.gt.f32.partialorder %v2376, 100.0
    %vm2381 = vcmp.gt.f32.partialorder %v2377, 100.0
    %vm2382 = vcmp.gt.f32.partialorder %v2378, 100.0
    %vm2383 = vcmp.ge.f32.partialorder %v2376, 10.0
    %vm2384 = vcmp.ge.f32.partialorder %v2377, 10.0
    %vm2385 = vcmp.le.f32.partialorder %v2376, 100.0
    %vm2386 = vcmp.le.f32.partialorder %v2377, 100.0
    %vm2387 = vmand %vm2383, %vm2385
    %vm2388 = vmand %vm2384, %vm2386
    %v2389 = vsel %vm2379, 1.0, 0.0
    %v2390 = vsel %vm2380, 1.0, 0.0
    %v2391 = vsel %vm2381, 1.0, 0.0
    %v2392 = vsel %vm2382, 1.0, 0.0
    %v2393 = vrot.slane %v2389, 7
    %v2394 = vrot.slane %v2390, 7
    %v2395 = vrot.slane %v2391, 7
    %v2396 = vsel %vm289, %v2394, %v2395
    %v2397 = vsel %vm289, %v2393, %v2394
    %v2398 = vrot.slane %v2390, 1
    %v2399 = vrot.slane %v2391, 1
    %v2400 = vrot.slane %v2392, 1
    %v2401 = vsel %vm306, %v2399, %v2400
    %v2402 = vsel %vm306, %v2398, %v2399
    %2403 = vrot.lane.b32.xlu0 %v2397, 1
    %v2404 = vpop.permute.xlu0 %2403
    %2405 = vrot.lane.b32.xlu0 %v2396, 1
    %v2406 = vpop.permute.xlu0 %2405
    %v2407 = vadd.f32 %v2404, %v2397
    %v2408 = vadd.f32 %v2406, %v2396
    %2409 = vrot.lane.b32.xlu0 %v2397, 127
    %v2410 = vpop.permute.xlu0 %2409
    %2411 = vrot.lane.b32.xlu0 %v2396, 127
    %v2412 = vpop.permute.xlu0 %2411
    %v2413 = vadd.f32 %v2407, %v2410
    %v2414 = vadd.f32 %v2408, %v2412
    %2415 = vrot.lane.b32.xlu0 %v2390, 1
    %v2416 = vpop.permute.xlu0 %2415
    %2417 = vrot.lane.b32.xlu0 %v2391, 1
    %v2418 = vpop.permute.xlu0 %2417
    %v2419 = vadd.f32 %v2413, %v2416
    %v2420 = vadd.f32 %v2414, %v2418
    %2421 = vrot.lane.b32.xlu0 %v2390, 127
    %v2422 = vpop.permute.xlu0 %2421
    %2423 = vrot.lane.b32.xlu0 %v2391, 127
    %v2424 = vpop.permute.xlu0 %2423
    %v2425 = vadd.f32 %v2419, %v2422
    %v2426 = vadd.f32 %v2420, %v2424
    %2427 = vrot.lane.b32.xlu0 %v2402, 1
    %v2428 = vpop.permute.xlu0 %2427
    %2429 = vrot.lane.b32.xlu0 %v2401, 1
    %v2430 = vpop.permute.xlu0 %2429
    %v2431 = vadd.f32 %v2425, %v2428
    %v2432 = vadd.f32 %v2426, %v2430
    %v2433 = vadd.f32 %v2431, %v2402
    %v2434 = vadd.f32 %v2432, %v2401
    %2435 = vrot.lane.b32.xlu0 %v2402, 127
    %v2436 = vpop.permute.xlu0 %2435
    %2437 = vrot.lane.b32.xlu0 %v2401, 127
    %v2438 = vpop.permute.xlu0 %2437
    %v2439 = vadd.f32 %v2433, %v2436
    %v2440 = vadd.f32 %v2434, %v2438
    %vm2441 = vcmp.gt.f32.partialorder %v2439, 0.0
    %vm2442 = vcmp.gt.f32.partialorder %v2440, 0.0
    %vm2443 = vmand %vm2387, %vm2441
    %vm2444 = vmand %vm2388, %vm2442
    %vm2445 = vmor %vm2380, %vm2443
    %vm2446 = vmor %vm2381, %vm2444
    %vm2447 = vmand %vm2445, %vm215
    %vm2448 = vmand %vm2446, %vm216
    %v2449 = vsel %vm2447, 0.003921569, 0.0
    %v2450 = vsel %vm2448, 0.003921569, 0.0
    %2451 = vst [vmem:[#allocation4] sm:$0xff] %v2449
    %2452 = vst [vmem:[#allocation4 + $0x8] sm:$0xff] %v2450
    %v2453 = vand.u32 2147483647, %v2051
    %v2454 = vand.u32 2147483647, %v2052
    %v2455 = vand.u32 2147483647, %v2053
    %v2456 = vand.u32 2147483647, %v2054
    %v2457 = vand.u32 2147483647, %v2055
    %v2458 = vand.u32 2147483647, %v2056
    %v2459 = vand.u32 2147483647, %v2057
    %v2460 = vand.u32 2147483647, %v2058
    %vm2461 = vcmp.ge.f32.partialorder %v2051, 0.0
    %vm2462 = vcmp.ge.f32.partialorder %v2052, 0.0
    %vm2463 = vcmp.ge.f32.partialorder %v2053, 0.0
    %vm2464 = vcmp.ge.f32.partialorder %v2054, 0.0
    %vm2465 = vcmp.ge.f32.partialorder %v2055, 0.0
    %vm2466 = vcmp.ge.f32.partialorder %v2056, 0.0
    %vm2467 = vcmp.ge.f32.partialorder %v2057, 0.0
    %vm2468 = vcmp.ge.f32.partialorder %v2058, 0.0
    %v2469 = vsel %vm2461, 0, 4
    %v2470 = vsel %vm2462, 0, 4
    %v2471 = vsel %vm2463, 0, 4
    %v2472 = vsel %vm2464, 0, 4
    %v2473 = vsel %vm2465, 2, 4294967294
    %v2474 = vsel %vm2466, 2, 4294967294
    %v2475 = vsel %vm2467, 2, 4294967294
    %v2476 = vsel %vm2468, 2, 4294967294
    %v2477 = vsel %vm2465, 1, 4294967295
    %v2478 = vsel %vm2466, 1, 4294967295
    %v2479 = vsel %vm2467, 1, 4294967295
    %v2480 = vsel %vm2468, 1, 4294967295
    %v2481 = vsel %vm2465, 3, 4294967293
    %v2482 = vsel %vm2466, 3, 4294967293
    %v2483 = vsel %vm2467, 3, 4294967293
    %v2484 = vsel %vm2468, 3, 4294967293
    %v2485 = vsel %vm2461, %v2477, %v2481
    %v2486 = vsel %vm2462, %v2478, %v2482
    %v2487 = vsel %vm2463, %v2479, %v2483
    %v2488 = vsel %vm2464, %v2480, %v2484
    %v2489 = vmul.f32 %v2453, 0.41421357
    %v2490 = vmul.f32 %v2454, 0.41421357
    %v2491 = vmul.f32 %v2455, 0.41421357
    %v2492 = vmul.f32 %v2456, 0.41421357
    %vm2493 = vcmp.le.f32.partialorder %v2457, %v2489
    %vm2494 = vcmp.le.f32.partialorder %v2458, %v2490
    %vm2495 = vcmp.le.f32.partialorder %v2459, %v2491
    %vm2496 = vcmp.le.f32.partialorder %v2460, %v2492
    %v2497 = vmul.f32 %v2453, 2.4142137
    %v2498 = vmul.f32 %v2454, 2.4142137
    %v2499 = vmul.f32 %v2455, 2.4142137
    %v2500 = vmul.f32 %v2456, 2.4142137
    %vm2501 = vcmp.ge.f32.partialorder %v2457, %v2497
    %vm2502 = vcmp.ge.f32.partialorder %v2458, %v2498
    %vm2503 = vcmp.ge.f32.partialorder %v2459, %v2499
    %vm2504 = vcmp.ge.f32.partialorder %v2460, %v2500
    %v2505 = vsel %vm2501, %v2473, %v2485
    %v2506 = vsel %vm2502, %v2474, %v2486
    %v2507 = vsel %vm2503, %v2475, %v2487
    %v2508 = vsel %vm2504, %v2476, %v2488
    %v2509 = vsel %vm2493, %v2469, %v2505
    %v2510 = vsel %vm2494, %v2470, %v2506
    %v2511 = vsel %vm2495, %v2471, %v2507
    %v2512 = vsel %vm2496, %v2472, %v2508
    %v2513 = vadd.s32 %v2509, 4
    %v2514 = vadd.s32 %v2510, 4
    %v2515 = vadd.s32 %v2511, 4
    %v2516 = vadd.s32 %v2512, 4
    %vm2517 = vcmp.lt.s32.totalorder %v2513, 0
    %v2518 = vsub.s32 0, %v2513
    %v2519 = vsel %vm2517, %v2518, %v2513
    %v2520 = vshrl.u32 %v2519, 3
    %v2521 = vand.u32 %v2519, 7
    %v2522 = vsub.s32 0, %v2521
    %v2523 = vsel %vm2517, %v2522, %v2521
    %vm2524 = vcmp.lt.s32.totalorder %v2514, 0
    %v2525 = vsub.s32 0, %v2514
    %v2526 = vsel %vm2524, %v2525, %v2514
    %v2527 = vshrl.u32 %v2526, 3
    %v2528 = vand.u32 %v2526, 7
    %v2529 = vsub.s32 0, %v2528
    %v2530 = vsel %vm2524, %v2529, %v2528
    %vm2531 = vcmp.lt.s32.totalorder %v2515, 0
    %v2532 = vsub.s32 0, %v2515
    %v2533 = vsel %vm2531, %v2532, %v2515
    %v2534 = vshrl.u32 %v2533, 3
    %v2535 = vand.u32 %v2533, 7
    %v2536 = vsub.s32 0, %v2535
    %v2537 = vsel %vm2531, %v2536, %v2535
    %vm2538 = vcmp.lt.s32.totalorder %v2516, 0
    %v2539 = vsub.s32 0, %v2516
    %v2540 = vsel %vm2538, %v2539, %v2516
    %v2541 = vshrl.u32 %v2540, 3
    %v2542 = vand.u32 %v2540, 7
    %v2543 = vsub.s32 0, %v2542
    %v2544 = vsel %vm2538, %v2543, %v2542
    %vm2545 = vcmp.ne.s32.totalorder %v2523, 0
    %vm2546 = vcmp.ne.s32.totalorder %v2530, 0
    %vm2547 = vcmp.ne.s32.totalorder %v2537, 0
    %vm2548 = vcmp.ne.s32.totalorder %v2544, 0
    %vm2549 = vcmp.lt.s32.totalorder %v2523, 0
    %vm2550 = vcmp.lt.s32.totalorder %v2530, 0
    %vm2551 = vcmp.lt.s32.totalorder %v2537, 0
    %vm2552 = vcmp.lt.s32.totalorder %v2544, 0
    %vm2553 = vmand %vm2549, %vm2545
    %vm2554 = vmand %vm2550, %vm2546
    %vm2555 = vmand %vm2551, %vm2547
    %vm2556 = vmand %vm2552, %vm2548
    %v2557 = vadd.s32 %v2523, 8
    %v2558 = vadd.s32 %v2530, 8
    %v2559 = vadd.s32 %v2537, 8
    %v2560 = vadd.s32 %v2544, 8
    %v2561 = vsel %vm2553, %v2557, %v2523
    %v2562 = vsel %vm2554, %v2558, %v2530
    %v2563 = vsel %vm2555, %v2559, %v2537
    %v2564 = vsel %vm2556, %v2560, %v2544
    %2565 = vrot.lane.b32.xlu0 %v2193, 127
    %v2566 = vpop.permute.xlu0 %2565
    %2567 = vrot.lane.b32.xlu0 %v2192, 127
    %v2568 = vpop.permute.xlu0 %2567
    %2569 = vrot.lane.b32.xlu0 %v2191, 127
    %v2570 = vpop.permute.xlu0 %2569
    %2571 = vrot.lane.b32.xlu0 %v2194, 127
    %v2572 = vpop.permute.xlu0 %2571
    %v2573 = vsub.f32 %v1137, %v2566
    %v2574 = vsub.f32 %v1138, %v2568
    %v2575 = vsub.f32 %v1139, %v2570
    %v2576 = vsub.f32 %v1140, %v2572
    %2577 = vrot.lane.b32.xlu0 %v2193, 1
    %v2578 = vpop.permute.xlu0 %2577
    %2579 = vrot.lane.b32.xlu0 %v2192, 1
    %v2580 = vpop.permute.xlu0 %2579
    %2581 = vrot.lane.b32.xlu0 %v2191, 1
    %v2582 = vpop.permute.xlu0 %2581
    %2583 = vrot.lane.b32.xlu0 %v2194, 1
    %v2584 = vpop.permute.xlu0 %2583
    %v2585 = vsub.f32 %v1137, %v2578
    %v2586 = vsub.f32 %v1138, %v2580
    %v2587 = vsub.f32 %v1139, %v2582
    %v2588 = vsub.f32 %v1140, %v2584
    %2589 = vrot.lane.b32.xlu0 %v2218, 1
    %v2590 = vpop.permute.xlu0 %2589
    %2591 = vrot.lane.b32.xlu0 %v2217, 1
    %v2592 = vpop.permute.xlu0 %2591
    %2593 = vrot.lane.b32.xlu0 %v2216, 1
    %v2594 = vpop.permute.xlu0 %2593
    %2595 = vrot.lane.b32.xlu0 %v2215, 1
    %v2596 = vpop.permute.xlu0 %2595
    %v2597 = vsub.f32 %v1137, %v2590
    %v2598 = vsub.f32 %v1138, %v2592
    %v2599 = vsub.f32 %v1139, %v2594
    %v2600 = vsub.f32 %v1140, %v2596
    %2601 = vrot.lane.b32.xlu0 %v2218, 127
    %v2602 = vpop.permute.xlu0 %2601
    %2603 = vrot.lane.b32.xlu0 %v2217, 127
    %v2604 = vpop.permute.xlu0 %2603
    %2605 = vrot.lane.b32.xlu0 %v2216, 127
    %v2606 = vpop.permute.xlu0 %2605
    %2607 = vrot.lane.b32.xlu0 %v2215, 127
    %v2608 = vpop.permute.xlu0 %2607
    %v2609 = vsub.f32 %v1137, %v2602
    %v2610 = vsub.f32 %v1138, %v2604
    %v2611 = vsub.f32 %v1139, %v2606
    %v2612 = vsub.f32 %v1140, %v2608
    %2613 = vrot.lane.b32.xlu0 %v2241, 127
    %v2614 = vpop.permute.xlu0 %2613
    %2615 = vrot.lane.b32.xlu0 %v2240, 127
    %v2616 = vpop.permute.xlu0 %2615
    %2617 = vrot.lane.b32.xlu0 %v2239, 127
    %v2618 = vpop.permute.xlu0 %2617
    %2619 = vrot.lane.b32.xlu0 %v2242, 127
    %v2620 = vpop.permute.xlu0 %2619
    %v2621 = vsub.f32 %v2059, %v2614
    %v2622 = vsub.f32 %v2060, %v2616
    %v2623 = vsub.f32 %v2061, %v2618
    %v2624 = vsub.f32 %v2062, %v2620
    %2625 = vrot.lane.b32.xlu0 %v2241, 1
    %v2626 = vpop.permute.xlu0 %2625
    %2627 = vrot.lane.b32.xlu0 %v2240, 1
    %v2628 = vpop.permute.xlu0 %2627
    %2629 = vrot.lane.b32.xlu0 %v2239, 1
    %v2630 = vpop.permute.xlu0 %2629
    %2631 = vrot.lane.b32.xlu0 %v2242, 1
    %v2632 = vpop.permute.xlu0 %2631
    %v2633 = vsub.f32 %v2059, %v2626
    %v2634 = vsub.f32 %v2060, %v2628
    %v2635 = vsub.f32 %v2061, %v2630
    %v2636 = vsub.f32 %v2062, %v2632
    %2637 = vrot.lane.b32.xlu0 %v2266, 1
    %v2638 = vpop.permute.xlu0 %2637
    %2639 = vrot.lane.b32.xlu0 %v2265, 1
    %v2640 = vpop.permute.xlu0 %2639
    %2641 = vrot.lane.b32.xlu0 %v2264, 1
    %v2642 = vpop.permute.xlu0 %2641
    %2643 = vrot.lane.b32.xlu0 %v2263, 1
    %v2644 = vpop.permute.xlu0 %2643
    %v2645 = vsub.f32 %v2059, %v2638
    %v2646 = vsub.f32 %v2060, %v2640
    %v2647 = vsub.f32 %v2061, %v2642
    %v2648 = vsub.f32 %v2062, %v2644
    %2649 = vrot.lane.b32.xlu0 %v2266, 127
    %v2650 = vpop.permute.xlu0 %2649
    %2651 = vrot.lane.b32.xlu0 %v2265, 127
    %v2652 = vpop.permute.xlu0 %2651
    %2653 = vrot.lane.b32.xlu0 %v2264, 127
    %v2654 = vpop.permute.xlu0 %2653
    %2655 = vrot.lane.b32.xlu0 %v2263, 127
    %v2656 = vpop.permute.xlu0 %2655
    %v2657 = vsub.f32 %v2059, %v2650
    %v2658 = vsub.f32 %v2060, %v2652
    %v2659 = vsub.f32 %v2061, %v2654
    %v2660 = vsub.f32 %v2062, %v2656
    %vm2661 = vcmp.eq.s32.totalorder %v2561, 0
    %vm2662 = vcmp.eq.s32.totalorder %v2562, 0
    %vm2663 = vcmp.eq.s32.totalorder %v2563, 0
    %vm2664 = vcmp.eq.s32.totalorder %v2564, 0
    %v2665 = vsel %vm2661, %v2573, 0.0
    %v2666 = vsel %vm2662, %v2574, 0.0
    %v2667 = vsel %vm2663, %v2575, 0.0
    %v2668 = vsel %vm2664, %v2576, 0.0
    %v2669 = vsel %vm2661, %v2621, 0.0
    %v2670 = vsel %vm2662, %v2622, 0.0
    %v2671 = vsel %vm2663, %v2623, 0.0
    %v2672 = vsel %vm2664, %v2624, 0.0
    %vm2673 = vcmp.eq.s32.totalorder %v2561, 1
    %vm2674 = vcmp.eq.s32.totalorder %v2562, 1
    %vm2675 = vcmp.eq.s32.totalorder %v2563, 1
    %vm2676 = vcmp.eq.s32.totalorder %v2564, 1
    %v2677 = vsel %vm2673, %v2585, %v2665
    %v2678 = vsel %vm2674, %v2586, %v2666
    %v2679 = vsel %vm2675, %v2587, %v2667
    %v2680 = vsel %vm2676, %v2588, %v2668
    %v2681 = vsel %vm2673, %v2633, %v2669
    %v2682 = vsel %vm2674, %v2634, %v2670
    %v2683 = vsel %vm2675, %v2635, %v2671
    %v2684 = vsel %vm2676, %v2636, %v2672
    %vm2685 = vcmp.eq.s32.totalorder %v2561, 2
    %vm2686 = vcmp.eq.s32.totalorder %v2562, 2
    %vm2687 = vcmp.eq.s32.totalorder %v2563, 2
    %vm2688 = vcmp.eq.s32.totalorder %v2564, 2
    %v2689 = vsel %vm2685, %v2597, %v2677
    %v2690 = vsel %vm2686, %v2598, %v2678
    %v2691 = vsel %vm2687, %v2599, %v2679
    %v2692 = vsel %vm2688, %v2600, %v2680
    %v2693 = vsel %vm2685, %v2645, %v2681
    %v2694 = vsel %vm2686, %v2646, %v2682
    %v2695 = vsel %vm2687, %v2647, %v2683
    %v2696 = vsel %vm2688, %v2648, %v2684
    %vm2697 = vcmp.eq.s32.totalorder %v2561, 3
    %vm2698 = vcmp.eq.s32.totalorder %v2562, 3
    %vm2699 = vcmp.eq.s32.totalorder %v2563, 3
    %vm2700 = vcmp.eq.s32.totalorder %v2564, 3
    %v2701 = vsel %vm2697, %v2609, %v2689
    %v2702 = vsel %vm2698, %v2610, %v2690
    %v2703 = vsel %vm2699, %v2611, %v2691
    %v2704 = vsel %vm2700, %v2612, %v2692
    %v2705 = vsel %vm2697, %v2657, %v2693
    %v2706 = vsel %vm2698, %v2658, %v2694
    %v2707 = vsel %vm2699, %v2659, %v2695
    %v2708 = vsel %vm2700, %v2660, %v2696
    %vm2709 = vcmp.eq.s32.totalorder %v2561, 4
    %vm2710 = vcmp.eq.s32.totalorder %v2562, 4
    %vm2711 = vcmp.eq.s32.totalorder %v2563, 4
    %vm2712 = vcmp.eq.s32.totalorder %v2564, 4
    %v2713 = vsel %vm2709, %v2621, %v2701
    %v2714 = vsel %vm2710, %v2622, %v2702
    %v2715 = vsel %vm2711, %v2623, %v2703
    %v2716 = vsel %vm2712, %v2624, %v2704
    %v2717 = vsel %vm2709, %v2573, %v2705
    %v2718 = vsel %vm2710, %v2574, %v2706
    %v2719 = vsel %vm2711, %v2575, %v2707
    %v2720 = vsel %vm2712, %v2576, %v2708
    %vm2721 = vcmp.eq.s32.totalorder %v2561, 5
    %vm2722 = vcmp.eq.s32.totalorder %v2562, 5
    %vm2723 = vcmp.eq.s32.totalorder %v2563, 5
    %vm2724 = vcmp.eq.s32.totalorder %v2564, 5
    %v2725 = vsel %vm2721, %v2633, %v2713
    %v2726 = vsel %vm2722, %v2634, %v2714
    %v2727 = vsel %vm2723, %v2635, %v2715
    %v2728 = vsel %vm2724, %v2636, %v2716
    %v2729 = vsel %vm2721, %v2585, %v2717
    %v2730 = vsel %vm2722, %v2586, %v2718
    %v2731 = vsel %vm2723, %v2587, %v2719
    %v2732 = vsel %vm2724, %v2588, %v2720
    %vm2733 = vcmp.eq.s32.totalorder %v2561, 6
    %vm2734 = vcmp.eq.s32.totalorder %v2562, 6
    %vm2735 = vcmp.eq.s32.totalorder %v2563, 6
    %vm2736 = vcmp.eq.s32.totalorder %v2564, 6
    %v2737 = vsel %vm2733, %v2645, %v2725
    %v2738 = vsel %vm2734, %v2646, %v2726
    %v2739 = vsel %vm2735, %v2647, %v2727
    %v2740 = vsel %vm2736, %v2648, %v2728
    %v2741 = vsel %vm2733, %v2597, %v2729
    %v2742 = vsel %vm2734, %v2598, %v2730
    %v2743 = vsel %vm2735, %v2599, %v2731
    %v2744 = vsel %vm2736, %v2600, %v2732
    %vm2745 = vcmp.eq.s32.totalorder %v2561, 7
    %vm2746 = vcmp.eq.s32.totalorder %v2562, 7
    %vm2747 = vcmp.eq.s32.totalorder %v2563, 7
    %vm2748 = vcmp.eq.s32.totalorder %v2564, 7
    %v2749 = vsel %vm2745, %v2657, %v2737
    %v2750 = vsel %vm2746, %v2658, %v2738
    %v2751 = vsel %vm2747, %v2659, %v2739
    %v2752 = vsel %vm2748, %v2660, %v2740
    %v2753 = vsel %vm2745, %v2609, %v2741
    %v2754 = vsel %vm2746, %v2610, %v2742
    %v2755 = vsel %vm2747, %v2611, %v2743
    %v2756 = vsel %vm2748, %v2612, %v2744
    %v2757 = vmin.f32 %v2749, %v2753
    %v2758 = vmin.f32 %v2750, %v2754
    %v2759 = vmin.f32 %v2751, %v2755
    %v2760 = vmin.f32 %v2752, %v2756
    %vm2761 = vcmp.gt.f32.partialorder %v2757, 0.0
    %vm2762 = vcmp.gt.f32.partialorder %v2758, 0.0
    %vm2763 = vcmp.gt.f32.partialorder %v2759, 0.0
    %vm2764 = vcmp.gt.f32.partialorder %v2760, 0.0
    %v2765 = vsel %vm2761, %v2059, 0.0
    %v2766 = vsel %vm2762, %v2060, 0.0
    %v2767 = vsel %vm2763, %v2061, 0.0
    %v2768 = vsel %vm2764, %v2062, 0.0
    %vm2769 = vcmp.gt.f32.partialorder %v2765, 100.0
    %vm2770 = vcmp.gt.f32.partialorder %v2766, 100.0
    %vm2771 = vcmp.gt.f32.partialorder %v2767, 100.0
    %vm2772 = vcmp.gt.f32.partialorder %v2768, 100.0
    %vm2773 = vcmp.ge.f32.partialorder %v2766, 10.0
    %vm2774 = vcmp.ge.f32.partialorder %v2767, 10.0
    %vm2775 = vcmp.le.f32.partialorder %v2766, 100.0
    %vm2776 = vcmp.le.f32.partialorder %v2767, 100.0
    %vm2777 = vmand %vm2773, %vm2775
    %vm2778 = vmand %vm2774, %vm2776
    %v2779 = vsel %vm2769, 1.0, 0.0
    %v2780 = vsel %vm2770, 1.0, 0.0
    %v2781 = vsel %vm2771, 1.0, 0.0
    %v2782 = vsel %vm2772, 1.0, 0.0
    %v2783 = vrot.slane %v2779, 7
    %v2784 = vrot.slane %v2780, 7
    %v2785 = vrot.slane %v2781, 7
    %v2786 = vsel %vm289, %v2784, %v2785
    %v2787 = vsel %vm289, %v2783, %v2784
    %v2788 = vrot.slane %v2780, 1
    %v2789 = vrot.slane %v2781, 1
    %v2790 = vrot.slane %v2782, 1
    %v2791 = vsel %vm306, %v2789, %v2790
    %v2792 = vsel %vm306, %v2788, %v2789
    %2793 = vrot.lane.b32.xlu0 %v2787, 1
    %v2794 = vpop.permute.xlu0 %2793
    %2795 = vrot.lane.b32.xlu0 %v2786, 1
    %v2796 = vpop.permute.xlu0 %2795
    %v2797 = vadd.f32 %v2794, %v2787
    %v2798 = vadd.f32 %v2796, %v2786
    %2799 = vrot.lane.b32.xlu0 %v2787, 127
    %v2800 = vpop.permute.xlu0 %2799
    %2801 = vrot.lane.b32.xlu0 %v2786, 127
    %v2802 = vpop.permute.xlu0 %2801
    %v2803 = vadd.f32 %v2797, %v2800
    %v2804 = vadd.f32 %v2798, %v2802
    %2805 = vrot.lane.b32.xlu0 %v2780, 1
    %v2806 = vpop.permute.xlu0 %2805
    %2807 = vrot.lane.b32.xlu0 %v2781, 1
    %v2808 = vpop.permute.xlu0 %2807
    %v2809 = vadd.f32 %v2803, %v2806
    %v2810 = vadd.f32 %v2804, %v2808
    %2811 = vrot.lane.b32.xlu0 %v2780, 127
    %v2812 = vpop.permute.xlu0 %2811
    %2813 = vrot.lane.b32.xlu0 %v2781, 127
    %v2814 = vpop.permute.xlu0 %2813
    %v2815 = vadd.f32 %v2809, %v2812
    %v2816 = vadd.f32 %v2810, %v2814
    %2817 = vrot.lane.b32.xlu0 %v2792, 1
    %v2818 = vpop.permute.xlu0 %2817
    %2819 = vrot.lane.b32.xlu0 %v2791, 1
    %v2820 = vpop.permute.xlu0 %2819
    %v2821 = vadd.f32 %v2815, %v2818
    %v2822 = vadd.f32 %v2816, %v2820
    %v2823 = vadd.f32 %v2821, %v2792
    %v2824 = vadd.f32 %v2822, %v2791
    %2825 = vrot.lane.b32.xlu0 %v2792, 127
    %v2826 = vpop.permute.xlu0 %2825
    %2827 = vrot.lane.b32.xlu0 %v2791, 127
    %v2828 = vpop.permute.xlu0 %2827
    %v2829 = vadd.f32 %v2823, %v2826
    %v2830 = vadd.f32 %v2824, %v2828
    %vm2831 = vcmp.gt.f32.partialorder %v2829, 0.0
    %vm2832 = vcmp.gt.f32.partialorder %v2830, 0.0
    %vm2833 = vmand %vm2777, %vm2831
    %vm2834 = vmand %vm2778, %vm2832
    %vm2835 = vmor %vm2770, %vm2833
    %vm2836 = vmor %vm2771, %vm2834
    %vm2837 = vmand %vm2835, %vm215
    %vm2838 = vmand %vm2836, %vm216
    %v2839 = vsel %vm2837, 0.003921569, 0.0
    %v2840 = vsel %vm2838, 0.003921569, 0.0
    %s2841 = scalar_lea.vmem [#allocation4], 16
    %2842 = vst [vmem:[%s2841] sm:$0xff] %v2839
    %2843 = vst [vmem:[%s2841 + $0x8] sm:$0xff] %v2840
    // Predicated region
    $region86: #{canny_detector.1} parent=1 // pred_check
      _
    $region87: #{canny_detector.1} parent=1 // pred_check_branch
      %2845 = sbr.rel (0) target = $region89
    $region88: #{canny_detector.1} parent=1 // pred_region
      %s2847 = ssub.s32 512, 512
      %2848 = vsyncadd [#allocation5], %s2847
      %s2849 = sshll.u32 [#allocation4], 4
      %s2850 = int_to_ptr.vmem [resolvable:$true] %s2849
      %2855 = dma.vmem_to_hbm [thread:$0]  %s2850, 512, %s2, [#allocation5], 128, 128, 8
    $region89: #{canny_detector.1} parent=1 // pred_fallthru
      _
    // Predicated region
    $region90: #{canny_detector.1} parent=1 // pred_check
      _
    $region91: #{canny_detector.1} parent=1 // pred_check_branch
      %2857 = sbr.rel (0) target = $region93
    $region92: #{canny_detector.1} parent=1 // pred_region
      %2858 = dma.done [#allocation5], 512
    $region93: #{canny_detector.1} parent=1 // pred_fallthru
      _
    %2859 = vsyncpa [#allocation5], 1

</llo_original>
